<compile_context>
chip_gen: v5e
topology: v5e:2x2
jax: 0.10.0
libtpu: 0.0.40
codegen_flags: <defaults>
</compile_context>

<pallas_src>
import math

import jax
import jax.numpy as jnp
from jax.experimental import pallas as pl
from jax.experimental.pallas import tpu as pltpu

# ---------------- configuration (small shapes) ----------------
EMBED_DIM = 32
IMAGE_EMBEDDING_SIZE = (16, 16)          # (He, We)
INPUT_IMAGE_SIZE = (64, 64)              # (H, W)
MASK_IN_CHANS = 16
MIC4 = MASK_IN_CHANS // 4
MASK_INPUT_SIZE = (4 * IMAGE_EMBEDDING_SIZE[0], 4 * IMAGE_EMBEDDING_SIZE[1])
LN_EPS = 1e-6
HALF = EMBED_DIM // 2

# ---- packed parameter slab (single DMA for ALL params) ----
# lane width 32, sublane rows laid out so every in-kernel access is a plain
# static slice (no reshapes / transposes inside the kernel):
_R_W1E = 0       # rows  0:16 , cols 0:16  expanded (block-diagonal) conv1 weight
_R_W2 = 16       # rows 16:32 , cols 0:16  conv2 weight      [c2, c1*4 + a*2 + b]
_R_W3 = 32       # rows 32:64 , cols 0:16  conv3 (1x1) weight
_R_VEC = 64      # rows 64:80 , cols 0:6   b1e,g1e,be1e,b2,g2,be2 (column vectors)
_R_B3 = 64       # rows 64:96 , col  6     conv3 bias (32 rows)
_R_GAUSS = 96    # rows 96:98 , cols 0:16  positional-encoding gaussian matrix
_R_PTEMB = 98    # rows 98:102, cols 0:32  point_embeddings[0..3]
_R_NAP = 102     # row  102   , cols 0:32  not_a_point_embed
_PRM_ROWS = 104
_PRM_COLS = 32

_SQRT1_2 = 1.0 / math.sqrt(2.0)


# ---------------- in-kernel math helpers ----------------
def _gelu_exact(x):
    """Exact (erf-form) GELU.

    erf via Abramowitz & Stegun 7.1.26 (|abs err| < 1.5e-7); the divide is an
    approximate EUP reciprocal and exp is an EUP op, so the transcendental
    work stays off the VALU.
    """
    a1, a2, a3, a4, a5 = 0.254829592, -0.284496736, 1.421413741, -1.453152027, 1.061405429
    p = 0.3275911
    z = x * _SQRT1_2
    az = jnp.abs(z)
    sgn = jnp.where(z >= 0.0, 1.0, -1.0)
    t = pl.reciprocal(1.0 + p * az, approx=True)          # EUP
    poly = ((((a5 * t + a4) * t + a3) * t + a2) * t + a1) * t
    erf = sgn * (1.0 - poly * jnp.exp(-az * az))           # exp on the EUP
    return 0.5 * x * (1.0 + erf)


def _sparse_into(prm_ref, pts_ref, out_ref):
    """Point/box positional encoding + label-conditioned embedding add.

    pts_ref: (M, 3) f32 rows = [x, y, label]  (labels in {-1,0,1,2,3} as f32)
    out_ref: (M, D) f32
    """
    gauss = prm_ref[_R_GAUSS:_R_GAUSS + 2, 0:HALF]                       # (2, D/2)
    # fold "+0.5 pixel-center", /[W,H] normalization and "2*c - 1" into an affine
    sx = 2.0 / float(INPUT_IMAGE_SIZE[1])
    sy = 2.0 / float(INPUT_IMAGE_SIZE[0])
    cx = (pts_ref[:, 0:1] + 0.5) * sx - 1.0                              # (M, 1)
    cy = (pts_ref[:, 1:2] + 0.5) * sy - 1.0                              # (M, 1)
    # (M,2)@(2,D/2) as two broadcast-FMAs (tiny; not worth an MXU push/pop)
    proj = (2.0 * math.pi) * (cx * gauss[0:1, :] + cy * gauss[1:2, :])   # (M, D/2)

    lab = pts_ref[:, 2:3]                                                # (M, 1)
    keep = jnp.where(lab == -1.0, 0.0, 1.0)                              # zero PE for pad
    add = jnp.where(lab == -1.0, 1.0, 0.0) * prm_ref[_R_NAP:_R_NAP + 1, 0:EMBED_DIM]
    for lbl in range(4):
        add = add + (jnp.where(lab == float(lbl), 1.0, 0.0)
                     * prm_ref[_R_PTEMB + lbl:_R_PTEMB + lbl + 1, 0:EMBED_DIM])

    # write sin/cos halves directly (no lane-concat of half-width vregs)
    out_ref[:, :HALF] = jnp.sin(proj) * keep + add[:, :HALF]
    out_ref[:, HALF:] = jnp.cos(proj) * keep + add[:, HALF:]


def _dense_into(prm_ref, xp_ref, out_ref):
    """Fully fused mask_downscaling for ALL batch elements (B folded into lanes).

    xp_ref : (16, N)   two-level patchified mask; row = (kh*2+kw)*4 + (a*2+b),
                       lane = b_idx*He*We + i2*We + j2  (N = B*He*We)
    out_ref: (D, N)    channel-major dense embedding (lane-dense, N % 128 == 0)
    """
    hi = jax.lax.Precision.HIGHEST
    w1e = prm_ref[_R_W1E:_R_W1E + 16, 0:16]          # (16,16) block-diag conv1
    w2 = prm_ref[_R_W2:_R_W2 + 16, 0:16]             # (16,16)
    w3 = prm_ref[_R_W3:_R_W3 + 32, 0:16]             # (32,16)
    b1e = prm_ref[_R_VEC:_R_VEC + 16, 0:1]           # (16,1) per-row expanded
    g1e = prm_ref[_R_VEC:_R_VEC + 16, 1:2]
    be1e = prm_ref[_R_VEC:_R_VEC + 16, 2:3]
    b2 = prm_ref[_R_VEC:_R_VEC + 16, 3:4]
    g2 = prm_ref[_R_VEC:_R_VEC + 16, 4:5]
    be2 = prm_ref[_R_VEC:_R_VEC + 16, 5:6]
    b3 = prm_ref[_R_B3:_R_B3 + 32, 6:7]              # (32,1)

    xp = xp_ref[...]                                                      # (16, N)

    # ---- stage 1: Conv2d(1, MIC4, k=2, s=2) as one (16,16)x(16,N) MXU matmul ----
    y1 = jnp.dot(w1e, xp, preferred_element_type=jnp.float32, precision=hi) + b1e
    # LayerNorm2d over the MIC4 channels: rows c1*4+p1, channel slabs are (4, N)
    s = [y1[4 * c:4 * (c + 1), :] for c in range(MIC4)]
    u = (s[0] + s[1] + s[2] + s[3]) * 0.25
    d = [t - u for t in s]
    var = (d[0] * d[0] + d[1] * d[1] + d[2] * d[2] + d[3] * d[3]) * 0.25
    inv = jax.lax.rsqrt(var + LN_EPS)
    y1n = jnp.concatenate([t * inv for t in d], axis=0)                   # (16, N)
    a1 = _gelu_exact(g1e * y1n + be1e)                                    # full vregs

    # ---- stage 2: Conv2d(MIC4, C2, k=2, s=2) as (16,16)x(16,N) MXU matmul ----
    y2 = jnp.dot(w2, a1, preferred_element_type=jnp.float32, precision=hi) + b2
    u2 = jnp.mean(y2, axis=0, keepdims=True)                              # sublane reduce
    d2 = y2 - u2
    v2 = jnp.mean(d2 * d2, axis=0, keepdims=True)
    a2 = _gelu_exact(g2 * (d2 * jax.lax.rsqrt(v2 + LN_EPS)) + be2)        # (16, N)

    # ---- stage 3: 1x1 conv as (32,16)x(16,N) MXU matmul; lane-dense store ----
    out_ref[...] = jnp.dot(w3, a2, preferred_element_type=jnp.float32, precision=hi) + b3


# ---------------- Pallas kernels (thin wrappers around the shared bodies) ----------------
def _fused_kernel(prm_ref, pts_ref, xp_ref, sparse_ref, dense_ref):
    _sparse_into(prm_ref, pts_ref, sparse_ref)
    _dense_into(prm_ref, xp_ref, dense_ref)


def _points_kernel(prm_ref, pts_ref, sparse_ref):
    _sparse_into(prm_ref, pts_ref, sparse_ref)


def _masks_kernel(prm_ref, xp_ref, dense_ref):
    _dense_into(prm_ref, xp_ref, dense_ref)


_VMEM = pl.BlockSpec(memory_space=pltpu.MemorySpace.VMEM)


def _call_fused(prm, pts, xp):
    M = pts.shape[0]
    N = xp.shape[1]
    return pl.pallas_call(
        _fused_kernel,
        out_shape=(jax.ShapeDtypeStruct((M, EMBED_DIM), jnp.float32),
                   jax.ShapeDtypeStruct((EMBED_DIM, N), jnp.float32)),
        in_specs=[_VMEM, _VMEM, _VMEM],
        out_specs=[_VMEM, _VMEM],
    )(prm, pts, xp)


def _call_points(prm, pts):
    M = pts.shape[0]
    return pl.pallas_call(
        _points_kernel,
        out_shape=jax.ShapeDtypeStruct((M, EMBED_DIM), jnp.float32),
        in_specs=[_VMEM, _VMEM],
        out_specs=_VMEM,
    )(prm, pts)


def _call_masks(prm, xp):
    N = xp.shape[1]
    return pl.pallas_call(
        _masks_kernel,
        out_shape=jax.ShapeDtypeStruct((EMBED_DIM, N), jnp.float32),
        in_specs=[_VMEM, _VMEM],
        out_specs=_VMEM,
    )(prm, xp)


# ---------------- host-side layout helpers (tiny XLA ops) ----------------
def _pack_params(params):
    """Pack all parameters into one (104, 32) f32 slab (single kernel DMA)."""
    w1 = params["conv1_w"].reshape(MIC4, 4)                    # [c1, kh*2+kw]
    eye4 = jnp.eye(4, dtype=jnp.float32)
    # W1e[c1*4+p1, t*4+p1'] = w1[c1, t] * delta(p1, p1')  (block-diagonal expansion)
    w1e = (w1[:, None, :, None] * eye4[None, :, None, :]).reshape(4 * MIC4, 16)
    vec = jnp.stack([jnp.repeat(params["conv1_b"], 4),
                     jnp.repeat(params["ln1_w"], 4),
                     jnp.repeat(params["ln1_b"], 4),
                     params["conv2_b"], params["ln2_w"], params["ln2_b"]], axis=1)   # (16, 6)

    prm = jnp.zeros((_PRM_ROWS, _PRM_COLS), jnp.float32)
    prm = prm.at[_R_W1E:_R_W1E + 16, 0:16].set(w1e)
    prm = prm.at[_R_W2:_R_W2 + 16, 0:16].set(params["conv2_w"].reshape(MASK_IN_CHANS, 4 * MIC4))
    prm = prm.at[_R_W3:_R_W3 + 32, 0:16].set(params["conv3_w"].reshape(EMBED_DIM, MASK_IN_CHANS))
    prm = prm.at[_R_VEC:_R_VEC + 16, 0:6].set(vec)
    prm = prm.at[_R_B3:_R_B3 + 32, 6].set(params["conv3_b"])
    prm = prm.at[_R_GAUSS:_R_GAUSS + 2, 0:HALF].set(params["gauss"])
    prm = prm.at[_R_PTEMB:_R_PTEMB + 4, 0:EMBED_DIM].set(params["point_emb"])
    prm = prm.at[_R_NAP, 0:EMBED_DIM].set(params["not_a_point"][0])
    return prm


def _patchify_masks(masks):
    """(B, 1, 4He, 4We) -> (16, B*He*We): two-level 2x2 patchify, batch on lanes.

    Row index = (kh*2+kw)*4 + (a*2+b); lane index = b_idx*He*We + i2*We + j2.
    TODO(synk): this single layout pass stays in the XLA wrapper; an in-kernel
    version would need lane-strided (stride-4) gathers Mosaic lowers poorly.
    """
    B = masks.shape[0]
    He, We = IMAGE_EMBEDDING_SIZE
    S = He * We
    x = masks.astype(jnp.float32).reshape(B, He, 2, 2, We, 2, 2)   # (B,i2,a,kh,j2,b,kw)
    return jnp.transpose(x, (3, 6, 2, 5, 0, 1, 4)).reshape(16, B * S)


# ---------------- glue: parameters ----------------
def init_params(key):
    ks = jax.random.split(key, 10)
    return {
        # PositionEmbeddingRandom (scale=1.0)
        "gauss": jax.random.normal(ks[0], (2, EMBED_DIM // 2), jnp.float32),
        # point embeddings: 4 x nn.Embedding(1, embed_dim) stacked
        "point_emb": jax.random.normal(ks[1], (4, EMBED_DIM), jnp.float32),
        "not_a_point": jax.random.normal(ks[2], (1, EMBED_DIM), jnp.float32),
        "no_mask": jax.random.normal(ks[3], (1, EMBED_DIM), jnp.float32),
        # mask_downscaling (PyTorch conv layout: (Cout, Cin, kh, kw))
        "conv1_w": 0.1 * jax.random.normal(ks[4], (MIC4, 1, 2, 2), jnp.float32),
        "conv1_b": 0.01 * jax.random.normal(ks[5], (MIC4,), jnp.float32),
        "ln1_w": jnp.ones((MIC4,), jnp.float32),
        "ln1_b": jnp.zeros((MIC4,), jnp.float32),
        "conv2_w": 0.1 * jax.random.normal(ks[6], (MASK_IN_CHANS, MIC4, 2, 2), jnp.float32),
        "conv2_b": 0.01 * jax.random.normal(ks[7], (MASK_IN_CHANS,), jnp.float32),
        "ln2_w": jnp.ones((MASK_IN_CHANS,), jnp.float32),
        "ln2_b": jnp.zeros((MASK_IN_CHANS,), jnp.float32),
        "conv3_w": 0.1 * jax.random.normal(ks[8], (EMBED_DIM, MASK_IN_CHANS, 1, 1), jnp.float32),
        "conv3_b": 0.01 * jax.random.normal(ks[9], (EMBED_DIM,), jnp.float32),
    }


# ---------------- glue: forward ----------------
def prompt_encoder_forward(params, points=None, boxes=None, masks=None):
    """Returns (sparse_embeddings (B, N, D), dense_embeddings (B, D, He, We))."""
    He, We = IMAGE_EMBEDDING_SIZE

    if points is not None:
        bs = points[0].shape[0]
    elif boxes is not None:
        bs = boxes.shape[0]
    elif masks is not None:
        bs = masks.shape[0]
    else:
        bs = 1

    prm = _pack_params(params)

    # ----- assemble point/box coordinates & labels (XLA; tiny) -----
    all_coords = None
    all_labels = None
    if points is not None:
        coords, labels = points
        coords = coords.astype(jnp.float32)
        labels = labels.astype(jnp.float32)
        if boxes is None:  # pad with a "not a point" entry
            coords = jnp.concatenate([coords, jnp.zeros((bs, 1, 2), jnp.float32)], axis=1)
            labels = jnp.concatenate([labels, -jnp.ones((bs, 1), jnp.float32)], axis=1)
        all_coords, all_labels = coords, labels
    if boxes is not None:
        bc = boxes.astype(jnp.float32).reshape(-1, 2, 2)            # (B, 2, 2) corners
        blab = jnp.tile(jnp.array([[2.0, 3.0]], jnp.float32), (bc.shape[0], 1))
        if all_coords is None:
            all_coords, all_labels = bc, blab
        else:
            all_coords = jnp.concatenate([all_coords, bc], axis=1)
            all_labels = jnp.concatenate([all_labels, blab], axis=1)

    pts = None
    T = 0
    if all_coords is not None:
        B_, T, _ = all_coords.shape
        pts = jnp.concatenate(
            [all_coords.reshape(B_ * T, 2), all_labels.reshape(B_ * T, 1)], axis=1)  # (M, 3)

    xp = _patchify_masks(masks) if masks is not None else None

    # ----- single fused kernel when both paths are live; tiny single call otherwise -----
    flat_sparse = None
    flat_dense = None
    if pts is not None and xp is not None:
        flat_sparse, flat_dense = _call_fused(prm, pts, xp)
    elif pts is not None:
        flat_sparse = _call_points(prm, pts)
    elif xp is not None:
        flat_dense = _call_masks(prm, xp)

    if flat_sparse is not None:
        sparse = flat_sparse.reshape(bs, T, EMBED_DIM)
    else:
        sparse = jnp.zeros((bs, 0, EMBED_DIM), jnp.float32)

    if flat_dense is not None:
        B_m = masks.shape[0]
        dense = jnp.transpose(flat_dense.reshape(EMBED_DIM, B_m, He, We), (1, 0, 2, 3))
    else:
        dense = jnp.broadcast_to(
            params["no_mask"].reshape(1, EMBED_DIM, 1, 1), (bs, EMBED_DIM, He, We))

    return sparse, dense


# ---------------- pure-JAX reference (for correctness check only) ----------------
def _ref_forward(params, points=None, boxes=None, masks=None):
    H_in, W_in = INPUT_IMAGE_SIZE
    He, We = IMAGE_EMBEDDING_SIZE
    if points is not None:
        bs = points[0].shape[0]
    elif boxes is not None:
        bs = boxes.shape[0]
    elif masks is not None:
        bs = masks.shape[0]
    else:
        bs = 1

    def pe_with_coords(c):  # c already +0.5 shifted
        c = c / jnp.array([float(W_in), float(H_in)], jnp.float32)
        c = 2.0 * c - 1.0
        proj = c[..., 0:1] * params["gauss"][0] + c[..., 1:2] * params["gauss"][1]
        proj = (2.0 * math.pi) * proj
        return jnp.concatenate([jnp.sin(proj), jnp.cos(proj)], axis=-1)

    parts = []
    if points is not None:
        coords, labels = points
        coords = coords.astype(jnp.float32)
        labels = labels.astype(jnp.int32)
        if boxes is None:
            coords = jnp.concatenate([coords, jnp.zeros((bs, 1, 2), jnp.float32)], axis=1)
            labels = jnp.concatenate([labels, -jnp.ones((bs, 1), jnp.int32)], axis=1)
        pe = pe_with_coords(coords + 0.5)
        lab = labels[..., None]
        pe = jnp.where(lab == -1, 0.0, pe) + jnp.where(lab == -1, 1.0, 0.0) * params["not_a_point"][0]
        for lbl in range(4):
            pe = pe + jnp.where(lab == lbl, 1.0, 0.0) * params["point_emb"][lbl]
        parts.append(pe)
    if boxes is not None:
        bpe = pe_with_coords((boxes.astype(jnp.float32) + 0.5).reshape(-1, 2, 2))
        bpe = bpe.at[:, 0, :].add(params["point_emb"][2])
        bpe = bpe.at[:, 1, :].add(params["point_emb"][3])
        parts.append(bpe)
    sparse = (jnp.concatenate(parts, axis=1) if parts
              else jnp.zeros((bs, 0, EMBED_DIM), jnp.float32))

    if masks is not None:
        hi = jax.lax.Precision.HIGHEST

        def conv(x, w, b, stride):
            y = jax.lax.conv_general_dilated(
                x, w, (stride, stride), "VALID",
                dimension_numbers=("NCHW", "OIHW", "NCHW"), precision=hi)
            return y + b[None, :, None, None]

        def ln2d(x, g, b):
            u = x.mean(1, keepdims=True)
            s = ((x - u) ** 2).mean(1, keepdims=True)
            return g[None, :, None, None] * ((x - u) / jnp.sqrt(s + LN_EPS)) + b[None, :, None, None]

        y = conv(masks.astype(jnp.float32), params["conv1_w"], params["conv1_b"], 2)
        y = jax.nn.gelu(ln2d(y, params["ln1_w"], params["ln1_b"]), approximate=False)
        y = conv(y, params["conv2_w"], params["conv2_b"], 2)
        y = jax.nn.gelu(ln2d(y, params["ln2_w"], params["ln2_b"]), approximate=False)
        dense = conv(y, params["conv3_w"], params["conv3_b"], 1)
    else:
        dense = jnp.broadcast_to(params["no_mask"].reshape(1, EMBED_DIM, 1, 1),
                                 (bs, EMBED_DIM, He, We))
    return sparse, dense


# ---------------- main ----------------
if __name__ == "__main__":
    key = jax.random.PRNGKey(0)
    k_param, k_pts, k_lab, k_box, k_msk = jax.random.split(key, 5)

    params = init_params(k_param)

    B, P = 2, 6
    H_in, W_in = INPUT_IMAGE_SIZE
    He, We = IMAGE_EMBEDDING_SIZE

    point_coords = jax.random.uniform(k_pts, (B, P, 2), jnp.float32, 0.0, float(W_in))
    point_labels = jax.random.randint(k_lab, (B, P), 0, 2, jnp.int32)
    boxes = jax.random.uniform(k_box, (B, 4), jnp.float32, 0.0, float(W_in))
    masks = jax.random.normal(k_msk, (B, 1, MASK_INPUT_SIZE[0], MASK_INPUT_SIZE[1]), jnp.float32)

    # full path: points + boxes + masks -> ONE fused pallas_call
    fwd_full = jax.jit(lambda p, pc, lb, bx, m: prompt_encoder_forward(
        p, points=(pc, lb), boxes=bx, masks=m))
    sparse, dense = fwd_full(params, point_coords, point_labels, boxes, masks)
    jax.block_until_ready((sparse, dense))

    assert sparse.shape == (B, P + 2, EMBED_DIM), sparse.shape
    assert dense.shape == (B, EMBED_DIM, He, We), dense.shape
    assert bool(jnp.all(jnp.isfinite(sparse))) and bool(jnp.all(jnp.isfinite(dense)))

    ref_sparse, ref_dense = _ref_forward(
        params, points=(point_coords, point_labels), boxes=boxes, masks=masks)
    assert bool(jnp.allclose(sparse, ref_sparse, atol=2e-3, rtol=2e-3)), \
        float(jnp.max(jnp.abs(sparse - ref_sparse)))
    assert bool(jnp.allclose(dense, ref_dense, atol=2e-3, rtol=2e-3)), \
        float(jnp.max(jnp.abs(dense - ref_dense)))

    # points-only path (padded "not a point" entry, no-mask dense embedding)
    fwd_pts = jax.jit(lambda p, pc, lb: prompt_encoder_forward(p, points=(pc, lb)))
    sparse2, dense2 = fwd_pts(params, point_coords, point_labels)
    jax.block_until_ready((sparse2, dense2))
    assert sparse2.shape == (B, P + 1, EMBED_DIM)
    assert dense2.shape == (B, EMBED_DIM, He, We)
    ref_sparse2, ref_dense2 = _ref_forward(params, points=(point_coords, point_labels))
    assert bool(jnp.allclose(sparse2, ref_sparse2, atol=2e-3, rtol=2e-3))
    assert bool(jnp.allclose(dense2, ref_dense2, atol=2e-3, rtol=2e-3))

    print("KERNEL_OK")
</pallas_src>

<mosaic_0001>
module attributes {stable_mosaic.version = 11 : i64} {
  func.func @_fused_kernel(%arg0: memref<104x32xf32, #tpu.memory_space<vmem>>, %arg1: memref<16x3xf32, #tpu.memory_space<vmem>>, %arg2: memref<16x512xf32, #tpu.memory_space<vmem>>, %arg3: memref<16x32xf32, #tpu.memory_space<vmem>>, %arg4: memref<32x512xf32, #tpu.memory_space<vmem>>) attributes {dimension_semantics = [], scalar_prefetch = 0 : i64, scratch_operands = 0 : i64, tpu.core_type = #tpu.core_type<tc>} {
    %c96 = arith.constant 96 : index
    %c0 = arith.constant 0 : index
    %0 = vector.load %arg0[%c96, %c0] : memref<104x32xf32, #tpu.memory_space<vmem>>, vector<2x16xf32>
    %c0_0 = arith.constant 0 : index
    %c0_1 = arith.constant 0 : index
    %1 = vector.load %arg1[%c0_0, %c0_1] : memref<16x3xf32, #tpu.memory_space<vmem>>, vector<16x1xf32>
    %cst = arith.constant 5.000000e-01 : f32
    %2 = vector.broadcast %cst : f32 to vector<16x1xf32>
    %3 = arith.addf %1, %2 : vector<16x1xf32>
    %cst_2 = arith.constant 3.125000e-02 : f32
    %4 = vector.broadcast %cst_2 : f32 to vector<16x1xf32>
    %5 = arith.mulf %3, %4 : vector<16x1xf32>
    %cst_3 = arith.constant 1.000000e+00 : f32
    %6 = vector.broadcast %cst_3 : f32 to vector<16x1xf32>
    %7 = arith.subf %5, %6 : vector<16x1xf32>
    %c0_4 = arith.constant 0 : index
    %c1 = arith.constant 1 : index
    %8 = vector.load %arg1[%c0_4, %c1] : memref<16x3xf32, #tpu.memory_space<vmem>>, vector<16x1xf32>
    %cst_5 = arith.constant 5.000000e-01 : f32
    %9 = vector.broadcast %cst_5 : f32 to vector<16x1xf32>
    %10 = arith.addf %8, %9 : vector<16x1xf32>
    %cst_6 = arith.constant 3.125000e-02 : f32
    %11 = vector.broadcast %cst_6 : f32 to vector<16x1xf32>
    %12 = arith.mulf %10, %11 : vector<16x1xf32>
    %cst_7 = arith.constant 1.000000e+00 : f32
    %13 = vector.broadcast %cst_7 : f32 to vector<16x1xf32>
    %14 = arith.subf %12, %13 : vector<16x1xf32>
    %15 = vector.extract_strided_slice %0 {offsets = [0, 0], sizes = [1, 16], strides = [1, 1]} : vector<2x16xf32> to vector<1x16xf32>
    %16 = vector.broadcast %7 : vector<16x1xf32> to vector<16x16xf32>
    %17 = vector.broadcast %15 : vector<1x16xf32> to vector<16x16xf32>
    %18 = arith.mulf %16, %17 : vector<16x16xf32>
    %19 = vector.extract_strided_slice %0 {offsets = [1, 0], sizes = [1, 16], strides = [1, 1]} : vector<2x16xf32> to vector<1x16xf32>
    %20 = vector.broadcast %14 : vector<16x1xf32> to vector<16x16xf32>
    %21 = vector.broadcast %19 : vector<1x16xf32> to vector<16x16xf32>
    %22 = arith.mulf %20, %21 : vector<16x16xf32>
    %23 = arith.addf %18, %22 : vector<16x16xf32>
    %cst_8 = arith.constant 6.28318548 : f32
    %24 = vector.broadcast %cst_8 : f32 to vector<16x16xf32>
    %25 = arith.mulf %24, %23 : vector<16x16xf32>
    %c0_9 = arith.constant 0 : index
    %c2 = arith.constant 2 : index
    %26 = vector.load %arg1[%c0_9, %c2] : memref<16x3xf32, #tpu.memory_space<vmem>>, vector<16x1xf32>
    %cst_10 = arith.constant -1.000000e+00 : f32
    %27 = vector.broadcast %cst_10 : f32 to vector<16x1xf32>
    %28 = arith.cmpf oeq, %26, %27 : vector<16x1xf32>
    %cst_11 = arith.constant 0.000000e+00 : f32
    %cst_12 = arith.constant 1.000000e+00 : f32
    %29 = vector.broadcast %cst_11 : f32 to vector<16x1xf32>
    %30 = vector.broadcast %cst_12 : f32 to vector<16x1xf32>
    %31 = arith.select %28, %29, %30 : vector<16x1xi1>, vector<16x1xf32>
    %cst_13 = arith.constant -1.000000e+00 : f32
    %32 = vector.broadcast %cst_13 : f32 to vector<16x1xf32>
    %33 = arith.cmpf oeq, %26, %32 : vector<16x1xf32>
    %cst_14 = arith.constant 1.000000e+00 : f32
    %cst_15 = arith.constant 0.000000e+00 : f32
    %34 = vector.broadcast %cst_14 : f32 to vector<16x1xf32>
    %35 = vector.broadcast %cst_15 : f32 to vector<16x1xf32>
    %36 = arith.select %33, %34, %35 : vector<16x1xi1>, vector<16x1xf32>
    %c102 = arith.constant 102 : index
    %c0_16 = arith.constant 0 : index
    %37 = vector.load %arg0[%c102, %c0_16] : memref<104x32xf32, #tpu.memory_space<vmem>>, vector<1x32xf32>
    %38 = vector.broadcast %36 : vector<16x1xf32> to vector<16x32xf32>
    %39 = vector.broadcast %37 : vector<1x32xf32> to vector<16x32xf32>
    %40 = arith.mulf %38, %39 : vector<16x32xf32>
    %cst_17 = arith.constant 0.000000e+00 : f32
    %41 = vector.broadcast %cst_17 : f32 to vector<16x1xf32>
    %42 = arith.cmpf oeq, %26, %41 : vector<16x1xf32>
    %cst_18 = arith.constant 1.000000e+00 : f32
    %cst_19 = arith.constant 0.000000e+00 : f32
    %43 = vector.broadcast %cst_18 : f32 to vector<16x1xf32>
    %44 = vector.broadcast %cst_19 : f32 to vector<16x1xf32>
    %45 = arith.select %42, %43, %44 : vector<16x1xi1>, vector<16x1xf32>
    %c98 = arith.constant 98 : index
    %c0_20 = arith.constant 0 : index
    %46 = vector.load %arg0[%c98, %c0_20] : memref<104x32xf32, #tpu.memory_space<vmem>>, vector<1x32xf32>
    %47 = vector.broadcast %45 : vector<16x1xf32> to vector<16x32xf32>
    %48 = vector.broadcast %46 : vector<1x32xf32> to vector<16x32xf32>
    %49 = arith.mulf %47, %48 : vector<16x32xf32>
    %50 = arith.addf %40, %49 : vector<16x32xf32>
    %cst_21 = arith.constant 1.000000e+00 : f32
    %51 = vector.broadcast %cst_21 : f32 to vector<16x1xf32>
    %52 = arith.cmpf oeq, %26, %51 : vector<16x1xf32>
    %cst_22 = arith.constant 1.000000e+00 : f32
    %cst_23 = arith.constant 0.000000e+00 : f32
    %53 = vector.broadcast %cst_22 : f32 to vector<16x1xf32>
    %54 = vector.broadcast %cst_23 : f32 to vector<16x1xf32>
    %55 = arith.select %52, %53, %54 : vector<16x1xi1>, vector<16x1xf32>
    %c99 = arith.constant 99 : index
    %c0_24 = arith.constant 0 : index
    %56 = vector.load %arg0[%c99, %c0_24] : memref<104x32xf32, #tpu.memory_space<vmem>>, vector<1x32xf32>
    %57 = vector.broadcast %55 : vector<16x1xf32> to vector<16x32xf32>
    %58 = vector.broadcast %56 : vector<1x32xf32> to vector<16x32xf32>
    %59 = arith.mulf %57, %58 : vector<16x32xf32>
    %60 = arith.addf %50, %59 : vector<16x32xf32>
    %cst_25 = arith.constant 2.000000e+00 : f32
    %61 = vector.broadcast %cst_25 : f32 to vector<16x1xf32>
    %62 = arith.cmpf oeq, %26, %61 : vector<16x1xf32>
    %cst_26 = arith.constant 1.000000e+00 : f32
    %cst_27 = arith.constant 0.000000e+00 : f32
    %63 = vector.broadcast %cst_26 : f32 to vector<16x1xf32>
    %64 = vector.broadcast %cst_27 : f32 to vector<16x1xf32>
    %65 = arith.select %62, %63, %64 : vector<16x1xi1>, vector<16x1xf32>
    %c100 = arith.constant 100 : index
    %c0_28 = arith.constant 0 : index
    %66 = vector.load %arg0[%c100, %c0_28] : memref<104x32xf32, #tpu.memory_space<vmem>>, vector<1x32xf32>
    %67 = vector.broadcast %65 : vector<16x1xf32> to vector<16x32xf32>
    %68 = vector.broadcast %66 : vector<1x32xf32> to vector<16x32xf32>
    %69 = arith.mulf %67, %68 : vector<16x32xf32>
    %70 = arith.addf %60, %69 : vector<16x32xf32>
    %cst_29 = arith.constant 3.000000e+00 : f32
    %71 = vector.broadcast %cst_29 : f32 to vector<16x1xf32>
    %72 = arith.cmpf oeq, %26, %71 : vector<16x1xf32>
    %cst_30 = arith.constant 1.000000e+00 : f32
    %cst_31 = arith.constant 0.000000e+00 : f32
    %73 = vector.broadcast %cst_30 : f32 to vector<16x1xf32>
    %74 = vector.broadcast %cst_31 : f32 to vector<16x1xf32>
    %75 = arith.select %72, %73, %74 : vector<16x1xi1>, vector<16x1xf32>
    %c101 = arith.constant 101 : index
    %c0_32 = arith.constant 0 : index
    %76 = vector.load %arg0[%c101, %c0_32] : memref<104x32xf32, #tpu.memory_space<vmem>>, vector<1x32xf32>
    %77 = vector.broadcast %75 : vector<16x1xf32> to vector<16x32xf32>
    %78 = vector.broadcast %76 : vector<1x32xf32> to vector<16x32xf32>
    %79 = arith.mulf %77, %78 : vector<16x32xf32>
    %80 = arith.addf %70, %79 : vector<16x32xf32>
    %81 = math.sin %25 : vector<16x16xf32>
    %82 = vector.broadcast %31 : vector<16x1xf32> to vector<16x16xf32>
    %83 = arith.mulf %81, %82 : vector<16x16xf32>
    %84 = vector.extract_strided_slice %80 {offsets = [0, 0], sizes = [16, 16], strides = [1, 1]} : vector<16x32xf32> to vector<16x16xf32>
    %85 = arith.addf %83, %84 : vector<16x16xf32>
    %c0_33 = arith.constant 0 : index
    %c0_34 = arith.constant 0 : index
    %86 = vector.load %arg3[%c0_33, %c0_34] : memref<16x32xf32, #tpu.memory_space<vmem>>, vector<16x16xf32>
    tpu.vector_store %arg3[%c0_33, %c0_34], %85 {strides = array<i32>} : memref<16x32xf32, #tpu.memory_space<vmem>>, vector<16x16xf32>,
    %87 = math.cos %25 : vector<16x16xf32>
    %88 = vector.broadcast %31 : vector<16x1xf32> to vector<16x16xf32>
    %89 = arith.mulf %87, %88 : vector<16x16xf32>
    %90 = vector.extract_strided_slice %80 {offsets = [0, 16], sizes = [16, 16], strides = [1, 1]} : vector<16x32xf32> to vector<16x16xf32>
    %91 = arith.addf %89, %90 : vector<16x16xf32>
    %c0_35 = arith.constant 0 : index
    %c16 = arith.constant 16 : index
    %92 = vector.load %arg3[%c0_35, %c16] : memref<16x32xf32, #tpu.memory_space<vmem>>, vector<16x16xf32>
    tpu.vector_store %arg3[%c0_35, %c16], %91 {strides = array<i32>} : memref<16x32xf32, #tpu.memory_space<vmem>>, vector<16x16xf32>,
    %c0_36 = arith.constant 0 : index
    %c0_37 = arith.constant 0 : index
    %93 = vector.load %arg0[%c0_36, %c0_37] : memref<104x32xf32, #tpu.memory_space<vmem>>, vector<16x16xf32>
    %c16_38 = arith.constant 16 : index
    %c0_39 = arith.constant 0 : index
    %94 = vector.load %arg0[%c16_38, %c0_39] : memref<104x32xf32, #tpu.memory_space<vmem>>, vector<16x16xf32>
    %c32 = arith.constant 32 : index
    %c0_40 = arith.constant 0 : index
    %95 = vector.load %arg0[%c32, %c0_40] : memref<104x32xf32, #tpu.memory_space<vmem>>, vector<32x16xf32>
    %c64 = arith.constant 64 : index
    %c0_41 = arith.constant 0 : index
    %96 = vector.load %arg0[%c64, %c0_41] : memref<104x32xf32, #tpu.memory_space<vmem>>, vector<16x1xf32>
    %c64_42 = arith.constant 64 : index
    %c1_43 = arith.constant 1 : index
    %97 = vector.load %arg0[%c64_42, %c1_43] : memref<104x32xf32, #tpu.memory_space<vmem>>, vector<16x1xf32>
    %c64_44 = arith.constant 64 : index
    %c2_45 = arith.constant 2 : index
    %98 = vector.load %arg0[%c64_44, %c2_45] : memref<104x32xf32, #tpu.memory_space<vmem>>, vector<16x1xf32>
    %c64_46 = arith.constant 64 : index
    %c3 = arith.constant 3 : index
    %99 = vector.load %arg0[%c64_46, %c3] : memref<104x32xf32, #tpu.memory_space<vmem>>, vector<16x1xf32>
    %c64_47 = arith.constant 64 : index
    %c4 = arith.constant 4 : index
    %100 = vector.load %arg0[%c64_47, %c4] : memref<104x32xf32, #tpu.memory_space<vmem>>, vector<16x1xf32>
    %c64_48 = arith.constant 64 : index
    %c5 = arith.constant 5 : index
    %101 = vector.load %arg0[%c64_48, %c5] : memref<104x32xf32, #tpu.memory_space<vmem>>, vector<16x1xf32>
    %c64_49 = arith.constant 64 : index
    %c6 = arith.constant 6 : index
    %102 = vector.load %arg0[%c64_49, %c6] : memref<104x32xf32, #tpu.memory_space<vmem>>, vector<32x1xf32>
    %c0_50 = arith.constant 0 : index
    %c0_51 = arith.constant 0 : index
    %103 = vector.load %arg2[%c0_50, %c0_51] : memref<16x512xf32, #tpu.memory_space<vmem>>, vector<16x512xf32>
    %cst_52 = arith.constant dense<0.000000e+00> : vector<16x512xf32>
    %104 = tpu.matmul %93, %103, %cst_52 {dimension_numbers = #tpu.dot_dimension_numbers<[1], [0], [0], [1], [0, 0, 1, 1], [], []>, precision = #tpu.contract_precision<fp32>} : vector<16x16xf32>, vector<16x512xf32>, vector<16x512xf32> -> vector<16x512xf32>
    %105 = vector.broadcast %96 : vector<16x1xf32> to vector<16x512xf32>
    %106 = arith.addf %104, %105 : vector<16x512xf32>
    %107 = vector.extract_strided_slice %106 {offsets = [0, 0], sizes = [4, 512], strides = [1, 1]} : vector<16x512xf32> to vector<4x512xf32>
    %108 = vector.extract_strided_slice %106 {offsets = [4, 0], sizes = [4, 512], strides = [1, 1]} : vector<16x512xf32> to vector<4x512xf32>
    %109 = vector.extract_strided_slice %106 {offsets = [8, 0], sizes = [4, 512], strides = [1, 1]} : vector<16x512xf32> to vector<4x512xf32>
    %110 = vector.extract_strided_slice %106 {offsets = [12, 0], sizes = [4, 512], strides = [1, 1]} : vector<16x512xf32> to vector<4x512xf32>
    %111 = arith.addf %107, %108 : vector<4x512xf32>
    %112 = arith.addf %111, %109 : vector<4x512xf32>
    %113 = arith.addf %112, %110 : vector<4x512xf32>
    %cst_53 = arith.constant 2.500000e-01 : f32
    %114 = vector.broadcast %cst_53 : f32 to vector<4x512xf32>
    %115 = arith.mulf %113, %114 : vector<4x512xf32>
    %116 = arith.subf %107, %115 : vector<4x512xf32>
    %117 = arith.subf %108, %115 : vector<4x512xf32>
    %118 = arith.subf %109, %115 : vector<4x512xf32>
    %119 = arith.subf %110, %115 : vector<4x512xf32>
    %120 = arith.mulf %116, %116 : vector<4x512xf32>
    %121 = arith.mulf %117, %117 : vector<4x512xf32>
    %122 = arith.addf %120, %121 : vector<4x512xf32>
    %123 = arith.mulf %118, %118 : vector<4x512xf32>
    %124 = arith.addf %122, %123 : vector<4x512xf32>
    %125 = arith.mulf %119, %119 : vector<4x512xf32>
    %126 = arith.addf %124, %125 : vector<4x512xf32>
    %cst_54 = arith.constant 2.500000e-01 : f32
    %127 = vector.broadcast %cst_54 : f32 to vector<4x512xf32>
    %128 = arith.mulf %126, %127 : vector<4x512xf32>
    %cst_55 = arith.constant 9.99999997E-7 : f32
    %129 = vector.broadcast %cst_55 : f32 to vector<4x512xf32>
    %130 = arith.addf %128, %129 : vector<4x512xf32>
    %131 = math.rsqrt %130 : vector<4x512xf32>
    %132 = arith.mulf %116, %131 : vector<4x512xf32>
    %133 = arith.mulf %117, %131 : vector<4x512xf32>
    %134 = arith.mulf %118, %131 : vector<4x512xf32>
    %135 = arith.mulf %119, %131 : vector<4x512xf32>
    %136 = tpu.concatenate %132, %133, %134, %135 in 0 : vector<4x512xf32>, vector<4x512xf32>, vector<4x512xf32>, vector<4x512xf32> -> vector<16x512xf32>
    %137 = vector.broadcast %97 : vector<16x1xf32> to vector<16x512xf32>
    %138 = arith.mulf %137, %136 : vector<16x512xf32>
    %139 = vector.broadcast %98 : vector<16x1xf32> to vector<16x512xf32>
    %140 = arith.addf %138, %139 : vector<16x512xf32>
    %cst_56 = arith.constant 0.707106769 : f32
    %141 = vector.broadcast %cst_56 : f32 to vector<16x512xf32>
    %142 = arith.mulf %140, %141 : vector<16x512xf32>
    %143 = math.absf %142 : vector<16x512xf32>
    %cst_57 = arith.constant 0.000000e+00 : f32
    %144 = vector.broadcast %cst_57 : f32 to vector<16x512xf32>
    %145 = arith.cmpf oge, %142, %144 : vector<16x512xf32>
    %cst_58 = arith.constant 1.000000e+00 : f32
    %cst_59 = arith.constant -1.000000e+00 : f32
    %146 = vector.broadcast %cst_58 : f32 to vector<16x512xf32>
    %147 = vector.broadcast %cst_59 : f32 to vector<16x512xf32>
    %148 = arith.select %145, %146, %147 : vector<16x512xi1>, vector<16x512xf32>
    %cst_60 = arith.constant 0.327591091 : f32
    %149 = vector.broadcast %cst_60 : f32 to vector<16x512xf32>
    %150 = arith.mulf %149, %143 : vector<16x512xf32>
    %cst_61 = arith.constant 1.000000e+00 : f32
    %151 = vector.broadcast %cst_61 : f32 to vector<16x512xf32>
    %152 = arith.addf %151, %150 : vector<16x512xf32>
    %153 = tpu.reciprocal %152 {approx = true} : vector<16x512xf32> -> vector<16x512xf32>
    %cst_62 = arith.constant 1.06140542 : f32
    %154 = vector.broadcast %cst_62 : f32 to vector<16x512xf32>
    %155 = arith.mulf %154, %153 : vector<16x512xf32>
    %cst_63 = arith.constant -1.45315206 : f32
    %156 = vector.broadcast %cst_63 : f32 to vector<16x512xf32>
    %157 = arith.addf %155, %156 : vector<16x512xf32>
    %158 = arith.mulf %157, %153 : vector<16x512xf32>
    %cst_64 = arith.constant 1.42141378 : f32
    %159 = vector.broadcast %cst_64 : f32 to vector<16x512xf32>
    %160 = arith.addf %158, %159 : vector<16x512xf32>
    %161 = arith.mulf %160, %153 : vector<16x512xf32>
    %cst_65 = arith.constant -0.284496725 : f32
    %162 = vector.broadcast %cst_65 : f32 to vector<16x512xf32>
    %163 = arith.addf %161, %162 : vector<16x512xf32>
    %164 = arith.mulf %163, %153 : vector<16x512xf32>
    %cst_66 = arith.constant 0.254829586 : f32
    %165 = vector.broadcast %cst_66 : f32 to vector<16x512xf32>
    %166 = arith.addf %164, %165 : vector<16x512xf32>
    %167 = arith.mulf %166, %153 : vector<16x512xf32>
    %cst_67 = arith.constant 0.000000e+00 : f32
    %168 = vector.broadcast %cst_67 : f32 to vector<16x512xf32>
    %169 = arith.subf %168, %143 : vector<16x512xf32>
    %170 = arith.mulf %169, %143 : vector<16x512xf32>
    %171 = math.exp %170 : vector<16x512xf32>
    %172 = arith.mulf %167, %171 : vector<16x512xf32>
    %cst_68 = arith.constant 1.000000e+00 : f32
    %173 = vector.broadcast %cst_68 : f32 to vector<16x512xf32>
    %174 = arith.subf %173, %172 : vector<16x512xf32>
    %175 = arith.mulf %148, %174 : vector<16x512xf32>
    %cst_69 = arith.constant 5.000000e-01 : f32
    %176 = vector.broadcast %cst_69 : f32 to vector<16x512xf32>
    %177 = arith.mulf %176, %140 : vector<16x512xf32>
    %cst_70 = arith.constant 1.000000e+00 : f32
    %178 = vector.broadcast %cst_70 : f32 to vector<16x512xf32>
    %179 = arith.addf %178, %175 : vector<16x512xf32>
    %180 = arith.mulf %177, %179 : vector<16x512xf32>
    %cst_71 = arith.constant dense<0.000000e+00> : vector<16x512xf32>
    %181 = tpu.matmul %94, %180, %cst_71 {dimension_numbers = #tpu.dot_dimension_numbers<[1], [0], [0], [1], [0, 0, 1, 1], [], []>, precision = #tpu.contract_precision<fp32>} : vector<16x16xf32>, vector<16x512xf32>, vector<16x512xf32> -> vector<16x512xf32>
    %182 = vector.broadcast %99 : vector<16x1xf32> to vector<16x512xf32>
    %183 = arith.addf %181, %182 : vector<16x512xf32>
    %cst_72 = arith.constant dense<0.000000e+00> : vector<512xf32>
    %184 = vector.multi_reduction <add>, %183, %cst_72 [0] : vector<16x512xf32> to vector<512xf32>
    %185 = vector.shape_cast %184 : vector<512xf32> to vector<1x512xf32>
    %cst_73 = arith.constant 1.600000e+01 : f32
    %186 = vector.broadcast %cst_73 : f32 to vector<1x512xf32>
    %187 = arith.divf %185, %186 : vector<1x512xf32>
    %188 = vector.broadcast %187 : vector<1x512xf32> to vector<16x512xf32>
    %189 = arith.subf %183, %188 : vector<16x512xf32>
    %190 = arith.mulf %189, %189 : vector<16x512xf32>
    %cst_74 = arith.constant dense<0.000000e+00> : vector<512xf32>
    %191 = vector.multi_reduction <add>, %190, %cst_74 [0] : vector<16x512xf32> to vector<512xf32>
    %192 = vector.shape_cast %191 : vector<512xf32> to vector<1x512xf32>
    %cst_75 = arith.constant 1.600000e+01 : f32
    %193 = vector.broadcast %cst_75 : f32 to vector<1x512xf32>
    %194 = arith.divf %192, %193 : vector<1x512xf32>
    %cst_76 = arith.constant 9.99999997E-7 : f32
    %195 = vector.broadcast %cst_76 : f32 to vector<1x512xf32>
    %196 = arith.addf %194, %195 : vector<1x512xf32>
    %197 = math.rsqrt %196 : vector<1x512xf32>
    %198 = vector.broadcast %197 : vector<1x512xf32> to vector<16x512xf32>
    %199 = arith.mulf %189, %198 : vector<16x512xf32>
    %200 = vector.broadcast %100 : vector<16x1xf32> to vector<16x512xf32>
    %201 = arith.mulf %200, %199 : vector<16x512xf32>
    %202 = vector.broadcast %101 : vector<16x1xf32> to vector<16x512xf32>
    %203 = arith.addf %201, %202 : vector<16x512xf32>
    %cst_77 = arith.constant 0.707106769 : f32
    %204 = vector.broadcast %cst_77 : f32 to vector<16x512xf32>
    %205 = arith.mulf %203, %204 : vector<16x512xf32>
    %206 = math.absf %205 : vector<16x512xf32>
    %cst_78 = arith.constant 0.000000e+00 : f32
    %207 = vector.broadcast %cst_78 : f32 to vector<16x512xf32>
    %208 = arith.cmpf oge, %205, %207 : vector<16x512xf32>
    %cst_79 = arith.constant 1.000000e+00 : f32
    %cst_80 = arith.constant -1.000000e+00 : f32
    %209 = vector.broadcast %cst_79 : f32 to vector<16x512xf32>
    %210 = vector.broadcast %cst_80 : f32 to vector<16x512xf32>
    %211 = arith.select %208, %209, %210 : vector<16x512xi1>, vector<16x512xf32>
    %cst_81 = arith.constant 0.327591091 : f32
    %212 = vector.broadcast %cst_81 : f32 to vector<16x512xf32>
    %213 = arith.mulf %212, %206 : vector<16x512xf32>
    %cst_82 = arith.constant 1.000000e+00 : f32
    %214 = vector.broadcast %cst_82 : f32 to vector<16x512xf32>
    %215 = arith.addf %214, %213 : vector<16x512xf32>
    %216 = tpu.reciprocal %215 {approx = true} : vector<16x512xf32> -> vector<16x512xf32>
    %cst_83 = arith.constant 1.06140542 : f32
    %217 = vector.broadcast %cst_83 : f32 to vector<16x512xf32>
    %218 = arith.mulf %217, %216 : vector<16x512xf32>
    %cst_84 = arith.constant -1.45315206 : f32
    %219 = vector.broadcast %cst_84 : f32 to vector<16x512xf32>
    %220 = arith.addf %218, %219 : vector<16x512xf32>
    %221 = arith.mulf %220, %216 : vector<16x512xf32>
    %cst_85 = arith.constant 1.42141378 : f32
    %222 = vector.broadcast %cst_85 : f32 to vector<16x512xf32>
    %223 = arith.addf %221, %222 : vector<16x512xf32>
    %224 = arith.mulf %223, %216 : vector<16x512xf32>
    %cst_86 = arith.constant -0.284496725 : f32
    %225 = vector.broadcast %cst_86 : f32 to vector<16x512xf32>
    %226 = arith.addf %224, %225 : vector<16x512xf32>
    %227 = arith.mulf %226, %216 : vector<16x512xf32>
    %cst_87 = arith.constant 0.254829586 : f32
    %228 = vector.broadcast %cst_87 : f32 to vector<16x512xf32>
    %229 = arith.addf %227, %228 : vector<16x512xf32>
    %230 = arith.mulf %229, %216 : vector<16x512xf32>
    %cst_88 = arith.constant 0.000000e+00 : f32
    %231 = vector.broadcast %cst_88 : f32 to vector<16x512xf32>
    %232 = arith.subf %231, %206 : vector<16x512xf32>
    %233 = arith.mulf %232, %206 : vector<16x512xf32>
    %234 = math.exp %233 : vector<16x512xf32>
    %235 = arith.mulf %230, %234 : vector<16x512xf32>
    %cst_89 = arith.constant 1.000000e+00 : f32
    %236 = vector.broadcast %cst_89 : f32 to vector<16x512xf32>
    %237 = arith.subf %236, %235 : vector<16x512xf32>
    %238 = arith.mulf %211, %237 : vector<16x512xf32>
    %cst_90 = arith.constant 5.000000e-01 : f32
    %239 = vector.broadcast %cst_90 : f32 to vector<16x512xf32>
    %240 = arith.mulf %239, %203 : vector<16x512xf32>
    %cst_91 = arith.constant 1.000000e+00 : f32
    %241 = vector.broadcast %cst_91 : f32 to vector<16x512xf32>
    %242 = arith.addf %241, %238 : vector<16x512xf32>
    %243 = arith.mulf %240, %242 : vector<16x512xf32>
    %cst_92 = arith.constant dense<0.000000e+00> : vector<32x512xf32>
    %244 = tpu.matmul %95, %243, %cst_92 {dimension_numbers = #tpu.dot_dimension_numbers<[1], [0], [0], [1], [0, 0, 1, 1], [], []>, precision = #tpu.contract_precision<fp32>} : vector<32x16xf32>, vector<16x512xf32>, vector<32x512xf32> -> vector<32x512xf32>
    %245 = vector.broadcast %102 : vector<32x1xf32> to vector<32x512xf32>
    %246 = arith.addf %244, %245 : vector<32x512xf32>
    %c0_93 = arith.constant 0 : index
    %c0_94 = arith.constant 0 : index
    %247 = vector.load %arg4[%c0_93, %c0_94] : memref<32x512xf32, #tpu.memory_space<vmem>>, vector<32x512xf32>
    tpu.vector_store %arg4[%c0_93, %c0_94], %246 {strides = array<i32>} : memref<32x512xf32, #tpu.memory_space<vmem>>, vector<32x512xf32>,
    return
  }
}

</mosaic_0001>

<llo_original>
// kernel: _lambda_.1
$region0: #{_lambda_.1}
  #allocation0 [shape = 'u32[]', space=smem, size = 0x4, offset = 0x4, fixed_abs, tag = 'smem constant byte address 0x4 - core index']
  #allocation1 [shape = 'u32[72,128]{1,0:T(1,128)}', space=vmem, size = 0x9000, scoped, tag = 'internal scratch']
  %s0 = inlined_call_operand.vmem [shape: f32[104,32], index: 0, kind: input, shape index: {}]
  %s1 = inlined_call_operand.vmem [shape: f32[16,3], index: 1, kind: input, shape index: {}]
  %s2 = inlined_call_operand.vmem [shape: f32[16,512], index: 2, kind: input, shape index: {}]
  %s3 = inlined_call_operand.hbm [shape: f32[16,32], index: 3, kind: output, shape index: {0}]
  %s4 = inlined_call_operand.vmem [shape: f32[32,512], index: 4, kind: output, shape index: {1}]
  %5 = xla_tuple %s3, %s4
  %s6 = sld [smem:[#allocation0]]
  $region30: #{_lambda_.1} parent=0
    _
  %s8 = ssub.s32 1, %s6
  %s9 = scalar_select 0, %s8, %s6
  $region1: #{_lambda_.1} parent=0
    #allocation2 [shape = 'u8[8192]{0}', space=vmem, size = 0x2000, scoped, tag = 'output window, operand 0, single buffered']
    #allocation3 [shape = 's32[1]{0}', space=sflag, size = 0x4, scoped, tag = 'scoped memory for _lambda_.1']
    %10 = vsyncpa [#allocation3], 0
    // Predicated region
    $region2: #{_lambda_.1} parent=1 // pred_check
      _
    $region3: #{_lambda_.1} parent=1 // pred_check_branch
      %12 = sbr.rel (0) target = $region5
    $region4: #{_lambda_.1} parent=1 // pred_region
      _
    $region5: #{_lambda_.1} parent=1 // pred_fallthru
      _
    // Predicated region
    $region6: #{_lambda_.1} parent=1 // pred_check
      _
    $region7: #{_lambda_.1} parent=1 // pred_check_branch
      %14 = sbr.rel (0) target = $region9
    $region8: #{_lambda_.1} parent=1 // pred_region
      _
    $region9: #{_lambda_.1} parent=1 // pred_fallthru
      _
    // Predicated region
    $region10: #{_lambda_.1} parent=1 // pred_check
      _
    $region11: #{_lambda_.1} parent=1 // pred_check_branch
      %16 = sbr.rel (0) target = $region13
    $region12: #{_lambda_.1} parent=1 // pred_region
      _
    $region13: #{_lambda_.1} parent=1 // pred_fallthru
      _
    %v17 = vld [vmem:[%s0 + $0x60] sm:$0x3]
    %v18 = vld [vmem:[%s1] sm:$0xff]
    %v19 = vld [vmem:[%s1 + $0x8] sm:$0xff]
    %v20 = vadd.f32 %v18, 0.5
    %v21 = vadd.f32 %v19, 0.5
    %v22 = vmul.f32 %v20, 0.03125
    %v23 = vmul.f32 %v21, 0.03125
    %v24 = vsub.f32 %v22, 1.0
    %v25 = vsub.f32 %v23, 1.0
    %27 = vset.pattern.permute.xlu0 0
    %28 = vperm.xlu0 %27, %v24
    %v29 = vpop.permute.xlu0 %28
    %32 = vset.pattern.permute.xlu0 0
    %33 = vperm.xlu0 %32, %v25
    %v34 = vpop.permute.xlu0 %33
    %v36 = vperm.slane %v17, 0
    %v37 = vmul.f32 %v29, %v36
    %v38 = vmul.f32 %v34, %v36
    %39 = vset.pattern.permute.xlu0 1
    %40 = vperm.xlu0 %39, %v24
    %v41 = vpop.permute.xlu0 %40
    %43 = vset.pattern.permute.xlu0 1
    %44 = vperm.xlu0 %43, %v25
    %v45 = vpop.permute.xlu0 %44
    %v47 = vperm.slane %v17, 1
    %v48 = vmul.f32 %v41, %v47
    %v49 = vmul.f32 %v45, %v47
    %v50 = vadd.f32 %v37, %v48
    %v51 = vadd.f32 %v38, %v49
    %v52 = vmul.f32 %v50, 6.2831855
    %v53 = vmul.f32 %v51, 6.2831855
    %vm54 = vcmp.eq.f32.partialorder %v18, -1.0
    %vm55 = vcmp.eq.f32.partialorder %v19, -1.0
    %v56 = vsel %vm54, 0.0, 1.0
    %v57 = vsel %vm55, 0.0, 1.0
    %v58 = vsel %vm54, 1.0, 0.0
    %v59 = vsel %vm55, 1.0, 0.0
    %v60 = vld [vmem:[%s0 + $0x66] sm:$0x1]
    %62 = vset.pattern.permute.xlu0 2
    %63 = vperm.xlu0 %62, %v58
    %v64 = vpop.permute.xlu0 %63
    %67 = vset.pattern.permute.xlu0 2
    %68 = vperm.xlu0 %67, %v59
    %v69 = vpop.permute.xlu0 %68
    %v71 = vperm.slane %v60, 0
    %v72 = vmul.f32 %v64, %v71
    %v73 = vmul.f32 %v69, %v71
    %vm74 = vcmp.eq.f32.partialorder %v18, 0.0
    %vm75 = vcmp.eq.f32.partialorder %v19, 0.0
    %v76 = vsel %vm74, 1.0, 0.0
    %v77 = vsel %vm75, 1.0, 0.0
    %v78 = vld [vmem:[%s0 + $0x62] sm:$0x1]
    %80 = vset.pattern.permute.xlu0 2
    %81 = vperm.xlu0 %80, %v76
    %v82 = vpop.permute.xlu0 %81
    %85 = vset.pattern.permute.xlu0 2
    %86 = vperm.xlu0 %85, %v77
    %v87 = vpop.permute.xlu0 %86
    %v89 = vperm.slane %v78, 0
    %v90 = vmul.f32 %v82, %v89
    %v91 = vmul.f32 %v87, %v89
    %v92 = vadd.f32 %v72, %v90
    %v93 = vadd.f32 %v73, %v91
    %vm94 = vcmp.eq.f32.partialorder %v18, 1.0
    %vm95 = vcmp.eq.f32.partialorder %v19, 1.0
    %v96 = vsel %vm94, 1.0, 0.0
    %v97 = vsel %vm95, 1.0, 0.0
    %v98 = vld [vmem:[%s0 + $0x63] sm:$0x1]
    %100 = vset.pattern.permute.xlu0 2
    %101 = vperm.xlu0 %100, %v96
    %v102 = vpop.permute.xlu0 %101
    %105 = vset.pattern.permute.xlu0 2
    %106 = vperm.xlu0 %105, %v97
    %v107 = vpop.permute.xlu0 %106
    %v109 = vperm.slane %v98, 0
    %v110 = vmul.f32 %v102, %v109
    %v111 = vmul.f32 %v107, %v109
    %v112 = vadd.f32 %v92, %v110
    %v113 = vadd.f32 %v93, %v111
    %vm114 = vcmp.eq.f32.partialorder %v18, 2.0
    %vm115 = vcmp.eq.f32.partialorder %v19, 2.0
    %v116 = vsel %vm114, 1.0, 0.0
    %v117 = vsel %vm115, 1.0, 0.0
    %v118 = vld [vmem:[%s0 + $0x64] sm:$0x1]
    %120 = vset.pattern.permute.xlu0 2
    %121 = vperm.xlu0 %120, %v116
    %v122 = vpop.permute.xlu0 %121
    %125 = vset.pattern.permute.xlu0 2
    %126 = vperm.xlu0 %125, %v117
    %v127 = vpop.permute.xlu0 %126
    %v129 = vperm.slane %v118, 0
    %v130 = vmul.f32 %v122, %v129
    %v131 = vmul.f32 %v127, %v129
    %v132 = vadd.f32 %v112, %v130
    %v133 = vadd.f32 %v113, %v131
    %vm134 = vcmp.eq.f32.partialorder %v18, 3.0
    %vm135 = vcmp.eq.f32.partialorder %v19, 3.0
    %v136 = vsel %vm134, 1.0, 0.0
    %v137 = vsel %vm135, 1.0, 0.0
    %v138 = vld [vmem:[%s0 + $0x65] sm:$0x1]
    %140 = vset.pattern.permute.xlu0 2
    %141 = vperm.xlu0 %140, %v136
    %v142 = vpop.permute.xlu0 %141
    %145 = vset.pattern.permute.xlu0 2
    %146 = vperm.xlu0 %145, %v137
    %v147 = vpop.permute.xlu0 %146
    %v149 = vperm.slane %v138, 0
    %v150 = vmul.f32 %v142, %v149
    %v151 = vmul.f32 %v147, %v149
    %v152 = vadd.f32 %v132, %v150
    %v153 = vadd.f32 %v133, %v151
    %v154 = vand.u32 2147483647, %v52
    %vm155 = vcmp.le.f32.partialorder %v154, 0.7853982
    %vm156 = vcmp.lt.s32.totalorder %v52, 0
    %v157 = vand.u32 %v52, 2139095040
    %v158 = vshrl.u32 %v157, 23
    %v159 = vsub.s32 %v158, 127
    %v160 = vand.u32 2147483647, %v52
    %v161 = vand.u32 %v160, 8388607
    %v162 = vor.u32 %v161, 8388608
    %v163 = vsub.s32 0, %v162
    %v164 = vadd.s32 %v159, 1
    %vm165 = vcmp.gt.s32.totalorder %v164, 0
    %v166 = vsel %vm165, %v164, 0
    %v167 = vshrl.u32 %v166, 5
    %v168 = vand.u32 %v166, 31
    %v169 = vsub.s32 32, %v168
    %v170 = vshrl.u32 683565275, %v169
    %v171 = vshll.u32 683565275, %v168
    %v172 = vshrl.u32 2475754826, %v169
    %v173 = vor.u32 %v171, %v172
    %v174 = vshll.u32 2475754826, %v168
    %v175 = vshrl.u32 2131351028, %v169
    %v176 = vor.u32 %v174, %v175
    %v177 = vshll.u32 2131351028, %v168
    %v178 = vshrl.u32 2102212464, %v169
    %v179 = vor.u32 %v177, %v178
    %v180 = vshll.u32 2102212464, %v168
    %v181 = vshrl.u32 920167782, %v169
    %v182 = vor.u32 %v180, %v181
    %v183 = vshll.u32 920167782, %v168
    %v184 = vshrl.u32 1326507024, %v169
    %v185 = vor.u32 %v183, %v184
    %vm186 = vcmp.lt.s32.totalorder %v167, 1
    %vm187 = vcmp.lt.s32.totalorder %v167, 2
    %vm188 = vcmp.lt.s32.totalorder %v167, 3
    %vm189 = vcmp.lt.s32.totalorder %v167, 4
    %v190 = vsel %vm186, %v170, %v173
    %v191 = vsel %vm189, %v179, 2102212464
    %v192 = vsel %vm188, %v176, %v191
    %v193 = vsel %vm187, %v190, %v192
    %v194 = vsel %vm186, %v173, %v176
    %v195 = vsel %vm189, %v182, 920167782
    %v196 = vsel %vm188, %v179, %v195
    %v197 = vsel %vm187, %v194, %v196
    %v198 = vsel %vm186, %v176, %v179
    %v199 = vsel %vm189, %v185, 1326507024
    %v200 = vsel %vm188, %v182, %v199
    %v201 = vsel %vm187, %v198, %v200
    %v202 = vshll.u32 %v162, 8
    %v203 = vand.u32 %v202, 65535
    %v204 = vshrl.u32 %v202, 16
    %v205 = vand.u32 %v201, 65535
    %v206 = vshrl.u32 %v201, 16
    %v207 = vmul.u32 %v203, %v205
    %v208 = vmul.u32 %v203, %v206
    %v209 = vmul.u32 %v204, %v205
    %v210 = vmul.u32 %v204, %v206
    %v211 = vshll.u32 %v208, 16
    %v212 = vshrl.u32 %v208, 16
    %v213 = vshll.u32 %v209, 16
    %v214 = vshrl.u32 %v209, 16
    %vm215 = vc.u32 %v207, %v211
    %v216 = vsel %vm215, 1, 0
    %v217 = vadd.s32 %v207, %v211
    %v218 = vadd.s32 %v210, %v216
    %vm219 = vc.u32 %v217, %v213
    %v220 = vsel %vm219, 1, 0
    %v221 = vadd.s32 %v217, %v213
    %v222 = vadd.s32 %v218, %v220
    %v223 = vadd.s32 %v222, %v212
    %v224 = vadd.s32 %v223, %v214
    %v225 = vand.u32 %v202, 65535
    %v226 = vshrl.u32 %v202, 16
    %v227 = vand.u32 %v197, 65535
    %v228 = vshrl.u32 %v197, 16
    %v229 = vmul.u32 %v225, %v227
    %v230 = vmul.u32 %v225, %v228
    %v231 = vmul.u32 %v226, %v227
    %v232 = vmul.u32 %v226, %v228
    %v233 = vshll.u32 %v230, 16
    %v234 = vshrl.u32 %v230, 16
    %v235 = vshll.u32 %v231, 16
    %v236 = vshrl.u32 %v231, 16
    %vm237 = vc.u32 %v229, %v233
    %v238 = vsel %vm237, 1, 0
    %v239 = vadd.s32 %v229, %v233
    %v240 = vadd.s32 %v232, %v238
    %vm241 = vc.u32 %v239, %v235
    %v242 = vsel %vm241, 1, 0
    %v243 = vadd.s32 %v239, %v235
    %v244 = vadd.s32 %v240, %v242
    %v245 = vadd.s32 %v244, %v234
    %v246 = vadd.s32 %v245, %v236
    %v247 = vmul.u32 %v202, %v193
    %v248 = vadd.s32 %v224, %v243
    %vm249 = vc.u32 %v224, %v243
    %v250 = vadd.s32 %v246, 1
    %v251 = vsel %vm249, %v250, %v246
    %v252 = vadd.s32 %v247, %v251
    %v253 = vadd.s32 %v252, 536870912
    %v254 = vshrl.u32 %v253, 30
    %v255 = vshll.u32 %v254, 30
    %v256 = vsub.s32 %v252, %v255
    %vm257 = vcmp.lt.s32.totalorder %v256, 0
    %v258 = vsub.s32 0, %v256
    %v259 = vsel %vm257, %v258, %v256
    %v260 = vclz %v259
    %v261 = vsub.s32 %v260, 2
    %vm262 = vcmp.gt.s32.totalorder 0, %v261
    %v263 = vsel %vm262, 0, %v261
    %v264 = vsub.s32 32, %v263
    %v265 = vshll.u32 %v256, %v263
    %v266 = vshrl.u32 %v248, %v264
    %v267 = vor.u32 %v265, %v266
    %v268 = vsub.s32 4294967266, %v263
    %v269 = vadd.s32 %v268, 127
    %v270 = vshll.u32 %v269, 23
    %v271 = vor.u32 4788187, %v270
    %v272 = vand.u32 2147483647, %v271
    %v274 = vcvt.s32.f32 %v267
    %v275 = vmul.f32 %v274, %v272
    %v276 = vxor.u32 %v275, 2147483648
    %v277 = vsel %vm156, %v276, %v275
    %v278 = vsub.s32 4, %v254
    %v279 = vsel %vm156, %v278, %v254
    %v280 = vsel %vm155, %v52, %v277
    %v281 = vsel %vm155, 0, %v279
    %v282 = vmul.f32 %v280, %v280
    %v283 = vmul.f32 %v282, -0.001358992
    %v284 = vadd.f32 %v283, 0.041655596
    %v285 = vmul.f32 %v282, %v284
    %v286 = vadd.f32 %v285, -0.4999988
    %v287 = vmul.f32 %v282, %v286
    %v288 = vadd.f32 1.0, %v287
    %v289 = vmul.f32 %v280, %v280
    %v290 = vmul.f32 %v289, -0.00019511016
    %v291 = vadd.f32 %v290, 0.008332121
    %v292 = vmul.f32 %v289, %v291
    %v293 = vadd.f32 %v292, -0.16666654
    %v294 = vmul.f32 %v289, %v293
    %v295 = vadd.f32 %v294, 1.0
    %v296 = vmul.f32 %v295, %v280
    %vm297 = vweird.f32 %v52
    %v298 = vadd.s32 %v281, 3
    %v299 = vand.u32 %v298, 3
    %vm300 = vcmp.lt.s32.totalorder %v299, 2
    %vm301 = vcmp.eq.s32.totalorder %v299, 0
    %v302 = vxor.u32 %v296, 2147483648
    %v303 = vsel %vm301, %v288, %v302
    %vm304 = vcmp.eq.s32.totalorder %v299, 2
    %v305 = vxor.u32 %v288, 2147483648
    %v306 = vsel %vm304, %v305, %v296
    %v307 = vsel %vm300, %v303, %v306
    %v308 = vsel %vm297, nan, %v307
    %v309 = vand.u32 2147483647, %v53
    %vm310 = vcmp.le.f32.partialorder %v309, 0.7853982
    %vm311 = vcmp.lt.s32.totalorder %v53, 0
    %v312 = vand.u32 %v53, 2139095040
    %v313 = vshrl.u32 %v312, 23
    %v314 = vsub.s32 %v313, 127
    %v315 = vand.u32 2147483647, %v53
    %v316 = vand.u32 %v315, 8388607
    %v317 = vor.u32 %v316, 8388608
    %v318 = vsub.s32 0, %v317
    %v319 = vadd.s32 %v314, 1
    %vm320 = vcmp.gt.s32.totalorder %v319, 0
    %v321 = vsel %vm320, %v319, 0
    %v322 = vshrl.u32 %v321, 5
    %v323 = vand.u32 %v321, 31
    %v324 = vsub.s32 32, %v323
    %v325 = vshrl.u32 683565275, %v324
    %v326 = vshll.u32 683565275, %v323
    %v327 = vshrl.u32 2475754826, %v324
    %v328 = vor.u32 %v326, %v327
    %v329 = vshll.u32 2475754826, %v323
    %v330 = vshrl.u32 2131351028, %v324
    %v331 = vor.u32 %v329, %v330
    %v332 = vshll.u32 2131351028, %v323
    %v333 = vshrl.u32 2102212464, %v324
    %v334 = vor.u32 %v332, %v333
    %v335 = vshll.u32 2102212464, %v323
    %v336 = vshrl.u32 920167782, %v324
    %v337 = vor.u32 %v335, %v336
    %v338 = vshll.u32 920167782, %v323
    %v339 = vshrl.u32 1326507024, %v324
    %v340 = vor.u32 %v338, %v339
    %vm341 = vcmp.lt.s32.totalorder %v322, 1
    %vm342 = vcmp.lt.s32.totalorder %v322, 2
    %vm343 = vcmp.lt.s32.totalorder %v322, 3
    %vm344 = vcmp.lt.s32.totalorder %v322, 4
    %v345 = vsel %vm341, %v325, %v328
    %v346 = vsel %vm344, %v334, 2102212464
    %v347 = vsel %vm343, %v331, %v346
    %v348 = vsel %vm342, %v345, %v347
    %v349 = vsel %vm341, %v328, %v331
    %v350 = vsel %vm344, %v337, 920167782
    %v351 = vsel %vm343, %v334, %v350
    %v352 = vsel %vm342, %v349, %v351
    %v353 = vsel %vm341, %v331, %v334
    %v354 = vsel %vm344, %v340, 1326507024
    %v355 = vsel %vm343, %v337, %v354
    %v356 = vsel %vm342, %v353, %v355
    %v357 = vshll.u32 %v317, 8
    %v358 = vand.u32 %v357, 65535
    %v359 = vshrl.u32 %v357, 16
    %v360 = vand.u32 %v356, 65535
    %v361 = vshrl.u32 %v356, 16
    %v362 = vmul.u32 %v358, %v360
    %v363 = vmul.u32 %v358, %v361
    %v364 = vmul.u32 %v359, %v360
    %v365 = vmul.u32 %v359, %v361
    %v366 = vshll.u32 %v363, 16
    %v367 = vshrl.u32 %v363, 16
    %v368 = vshll.u32 %v364, 16
    %v369 = vshrl.u32 %v364, 16
    %vm370 = vc.u32 %v362, %v366
    %v371 = vsel %vm370, 1, 0
    %v372 = vadd.s32 %v362, %v366
    %v373 = vadd.s32 %v365, %v371
    %vm374 = vc.u32 %v372, %v368
    %v375 = vsel %vm374, 1, 0
    %v376 = vadd.s32 %v372, %v368
    %v377 = vadd.s32 %v373, %v375
    %v378 = vadd.s32 %v377, %v367
    %v379 = vadd.s32 %v378, %v369
    %v380 = vand.u32 %v357, 65535
    %v381 = vshrl.u32 %v357, 16
    %v382 = vand.u32 %v352, 65535
    %v383 = vshrl.u32 %v352, 16
    %v384 = vmul.u32 %v380, %v382
    %v385 = vmul.u32 %v380, %v383
    %v386 = vmul.u32 %v381, %v382
    %v387 = vmul.u32 %v381, %v383
    %v388 = vshll.u32 %v385, 16
    %v389 = vshrl.u32 %v385, 16
    %v390 = vshll.u32 %v386, 16
    %v391 = vshrl.u32 %v386, 16
    %vm392 = vc.u32 %v384, %v388
    %v393 = vsel %vm392, 1, 0
    %v394 = vadd.s32 %v384, %v388
    %v395 = vadd.s32 %v387, %v393
    %vm396 = vc.u32 %v394, %v390
    %v397 = vsel %vm396, 1, 0
    %v398 = vadd.s32 %v394, %v390
    %v399 = vadd.s32 %v395, %v397
    %v400 = vadd.s32 %v399, %v389
    %v401 = vadd.s32 %v400, %v391
    %v402 = vmul.u32 %v357, %v348
    %v403 = vadd.s32 %v379, %v398
    %vm404 = vc.u32 %v379, %v398
    %v405 = vadd.s32 %v401, 1
    %v406 = vsel %vm404, %v405, %v401
    %v407 = vadd.s32 %v402, %v406
    %v408 = vadd.s32 %v407, 536870912
    %v409 = vshrl.u32 %v408, 30
    %v410 = vshll.u32 %v409, 30
    %v411 = vsub.s32 %v407, %v410
    %vm412 = vcmp.lt.s32.totalorder %v411, 0
    %v413 = vsub.s32 0, %v411
    %v414 = vsel %vm412, %v413, %v411
    %v415 = vclz %v414
    %v416 = vsub.s32 %v415, 2
    %vm417 = vcmp.gt.s32.totalorder 0, %v416
    %v418 = vsel %vm417, 0, %v416
    %v419 = vsub.s32 32, %v418
    %v420 = vshll.u32 %v411, %v418
    %v421 = vshrl.u32 %v403, %v419
    %v422 = vor.u32 %v420, %v421
    %v423 = vsub.s32 4294967266, %v418
    %v424 = vadd.s32 %v423, 127
    %v425 = vshll.u32 %v424, 23
    %v426 = vor.u32 4788187, %v425
    %v427 = vand.u32 2147483647, %v426
    %v429 = vcvt.s32.f32 %v422
    %v430 = vmul.f32 %v429, %v427
    %v431 = vxor.u32 %v430, 2147483648
    %v432 = vsel %vm311, %v431, %v430
    %v433 = vsub.s32 4, %v409
    %v434 = vsel %vm311, %v433, %v409
    %v435 = vsel %vm310, %v53, %v432
    %v436 = vsel %vm310, 0, %v434
    %v437 = vmul.f32 %v435, %v435
    %v438 = vmul.f32 %v437, -0.001358992
    %v439 = vadd.f32 %v438, 0.041655596
    %v440 = vmul.f32 %v437, %v439
    %v441 = vadd.f32 %v440, -0.4999988
    %v442 = vmul.f32 %v437, %v441
    %v443 = vadd.f32 1.0, %v442
    %v444 = vmul.f32 %v435, %v435
    %v445 = vmul.f32 %v444, -0.00019511016
    %v446 = vadd.f32 %v445, 0.008332121
    %v447 = vmul.f32 %v444, %v446
    %v448 = vadd.f32 %v447, -0.16666654
    %v449 = vmul.f32 %v444, %v448
    %v450 = vadd.f32 %v449, 1.0
    %v451 = vmul.f32 %v450, %v435
    %vm452 = vweird.f32 %v53
    %v453 = vadd.s32 %v436, 3
    %v454 = vand.u32 %v453, 3
    %vm455 = vcmp.lt.s32.totalorder %v454, 2
    %vm456 = vcmp.eq.s32.totalorder %v454, 0
    %v457 = vxor.u32 %v451, 2147483648
    %v458 = vsel %vm456, %v443, %v457
    %vm459 = vcmp.eq.s32.totalorder %v454, 2
    %v460 = vxor.u32 %v443, 2147483648
    %v461 = vsel %vm459, %v460, %v451
    %v462 = vsel %vm455, %v458, %v461
    %v463 = vsel %vm452, nan, %v462
    %465 = vset.pattern.permute.xlu0 2
    %466 = vperm.xlu0 %465, %v56
    %v467 = vpop.permute.xlu0 %466
    %470 = vset.pattern.permute.xlu0 2
    %471 = vperm.xlu0 %470, %v57
    %v472 = vpop.permute.xlu0 %471
    %v474 = vmul.f32 %v308, %v467
    %v475 = vmul.f32 %v463, %v472
    %v476 = vadd.f32 %v474, %v152
    %v477 = vadd.f32 %v475, %v153
    %vm478 = vcmask 130048
    %479 = vst.msk [vmem:[#allocation2] sm:$0xff] %vm478, %v476
    %480 = vst.msk [vmem:[#allocation2 + $0x8] sm:$0xff] %vm478, %v477
    %v481 = vand.u32 2147483647, %v52
    %vm482 = vcmp.le.f32.partialorder %v481, 0.7853982
    %vm483 = vcmp.lt.s32.totalorder %v52, 0
    %v484 = vand.u32 %v52, 2139095040
    %v485 = vshrl.u32 %v484, 23
    %v486 = vsub.s32 %v485, 127
    %v487 = vand.u32 2147483647, %v52
    %v488 = vand.u32 %v487, 8388607
    %v489 = vor.u32 %v488, 8388608
    %v490 = vsub.s32 0, %v489
    %v491 = vadd.s32 %v486, 1
    %vm492 = vcmp.gt.s32.totalorder %v491, 0
    %v493 = vsel %vm492, %v491, 0
    %v494 = vshrl.u32 %v493, 5
    %v495 = vand.u32 %v493, 31
    %v496 = vsub.s32 32, %v495
    %v497 = vshrl.u32 683565275, %v496
    %v498 = vshll.u32 683565275, %v495
    %v499 = vshrl.u32 2475754826, %v496
    %v500 = vor.u32 %v498, %v499
    %v501 = vshll.u32 2475754826, %v495
    %v502 = vshrl.u32 2131351028, %v496
    %v503 = vor.u32 %v501, %v502
    %v504 = vshll.u32 2131351028, %v495
    %v505 = vshrl.u32 2102212464, %v496
    %v506 = vor.u32 %v504, %v505
    %v507 = vshll.u32 2102212464, %v495
    %v508 = vshrl.u32 920167782, %v496
    %v509 = vor.u32 %v507, %v508
    %v510 = vshll.u32 920167782, %v495
    %v511 = vshrl.u32 1326507024, %v496
    %v512 = vor.u32 %v510, %v511
    %vm513 = vcmp.lt.s32.totalorder %v494, 1
    %vm514 = vcmp.lt.s32.totalorder %v494, 2
    %vm515 = vcmp.lt.s32.totalorder %v494, 3
    %vm516 = vcmp.lt.s32.totalorder %v494, 4
    %v517 = vsel %vm513, %v497, %v500
    %v518 = vsel %vm516, %v506, 2102212464
    %v519 = vsel %vm515, %v503, %v518
    %v520 = vsel %vm514, %v517, %v519
    %v521 = vsel %vm513, %v500, %v503
    %v522 = vsel %vm516, %v509, 920167782
    %v523 = vsel %vm515, %v506, %v522
    %v524 = vsel %vm514, %v521, %v523
    %v525 = vsel %vm513, %v503, %v506
    %v526 = vsel %vm516, %v512, 1326507024
    %v527 = vsel %vm515, %v509, %v526
    %v528 = vsel %vm514, %v525, %v527
    %v529 = vshll.u32 %v489, 8
    %v530 = vand.u32 %v529, 65535
    %v531 = vshrl.u32 %v529, 16
    %v532 = vand.u32 %v528, 65535
    %v533 = vshrl.u32 %v528, 16
    %v534 = vmul.u32 %v530, %v532
    %v535 = vmul.u32 %v530, %v533
    %v536 = vmul.u32 %v531, %v532
    %v537 = vmul.u32 %v531, %v533
    %v538 = vshll.u32 %v535, 16
    %v539 = vshrl.u32 %v535, 16
    %v540 = vshll.u32 %v536, 16
    %v541 = vshrl.u32 %v536, 16
    %vm542 = vc.u32 %v534, %v538
    %v543 = vsel %vm542, 1, 0
    %v544 = vadd.s32 %v534, %v538
    %v545 = vadd.s32 %v537, %v543
    %vm546 = vc.u32 %v544, %v540
    %v547 = vsel %vm546, 1, 0
    %v548 = vadd.s32 %v544, %v540
    %v549 = vadd.s32 %v545, %v547
    %v550 = vadd.s32 %v549, %v539
    %v551 = vadd.s32 %v550, %v541
    %v552 = vand.u32 %v529, 65535
    %v553 = vshrl.u32 %v529, 16
    %v554 = vand.u32 %v524, 65535
    %v555 = vshrl.u32 %v524, 16
    %v556 = vmul.u32 %v552, %v554
    %v557 = vmul.u32 %v552, %v555
    %v558 = vmul.u32 %v553, %v554
    %v559 = vmul.u32 %v553, %v555
    %v560 = vshll.u32 %v557, 16
    %v561 = vshrl.u32 %v557, 16
    %v562 = vshll.u32 %v558, 16
    %v563 = vshrl.u32 %v558, 16
    %vm564 = vc.u32 %v556, %v560
    %v565 = vsel %vm564, 1, 0
    %v566 = vadd.s32 %v556, %v560
    %v567 = vadd.s32 %v559, %v565
    %vm568 = vc.u32 %v566, %v562
    %v569 = vsel %vm568, 1, 0
    %v570 = vadd.s32 %v566, %v562
    %v571 = vadd.s32 %v567, %v569
    %v572 = vadd.s32 %v571, %v561
    %v573 = vadd.s32 %v572, %v563
    %v574 = vmul.u32 %v529, %v520
    %v575 = vadd.s32 %v551, %v570
    %vm576 = vc.u32 %v551, %v570
    %v577 = vadd.s32 %v573, 1
    %v578 = vsel %vm576, %v577, %v573
    %v579 = vadd.s32 %v574, %v578
    %v580 = vadd.s32 %v579, 536870912
    %v581 = vshrl.u32 %v580, 30
    %v582 = vshll.u32 %v581, 30
    %v583 = vsub.s32 %v579, %v582
    %vm584 = vcmp.lt.s32.totalorder %v583, 0
    %v585 = vsub.s32 0, %v583
    %v586 = vsel %vm584, %v585, %v583
    %v587 = vclz %v586
    %v588 = vsub.s32 %v587, 2
    %vm589 = vcmp.gt.s32.totalorder 0, %v588
    %v590 = vsel %vm589, 0, %v588
    %v591 = vsub.s32 32, %v590
    %v592 = vshll.u32 %v583, %v590
    %v593 = vshrl.u32 %v575, %v591
    %v594 = vor.u32 %v592, %v593
    %v595 = vsub.s32 4294967266, %v590
    %v596 = vadd.s32 %v595, 127
    %v597 = vshll.u32 %v596, 23
    %v598 = vor.u32 4788187, %v597
    %v599 = vand.u32 2147483647, %v598
    %v601 = vcvt.s32.f32 %v594
    %v602 = vmul.f32 %v601, %v599
    %v603 = vxor.u32 %v602, 2147483648
    %v604 = vsel %vm483, %v603, %v602
    %v605 = vsub.s32 4, %v581
    %v606 = vsel %vm483, %v605, %v581
    %v607 = vsel %vm482, %v52, %v604
    %v608 = vsel %vm482, 0, %v606
    %v609 = vmul.f32 %v607, %v607
    %v610 = vmul.f32 %v609, -0.001358992
    %v611 = vadd.f32 %v610, 0.041655596
    %v612 = vmul.f32 %v609, %v611
    %v613 = vadd.f32 %v612, -0.4999988
    %v614 = vmul.f32 %v609, %v613
    %v615 = vadd.f32 1.0, %v614
    %v616 = vmul.f32 %v607, %v607
    %v617 = vmul.f32 %v616, -0.00019511016
    %v618 = vadd.f32 %v617, 0.008332121
    %v619 = vmul.f32 %v616, %v618
    %v620 = vadd.f32 %v619, -0.16666654
    %v621 = vmul.f32 %v616, %v620
    %v622 = vadd.f32 %v621, 1.0
    %v623 = vmul.f32 %v622, %v607
    %vm624 = vweird.f32 %v52
    %v625 = vand.u32 %v608, 3
    %vm626 = vcmp.lt.s32.totalorder %v625, 2
    %vm627 = vcmp.eq.s32.totalorder %v625, 0
    %v628 = vxor.u32 %v623, 2147483648
    %v629 = vsel %vm627, %v615, %v628
    %vm630 = vcmp.eq.s32.totalorder %v625, 2
    %v631 = vxor.u32 %v615, 2147483648
    %v632 = vsel %vm630, %v631, %v623
    %v633 = vsel %vm626, %v629, %v632
    %v634 = vsel %vm624, nan, %v633
    %v635 = vand.u32 2147483647, %v53
    %vm636 = vcmp.le.f32.partialorder %v635, 0.7853982
    %vm637 = vcmp.lt.s32.totalorder %v53, 0
    %v638 = vand.u32 %v53, 2139095040
    %v639 = vshrl.u32 %v638, 23
    %v640 = vsub.s32 %v639, 127
    %v641 = vand.u32 2147483647, %v53
    %v642 = vand.u32 %v641, 8388607
    %v643 = vor.u32 %v642, 8388608
    %v644 = vsub.s32 0, %v643
    %v645 = vadd.s32 %v640, 1
    %vm646 = vcmp.gt.s32.totalorder %v645, 0
    %v647 = vsel %vm646, %v645, 0
    %v648 = vshrl.u32 %v647, 5
    %v649 = vand.u32 %v647, 31
    %v650 = vsub.s32 32, %v649
    %v651 = vshrl.u32 683565275, %v650
    %v652 = vshll.u32 683565275, %v649
    %v653 = vshrl.u32 2475754826, %v650
    %v654 = vor.u32 %v652, %v653
    %v655 = vshll.u32 2475754826, %v649
    %v656 = vshrl.u32 2131351028, %v650
    %v657 = vor.u32 %v655, %v656
    %v658 = vshll.u32 2131351028, %v649
    %v659 = vshrl.u32 2102212464, %v650
    %v660 = vor.u32 %v658, %v659
    %v661 = vshll.u32 2102212464, %v649
    %v662 = vshrl.u32 920167782, %v650
    %v663 = vor.u32 %v661, %v662
    %v664 = vshll.u32 920167782, %v649
    %v665 = vshrl.u32 1326507024, %v650
    %v666 = vor.u32 %v664, %v665
    %vm667 = vcmp.lt.s32.totalorder %v648, 1
    %vm668 = vcmp.lt.s32.totalorder %v648, 2
    %vm669 = vcmp.lt.s32.totalorder %v648, 3
    %vm670 = vcmp.lt.s32.totalorder %v648, 4
    %v671 = vsel %vm667, %v651, %v654
    %v672 = vsel %vm670, %v660, 2102212464
    %v673 = vsel %vm669, %v657, %v672
    %v674 = vsel %vm668, %v671, %v673
    %v675 = vsel %vm667, %v654, %v657
    %v676 = vsel %vm670, %v663, 920167782
    %v677 = vsel %vm669, %v660, %v676
    %v678 = vsel %vm668, %v675, %v677
    %v679 = vsel %vm667, %v657, %v660
    %v680 = vsel %vm670, %v666, 1326507024
    %v681 = vsel %vm669, %v663, %v680
    %v682 = vsel %vm668, %v679, %v681
    %v683 = vshll.u32 %v643, 8
    %v684 = vand.u32 %v683, 65535
    %v685 = vshrl.u32 %v683, 16
    %v686 = vand.u32 %v682, 65535
    %v687 = vshrl.u32 %v682, 16
    %v688 = vmul.u32 %v684, %v686
    %v689 = vmul.u32 %v684, %v687
    %v690 = vmul.u32 %v685, %v686
    %v691 = vmul.u32 %v685, %v687
    %v692 = vshll.u32 %v689, 16
    %v693 = vshrl.u32 %v689, 16
    %v694 = vshll.u32 %v690, 16
    %v695 = vshrl.u32 %v690, 16
    %vm696 = vc.u32 %v688, %v692
    %v697 = vsel %vm696, 1, 0
    %v698 = vadd.s32 %v688, %v692
    %v699 = vadd.s32 %v691, %v697
    %vm700 = vc.u32 %v698, %v694
    %v701 = vsel %vm700, 1, 0
    %v702 = vadd.s32 %v698, %v694
    %v703 = vadd.s32 %v699, %v701
    %v704 = vadd.s32 %v703, %v693
    %v705 = vadd.s32 %v704, %v695
    %v706 = vand.u32 %v683, 65535
    %v707 = vshrl.u32 %v683, 16
    %v708 = vand.u32 %v678, 65535
    %v709 = vshrl.u32 %v678, 16
    %v710 = vmul.u32 %v706, %v708
    %v711 = vmul.u32 %v706, %v709
    %v712 = vmul.u32 %v707, %v708
    %v713 = vmul.u32 %v707, %v709
    %v714 = vshll.u32 %v711, 16
    %v715 = vshrl.u32 %v711, 16
    %v716 = vshll.u32 %v712, 16
    %v717 = vshrl.u32 %v712, 16
    %vm718 = vc.u32 %v710, %v714
    %v719 = vsel %vm718, 1, 0
    %v720 = vadd.s32 %v710, %v714
    %v721 = vadd.s32 %v713, %v719
    %vm722 = vc.u32 %v720, %v716
    %v723 = vsel %vm722, 1, 0
    %v724 = vadd.s32 %v720, %v716
    %v725 = vadd.s32 %v721, %v723
    %v726 = vadd.s32 %v725, %v715
    %v727 = vadd.s32 %v726, %v717
    %v728 = vmul.u32 %v683, %v674
    %v729 = vadd.s32 %v705, %v724
    %vm730 = vc.u32 %v705, %v724
    %v731 = vadd.s32 %v727, 1
    %v732 = vsel %vm730, %v731, %v727
    %v733 = vadd.s32 %v728, %v732
    %v734 = vadd.s32 %v733, 536870912
    %v735 = vshrl.u32 %v734, 30
    %v736 = vshll.u32 %v735, 30
    %v737 = vsub.s32 %v733, %v736
    %vm738 = vcmp.lt.s32.totalorder %v737, 0
    %v739 = vsub.s32 0, %v737
    %v740 = vsel %vm738, %v739, %v737
    %v741 = vclz %v740
    %v742 = vsub.s32 %v741, 2
    %vm743 = vcmp.gt.s32.totalorder 0, %v742
    %v744 = vsel %vm743, 0, %v742
    %v745 = vsub.s32 32, %v744
    %v746 = vshll.u32 %v737, %v744
    %v747 = vshrl.u32 %v729, %v745
    %v748 = vor.u32 %v746, %v747
    %v749 = vsub.s32 4294967266, %v744
    %v750 = vadd.s32 %v749, 127
    %v751 = vshll.u32 %v750, 23
    %v752 = vor.u32 4788187, %v751
    %v753 = vand.u32 2147483647, %v752
    %v755 = vcvt.s32.f32 %v748
    %v756 = vmul.f32 %v755, %v753
    %v757 = vxor.u32 %v756, 2147483648
    %v758 = vsel %vm637, %v757, %v756
    %v759 = vsub.s32 4, %v735
    %v760 = vsel %vm637, %v759, %v735
    %v761 = vsel %vm636, %v53, %v758
    %v762 = vsel %vm636, 0, %v760
    %v763 = vmul.f32 %v761, %v761
    %v764 = vmul.f32 %v763, -0.001358992
    %v765 = vadd.f32 %v764, 0.041655596
    %v766 = vmul.f32 %v763, %v765
    %v767 = vadd.f32 %v766, -0.4999988
    %v768 = vmul.f32 %v763, %v767
    %v769 = vadd.f32 1.0, %v768
    %v770 = vmul.f32 %v761, %v761
    %v771 = vmul.f32 %v770, -0.00019511016
    %v772 = vadd.f32 %v771, 0.008332121
    %v773 = vmul.f32 %v770, %v772
    %v774 = vadd.f32 %v773, -0.16666654
    %v775 = vmul.f32 %v770, %v774
    %v776 = vadd.f32 %v775, 1.0
    %v777 = vmul.f32 %v776, %v761
    %vm778 = vweird.f32 %v53
    %v779 = vand.u32 %v762, 3
    %vm780 = vcmp.lt.s32.totalorder %v779, 2
    %vm781 = vcmp.eq.s32.totalorder %v779, 0
    %v782 = vxor.u32 %v777, 2147483648
    %v783 = vsel %vm781, %v769, %v782
    %vm784 = vcmp.eq.s32.totalorder %v779, 2
    %v785 = vxor.u32 %v769, 2147483648
    %v786 = vsel %vm784, %v785, %v777
    %v787 = vsel %vm780, %v783, %v786
    %v788 = vsel %vm778, nan, %v787
    %v789 = vmul.f32 %v634, %v467
    %v790 = vmul.f32 %v788, %v472
    %793 = vrot.lane.b32.xlu0 %v152, 112
    %v794 = vpop.permute.xlu0 %793
    %795 = vrot.lane.b32.xlu0 %v153, 112
    %v796 = vpop.permute.xlu0 %795
    %v799 = vadd.f32 %v789, %v794
    %v800 = vadd.f32 %v790, %v796
    %803 = vrot.lane.b32.xlu0 %v799, 16
    %v804 = vpop.permute.xlu0 %803
    %805 = vrot.lane.b32.xlu0 %v800, 16
    %v806 = vpop.permute.xlu0 %805
    %vm809 = vcmask 261248
    %810 = vst.msk [vmem:[#allocation2] sm:$0xff] %vm809, %v804
    %811 = vst.msk [vmem:[#allocation2 + $0x8] sm:$0xff] %vm809, %v806
    %v812 = vld [vmem:[%s0] sm:$0xff]
    %v813 = vld [vmem:[%s0 + $0x8] sm:$0xff]
    %v814 = vld [vmem:[%s0 + $0x10] sm:$0xff]
    %v815 = vld [vmem:[%s0 + $0x18] sm:$0xff]
    %v816 = vld [vmem:[%s0 + $0x20] sm:$0xff]
    %v817 = vld [vmem:[%s0 + $0x28] sm:$0xff]
    %v818 = vld [vmem:[%s0 + $0x30] sm:$0xff]
    %v819 = vld [vmem:[%s0 + $0x38] sm:$0xff]
    %v820 = vld [vmem:[%s0 + $0x40] sm:$0xff]
    %v821 = vld [vmem:[%s0 + $0x48] sm:$0xff]
    %v822 = vld [vmem:[%s0 + $0x50] sm:$0xff]
    %v823 = vld [vmem:[%s0 + $0x58] sm:$0xff]
    %v824 = vld [vmem:[%s2] sm:$0xff]
    %v825 = vld [vmem:[%s2 + $0x8] sm:$0xff]
    %v826 = vld [vmem:[%s2 + $0x10] sm:$0xff]
    %v827 = vld [vmem:[%s2 + $0x18] sm:$0xff]
    %v828 = vld [vmem:[%s2 + $0x20] sm:$0xff]
    %v829 = vld [vmem:[%s2 + $0x28] sm:$0xff]
    %v830 = vld [vmem:[%s2 + $0x30] sm:$0xff]
    %v831 = vld [vmem:[%s2 + $0x38] sm:$0xff]
    %833 = vset.pattern.permute.xlu0 0
    %834 = vperm.xlu0 %833, %v820
    %v835 = vpop.permute.xlu0 %834
    %838 = vset.pattern.permute.xlu0 0
    %839 = vperm.xlu0 %838, %v821
    %v840 = vpop.permute.xlu0 %839
    %v843 = vsel %vm478, %v812, 0
    %v846 = vsel %vm478, %v813, 0
    %848 = vmatpush.msra.mxu0 0.0
    %849 = vmatpush.msra.mxu0 0.0
    %850 = vmatpush.msra.mxu0 0.0
    %851 = vmatpush.msra.mxu0 0.0
    %852 = vmatpush.msra.mxu0 0.0
    %853 = vmatpush.msra.mxu0 0.0
    %854 = vmatpush.msra.mxu0 0.0
    %855 = vmatpush.msra.mxu0 0.0
    %856 = vmatpush.msra.mxu0 0.0
    %857 = vmatpush.msra.mxu0 0.0
    %858 = vmatpush.msra.mxu0 0.0
    %859 = vmatpush.msra.mxu0 0.0
    %860 = vmatpush.msra.mxu0 0.0
    %861 = vmatpush.msra.mxu0 0.0
    %v862 = vand.u32 %v828, 4294901760
    %863 = vmatpush.msra.mxu0 %v862
    %v864 = vand.u32 %v824, 4294901760
    %865 = vmatpush.msra.mxu0 %v864
    %v866 = vand.u32 %v843, 4294901760
    %v867 = vsub.f32 %v843, %v866
    %v868 = vand.u32 %v867, 4294901760
    %v869 = vsub.f32 %v867, %v868
    %v870 = vand.u32 %v869, 4294901760
    %871 = vmatmul.f32.gmra.mxu0 %v870
    %v872 = vpop.f32.mrf.mxu0
    %v873 = vadd.f32 %v835, %v872
    %v874 = vand.u32 %v846, 4294901760
    %v875 = vsub.f32 %v846, %v874
    %v876 = vand.u32 %v875, 4294901760
    %v877 = vsub.f32 %v875, %v876
    %v878 = vand.u32 %v877, 4294901760
    %879 = vmatmul.f32.gmra.mxu0 %v878
    %v880 = vpop.f32.mrf.mxu0
    %v881 = vadd.f32 %v840, %v880
    %882 = vdwg.mxu0
    %883 = vmatpush.msra.mxu0 0.0
    %884 = vmatpush.msra.mxu0 0.0
    %885 = vmatpush.msra.mxu0 0.0
    %886 = vmatpush.msra.mxu0 0.0
    %887 = vmatpush.msra.mxu0 0.0
    %888 = vmatpush.msra.mxu0 0.0
    %889 = vmatpush.msra.mxu0 0.0
    %890 = vmatpush.msra.mxu0 0.0
    %891 = vmatpush.msra.mxu0 0.0
    %892 = vmatpush.msra.mxu0 0.0
    %893 = vmatpush.msra.mxu0 0.0
    %894 = vmatpush.msra.mxu0 0.0
    %895 = vmatpush.msra.mxu0 0.0
    %896 = vmatpush.msra.mxu0 0.0
    %v897 = vand.u32 %v828, 4294901760
    %v898 = vsub.f32 %v828, %v897
    %v899 = vand.u32 %v898, 4294901760
    %v900 = vsub.f32 %v898, %v899
    %v901 = vand.u32 %v900, 4294901760
    %902 = vmatpush.msra.mxu0 %v901
    %v903 = vand.u32 %v824, 4294901760
    %v904 = vsub.f32 %v824, %v903
    %v905 = vand.u32 %v904, 4294901760
    %v906 = vsub.f32 %v904, %v905
    %v907 = vand.u32 %v906, 4294901760
    %908 = vmatpush.msra.mxu0 %v907
    %v909 = vand.u32 %v843, 4294901760
    %910 = vmatmul.f32.gmra.mxu0 %v909
    %v911 = vpop.f32.mrf.mxu0
    %v912 = vadd.f32 %v873, %v911
    %v913 = vand.u32 %v846, 4294901760
    %914 = vmatmul.f32.gmra.mxu0 %v913
    %v915 = vpop.f32.mrf.mxu0
    %v916 = vadd.f32 %v881, %v915
    %917 = vdwg.mxu0
    %918 = vmatpush.msra.mxu0 0.0
    %919 = vmatpush.msra.mxu0 0.0
    %920 = vmatpush.msra.mxu0 0.0
    %921 = vmatpush.msra.mxu0 0.0
    %922 = vmatpush.msra.mxu0 0.0
    %923 = vmatpush.msra.mxu0 0.0
    %924 = vmatpush.msra.mxu0 0.0
    %925 = vmatpush.msra.mxu0 0.0
    %926 = vmatpush.msra.mxu0 0.0
    %927 = vmatpush.msra.mxu0 0.0
    %928 = vmatpush.msra.mxu0 0.0
    %929 = vmatpush.msra.mxu0 0.0
    %930 = vmatpush.msra.mxu0 0.0
    %931 = vmatpush.msra.mxu0 0.0
    %v932 = vand.u32 %v828, 4294901760
    %v933 = vsub.f32 %v828, %v932
    %934 = vmatpush.msra.mxu0 %v933
    %v935 = vand.u32 %v824, 4294901760
    %v936 = vsub.f32 %v824, %v935
    %937 = vmatpush.msra.mxu0 %v936
    %v938 = vand.u32 %v843, 4294901760
    %v939 = vsub.f32 %v843, %v938
    %940 = vmatmul.f32.gmra.mxu0 %v939
    %v941 = vpop.f32.mrf.mxu0
    %v942 = vadd.f32 %v912, %v941
    %v943 = vand.u32 %v846, 4294901760
    %v944 = vsub.f32 %v846, %v943
    %945 = vmatmul.f32.gmra.mxu0 %v944
    %v946 = vpop.f32.mrf.mxu0
    %v947 = vadd.f32 %v916, %v946
    %948 = vdwg.mxu0
    %949 = vmatpush.msra.mxu0 0.0
    %950 = vmatpush.msra.mxu0 0.0
    %951 = vmatpush.msra.mxu0 0.0
    %952 = vmatpush.msra.mxu0 0.0
    %953 = vmatpush.msra.mxu0 0.0
    %954 = vmatpush.msra.mxu0 0.0
    %955 = vmatpush.msra.mxu0 0.0
    %956 = vmatpush.msra.mxu0 0.0
    %957 = vmatpush.msra.mxu0 0.0
    %958 = vmatpush.msra.mxu0 0.0
    %959 = vmatpush.msra.mxu0 0.0
    %960 = vmatpush.msra.mxu0 0.0
    %961 = vmatpush.msra.mxu0 0.0
    %962 = vmatpush.msra.mxu0 0.0
    %v963 = vand.u32 %v828, 4294901760
    %964 = vmatpush.msra.mxu0 %v963
    %v965 = vand.u32 %v824, 4294901760
    %966 = vmatpush.msra.mxu0 %v965
    %v967 = vand.u32 %v843, 4294901760
    %v968 = vsub.f32 %v843, %v967
    %v969 = vand.u32 %v968, 4294901760
    %970 = vmatmul.f32.gmra.mxu0 %v969
    %v971 = vpop.f32.mrf.mxu0
    %v972 = vadd.f32 %v942, %v971
    %v973 = vand.u32 %v846, 4294901760
    %v974 = vsub.f32 %v846, %v973
    %v975 = vand.u32 %v974, 4294901760
    %976 = vmatmul.f32.gmra.mxu0 %v975
    %v977 = vpop.f32.mrf.mxu0
    %v978 = vadd.f32 %v947, %v977
    %979 = vdwg.mxu0
    %980 = vmatpush.msra.mxu0 0.0
    %981 = vmatpush.msra.mxu0 0.0
    %982 = vmatpush.msra.mxu0 0.0
    %983 = vmatpush.msra.mxu0 0.0
    %984 = vmatpush.msra.mxu0 0.0
    %985 = vmatpush.msra.mxu0 0.0
    %986 = vmatpush.msra.mxu0 0.0
    %987 = vmatpush.msra.mxu0 0.0
    %988 = vmatpush.msra.mxu0 0.0
    %989 = vmatpush.msra.mxu0 0.0
    %990 = vmatpush.msra.mxu0 0.0
    %991 = vmatpush.msra.mxu0 0.0
    %992 = vmatpush.msra.mxu0 0.0
    %993 = vmatpush.msra.mxu0 0.0
    %v994 = vand.u32 %v828, 4294901760
    %v995 = vsub.f32 %v828, %v994
    %v996 = vand.u32 %v995, 4294901760
    %997 = vmatpush.msra.mxu0 %v996
    %v998 = vand.u32 %v824, 4294901760
    %v999 = vsub.f32 %v824, %v998
    %v1000 = vand.u32 %v999, 4294901760
    %1001 = vmatpush.msra.mxu0 %v1000
    %v1002 = vand.u32 %v843, 4294901760
    %1003 = vmatmul.f32.gmra.mxu0 %v1002
    %v1004 = vpop.f32.mrf.mxu0
    %v1005 = vadd.f32 %v972, %v1004
    %v1006 = vand.u32 %v846, 4294901760
    %1007 = vmatmul.f32.gmra.mxu0 %v1006
    %v1008 = vpop.f32.mrf.mxu0
    %v1009 = vadd.f32 %v978, %v1008
    %1010 = vdwg.mxu0
    %1011 = vmatpush.msra.mxu0 0.0
    %1012 = vmatpush.msra.mxu0 0.0
    %1013 = vmatpush.msra.mxu0 0.0
    %1014 = vmatpush.msra.mxu0 0.0
    %1015 = vmatpush.msra.mxu0 0.0
    %1016 = vmatpush.msra.mxu0 0.0
    %1017 = vmatpush.msra.mxu0 0.0
    %1018 = vmatpush.msra.mxu0 0.0
    %1019 = vmatpush.msra.mxu0 0.0
    %1020 = vmatpush.msra.mxu0 0.0
    %1021 = vmatpush.msra.mxu0 0.0
    %1022 = vmatpush.msra.mxu0 0.0
    %1023 = vmatpush.msra.mxu0 0.0
    %1024 = vmatpush.msra.mxu0 0.0
    %v1025 = vand.u32 %v828, 4294901760
    %1026 = vmatpush.msra.mxu0 %v1025
    %v1027 = vand.u32 %v824, 4294901760
    %1028 = vmatpush.msra.mxu0 %v1027
    %v1029 = vand.u32 %v843, 4294901760
    %1030 = vmatmul.f32.gmra.mxu0 %v1029
    %v1031 = vpop.f32.mrf.mxu0
    %v1032 = vadd.f32 %v1005, %v1031
    %v1033 = vand.u32 %v846, 4294901760
    %1034 = vmatmul.f32.gmra.mxu0 %v1033
    %v1035 = vpop.f32.mrf.mxu0
    %v1036 = vadd.f32 %v1009, %v1035
    %1037 = vdwg.mxu0
    %1038 = vmatpush.msra.mxu0 0.0
    %1039 = vmatpush.msra.mxu0 0.0
    %1040 = vmatpush.msra.mxu0 0.0
    %1041 = vmatpush.msra.mxu0 0.0
    %1042 = vmatpush.msra.mxu0 0.0
    %1043 = vmatpush.msra.mxu0 0.0
    %1044 = vmatpush.msra.mxu0 0.0
    %1045 = vmatpush.msra.mxu0 0.0
    %1046 = vmatpush.msra.mxu0 0.0
    %1047 = vmatpush.msra.mxu0 0.0
    %1048 = vmatpush.msra.mxu0 0.0
    %1049 = vmatpush.msra.mxu0 0.0
    %1050 = vmatpush.msra.mxu0 0.0
    %1051 = vmatpush.msra.mxu0 0.0
    %v1052 = vand.u32 %v829, 4294901760
    %1053 = vmatpush.msra.mxu0 %v1052
    %v1054 = vand.u32 %v825, 4294901760
    %1055 = vmatpush.msra.mxu0 %v1054
    %v1056 = vand.u32 %v843, 4294901760
    %v1057 = vsub.f32 %v843, %v1056
    %v1058 = vand.u32 %v1057, 4294901760
    %v1059 = vsub.f32 %v1057, %v1058
    %v1060 = vand.u32 %v1059, 4294901760
    %1061 = vmatmul.f32.gmra.mxu0 %v1060
    %v1062 = vpop.f32.mrf.mxu0
    %v1063 = vadd.f32 %v835, %v1062
    %v1064 = vand.u32 %v846, 4294901760
    %v1065 = vsub.f32 %v846, %v1064
    %v1066 = vand.u32 %v1065, 4294901760
    %v1067 = vsub.f32 %v1065, %v1066
    %v1068 = vand.u32 %v1067, 4294901760
    %1069 = vmatmul.f32.gmra.mxu0 %v1068
    %v1070 = vpop.f32.mrf.mxu0
    %v1071 = vadd.f32 %v840, %v1070
    %1072 = vdwg.mxu0
    %1073 = vmatpush.msra.mxu0 0.0
    %1074 = vmatpush.msra.mxu0 0.0
    %1075 = vmatpush.msra.mxu0 0.0
    %1076 = vmatpush.msra.mxu0 0.0
    %1077 = vmatpush.msra.mxu0 0.0
    %1078 = vmatpush.msra.mxu0 0.0
    %1079 = vmatpush.msra.mxu0 0.0
    %1080 = vmatpush.msra.mxu0 0.0
    %1081 = vmatpush.msra.mxu0 0.0
    %1082 = vmatpush.msra.mxu0 0.0
    %1083 = vmatpush.msra.mxu0 0.0
    %1084 = vmatpush.msra.mxu0 0.0
    %1085 = vmatpush.msra.mxu0 0.0
    %1086 = vmatpush.msra.mxu0 0.0
    %v1087 = vand.u32 %v829, 4294901760
    %v1088 = vsub.f32 %v829, %v1087
    %v1089 = vand.u32 %v1088, 4294901760
    %v1090 = vsub.f32 %v1088, %v1089
    %v1091 = vand.u32 %v1090, 4294901760
    %1092 = vmatpush.msra.mxu0 %v1091
    %v1093 = vand.u32 %v825, 4294901760
    %v1094 = vsub.f32 %v825, %v1093
    %v1095 = vand.u32 %v1094, 4294901760
    %v1096 = vsub.f32 %v1094, %v1095
    %v1097 = vand.u32 %v1096, 4294901760
    %1098 = vmatpush.msra.mxu0 %v1097
    %v1099 = vand.u32 %v843, 4294901760
    %1100 = vmatmul.f32.gmra.mxu0 %v1099
    %v1101 = vpop.f32.mrf.mxu0
    %v1102 = vadd.f32 %v1063, %v1101
    %v1103 = vand.u32 %v846, 4294901760
    %1104 = vmatmul.f32.gmra.mxu0 %v1103
    %v1105 = vpop.f32.mrf.mxu0
    %v1106 = vadd.f32 %v1071, %v1105
    %1107 = vdwg.mxu0
    %1108 = vmatpush.msra.mxu0 0.0
    %1109 = vmatpush.msra.mxu0 0.0
    %1110 = vmatpush.msra.mxu0 0.0
    %1111 = vmatpush.msra.mxu0 0.0
    %1112 = vmatpush.msra.mxu0 0.0
    %1113 = vmatpush.msra.mxu0 0.0
    %1114 = vmatpush.msra.mxu0 0.0
    %1115 = vmatpush.msra.mxu0 0.0
    %1116 = vmatpush.msra.mxu0 0.0
    %1117 = vmatpush.msra.mxu0 0.0
    %1118 = vmatpush.msra.mxu0 0.0
    %1119 = vmatpush.msra.mxu0 0.0
    %1120 = vmatpush.msra.mxu0 0.0
    %1121 = vmatpush.msra.mxu0 0.0
    %v1122 = vand.u32 %v829, 4294901760
    %v1123 = vsub.f32 %v829, %v1122
    %1124 = vmatpush.msra.mxu0 %v1123
    %v1125 = vand.u32 %v825, 4294901760
    %v1126 = vsub.f32 %v825, %v1125
    %1127 = vmatpush.msra.mxu0 %v1126
    %v1128 = vand.u32 %v843, 4294901760
    %v1129 = vsub.f32 %v843, %v1128
    %1130 = vmatmul.f32.gmra.mxu0 %v1129
    %v1131 = vpop.f32.mrf.mxu0
    %v1132 = vadd.f32 %v1102, %v1131
    %v1133 = vand.u32 %v846, 4294901760
    %v1134 = vsub.f32 %v846, %v1133
    %1135 = vmatmul.f32.gmra.mxu0 %v1134
    %v1136 = vpop.f32.mrf.mxu0
    %v1137 = vadd.f32 %v1106, %v1136
    %1138 = vdwg.mxu0
    %1139 = vmatpush.msra.mxu0 0.0
    %1140 = vmatpush.msra.mxu0 0.0
    %1141 = vmatpush.msra.mxu0 0.0
    %1142 = vmatpush.msra.mxu0 0.0
    %1143 = vmatpush.msra.mxu0 0.0
    %1144 = vmatpush.msra.mxu0 0.0
    %1145 = vmatpush.msra.mxu0 0.0
    %1146 = vmatpush.msra.mxu0 0.0
    %1147 = vmatpush.msra.mxu0 0.0
    %1148 = vmatpush.msra.mxu0 0.0
    %1149 = vmatpush.msra.mxu0 0.0
    %1150 = vmatpush.msra.mxu0 0.0
    %1151 = vmatpush.msra.mxu0 0.0
    %1152 = vmatpush.msra.mxu0 0.0
    %v1153 = vand.u32 %v829, 4294901760
    %1154 = vmatpush.msra.mxu0 %v1153
    %v1155 = vand.u32 %v825, 4294901760
    %1156 = vmatpush.msra.mxu0 %v1155
    %v1157 = vand.u32 %v843, 4294901760
    %v1158 = vsub.f32 %v843, %v1157
    %v1159 = vand.u32 %v1158, 4294901760
    %1160 = vmatmul.f32.gmra.mxu0 %v1159
    %v1161 = vpop.f32.mrf.mxu0
    %v1162 = vadd.f32 %v1132, %v1161
    %v1163 = vand.u32 %v846, 4294901760
    %v1164 = vsub.f32 %v846, %v1163
    %v1165 = vand.u32 %v1164, 4294901760
    %1166 = vmatmul.f32.gmra.mxu0 %v1165
    %v1167 = vpop.f32.mrf.mxu0
    %v1168 = vadd.f32 %v1137, %v1167
    %1169 = vdwg.mxu0
    %1170 = vmatpush.msra.mxu0 0.0
    %1171 = vmatpush.msra.mxu0 0.0
    %1172 = vmatpush.msra.mxu0 0.0
    %1173 = vmatpush.msra.mxu0 0.0
    %1174 = vmatpush.msra.mxu0 0.0
    %1175 = vmatpush.msra.mxu0 0.0
    %1176 = vmatpush.msra.mxu0 0.0
    %1177 = vmatpush.msra.mxu0 0.0
    %1178 = vmatpush.msra.mxu0 0.0
    %1179 = vmatpush.msra.mxu0 0.0
    %1180 = vmatpush.msra.mxu0 0.0
    %1181 = vmatpush.msra.mxu0 0.0
    %1182 = vmatpush.msra.mxu0 0.0
    %1183 = vmatpush.msra.mxu0 0.0
    %v1184 = vand.u32 %v829, 4294901760
    %v1185 = vsub.f32 %v829, %v1184
    %v1186 = vand.u32 %v1185, 4294901760
    %1187 = vmatpush.msra.mxu0 %v1186
    %v1188 = vand.u32 %v825, 4294901760
    %v1189 = vsub.f32 %v825, %v1188
    %v1190 = vand.u32 %v1189, 4294901760
    %1191 = vmatpush.msra.mxu0 %v1190
    %v1192 = vand.u32 %v843, 4294901760
    %1193 = vmatmul.f32.gmra.mxu0 %v1192
    %v1194 = vpop.f32.mrf.mxu0
    %v1195 = vadd.f32 %v1162, %v1194
    %v1196 = vand.u32 %v846, 4294901760
    %1197 = vmatmul.f32.gmra.mxu0 %v1196
    %v1198 = vpop.f32.mrf.mxu0
    %v1199 = vadd.f32 %v1168, %v1198
    %1200 = vdwg.mxu0
    %1201 = vmatpush.msra.mxu0 0.0
    %1202 = vmatpush.msra.mxu0 0.0
    %1203 = vmatpush.msra.mxu0 0.0
    %1204 = vmatpush.msra.mxu0 0.0
    %1205 = vmatpush.msra.mxu0 0.0
    %1206 = vmatpush.msra.mxu0 0.0
    %1207 = vmatpush.msra.mxu0 0.0
    %1208 = vmatpush.msra.mxu0 0.0
    %1209 = vmatpush.msra.mxu0 0.0
    %1210 = vmatpush.msra.mxu0 0.0
    %1211 = vmatpush.msra.mxu0 0.0
    %1212 = vmatpush.msra.mxu0 0.0
    %1213 = vmatpush.msra.mxu0 0.0
    %1214 = vmatpush.msra.mxu0 0.0
    %v1215 = vand.u32 %v829, 4294901760
    %1216 = vmatpush.msra.mxu0 %v1215
    %v1217 = vand.u32 %v825, 4294901760
    %1218 = vmatpush.msra.mxu0 %v1217
    %v1219 = vand.u32 %v843, 4294901760
    %1220 = vmatmul.f32.gmra.mxu0 %v1219
    %v1221 = vpop.f32.mrf.mxu0
    %v1222 = vadd.f32 %v1195, %v1221
    %v1223 = vand.u32 %v846, 4294901760
    %1224 = vmatmul.f32.gmra.mxu0 %v1223
    %v1225 = vpop.f32.mrf.mxu0
    %v1226 = vadd.f32 %v1199, %v1225
    %1227 = vdwg.mxu0
    %1228 = vmatpush.msra.mxu0 0.0
    %1229 = vmatpush.msra.mxu0 0.0
    %1230 = vmatpush.msra.mxu0 0.0
    %1231 = vmatpush.msra.mxu0 0.0
    %1232 = vmatpush.msra.mxu0 0.0
    %1233 = vmatpush.msra.mxu0 0.0
    %1234 = vmatpush.msra.mxu0 0.0
    %1235 = vmatpush.msra.mxu0 0.0
    %1236 = vmatpush.msra.mxu0 0.0
    %1237 = vmatpush.msra.mxu0 0.0
    %1238 = vmatpush.msra.mxu0 0.0
    %1239 = vmatpush.msra.mxu0 0.0
    %1240 = vmatpush.msra.mxu0 0.0
    %1241 = vmatpush.msra.mxu0 0.0
    %v1242 = vand.u32 %v830, 4294901760
    %1243 = vmatpush.msra.mxu0 %v1242
    %v1244 = vand.u32 %v826, 4294901760
    %1245 = vmatpush.msra.mxu0 %v1244
    %v1246 = vand.u32 %v843, 4294901760
    %v1247 = vsub.f32 %v843, %v1246
    %v1248 = vand.u32 %v1247, 4294901760
    %v1249 = vsub.f32 %v1247, %v1248
    %v1250 = vand.u32 %v1249, 4294901760
    %1251 = vmatmul.f32.gmra.mxu0 %v1250
    %v1252 = vpop.f32.mrf.mxu0
    %v1253 = vadd.f32 %v835, %v1252
    %v1254 = vand.u32 %v846, 4294901760
    %v1255 = vsub.f32 %v846, %v1254
    %v1256 = vand.u32 %v1255, 4294901760
    %v1257 = vsub.f32 %v1255, %v1256
    %v1258 = vand.u32 %v1257, 4294901760
    %1259 = vmatmul.f32.gmra.mxu0 %v1258
    %v1260 = vpop.f32.mrf.mxu0
    %v1261 = vadd.f32 %v840, %v1260
    %1262 = vdwg.mxu0
    %1263 = vmatpush.msra.mxu0 0.0
    %1264 = vmatpush.msra.mxu0 0.0
    %1265 = vmatpush.msra.mxu0 0.0
    %1266 = vmatpush.msra.mxu0 0.0
    %1267 = vmatpush.msra.mxu0 0.0
    %1268 = vmatpush.msra.mxu0 0.0
    %1269 = vmatpush.msra.mxu0 0.0
    %1270 = vmatpush.msra.mxu0 0.0
    %1271 = vmatpush.msra.mxu0 0.0
    %1272 = vmatpush.msra.mxu0 0.0
    %1273 = vmatpush.msra.mxu0 0.0
    %1274 = vmatpush.msra.mxu0 0.0
    %1275 = vmatpush.msra.mxu0 0.0
    %1276 = vmatpush.msra.mxu0 0.0
    %v1277 = vand.u32 %v830, 4294901760
    %v1278 = vsub.f32 %v830, %v1277
    %v1279 = vand.u32 %v1278, 4294901760
    %v1280 = vsub.f32 %v1278, %v1279
    %v1281 = vand.u32 %v1280, 4294901760
    %1282 = vmatpush.msra.mxu0 %v1281
    %v1283 = vand.u32 %v826, 4294901760
    %v1284 = vsub.f32 %v826, %v1283
    %v1285 = vand.u32 %v1284, 4294901760
    %v1286 = vsub.f32 %v1284, %v1285
    %v1287 = vand.u32 %v1286, 4294901760
    %1288 = vmatpush.msra.mxu0 %v1287
    %v1289 = vand.u32 %v843, 4294901760
    %1290 = vmatmul.f32.gmra.mxu0 %v1289
    %v1291 = vpop.f32.mrf.mxu0
    %v1292 = vadd.f32 %v1253, %v1291
    %v1293 = vand.u32 %v846, 4294901760
    %1294 = vmatmul.f32.gmra.mxu0 %v1293
    %v1295 = vpop.f32.mrf.mxu0
    %v1296 = vadd.f32 %v1261, %v1295
    %1297 = vdwg.mxu0
    %1298 = vmatpush.msra.mxu0 0.0
    %1299 = vmatpush.msra.mxu0 0.0
    %1300 = vmatpush.msra.mxu0 0.0
    %1301 = vmatpush.msra.mxu0 0.0
    %1302 = vmatpush.msra.mxu0 0.0
    %1303 = vmatpush.msra.mxu0 0.0
    %1304 = vmatpush.msra.mxu0 0.0
    %1305 = vmatpush.msra.mxu0 0.0
    %1306 = vmatpush.msra.mxu0 0.0
    %1307 = vmatpush.msra.mxu0 0.0
    %1308 = vmatpush.msra.mxu0 0.0
    %1309 = vmatpush.msra.mxu0 0.0
    %1310 = vmatpush.msra.mxu0 0.0
    %1311 = vmatpush.msra.mxu0 0.0
    %v1312 = vand.u32 %v830, 4294901760
    %v1313 = vsub.f32 %v830, %v1312
    %1314 = vmatpush.msra.mxu0 %v1313
    %v1315 = vand.u32 %v826, 4294901760
    %v1316 = vsub.f32 %v826, %v1315
    %1317 = vmatpush.msra.mxu0 %v1316
    %v1318 = vand.u32 %v843, 4294901760
    %v1319 = vsub.f32 %v843, %v1318
    %1320 = vmatmul.f32.gmra.mxu0 %v1319
    %v1321 = vpop.f32.mrf.mxu0
    %v1322 = vadd.f32 %v1292, %v1321
    %v1323 = vand.u32 %v846, 4294901760
    %v1324 = vsub.f32 %v846, %v1323
    %1325 = vmatmul.f32.gmra.mxu0 %v1324
    %v1326 = vpop.f32.mrf.mxu0
    %v1327 = vadd.f32 %v1296, %v1326
    %1328 = vdwg.mxu0
    %1329 = vmatpush.msra.mxu0 0.0
    %1330 = vmatpush.msra.mxu0 0.0
    %1331 = vmatpush.msra.mxu0 0.0
    %1332 = vmatpush.msra.mxu0 0.0
    %1333 = vmatpush.msra.mxu0 0.0
    %1334 = vmatpush.msra.mxu0 0.0
    %1335 = vmatpush.msra.mxu0 0.0
    %1336 = vmatpush.msra.mxu0 0.0
    %1337 = vmatpush.msra.mxu0 0.0
    %1338 = vmatpush.msra.mxu0 0.0
    %1339 = vmatpush.msra.mxu0 0.0
    %1340 = vmatpush.msra.mxu0 0.0
    %1341 = vmatpush.msra.mxu0 0.0
    %1342 = vmatpush.msra.mxu0 0.0
    %v1343 = vand.u32 %v830, 4294901760
    %1344 = vmatpush.msra.mxu0 %v1343
    %v1345 = vand.u32 %v826, 4294901760
    %1346 = vmatpush.msra.mxu0 %v1345
    %v1347 = vand.u32 %v843, 4294901760
    %v1348 = vsub.f32 %v843, %v1347
    %v1349 = vand.u32 %v1348, 4294901760
    %1350 = vmatmul.f32.gmra.mxu0 %v1349
    %v1351 = vpop.f32.mrf.mxu0
    %v1352 = vadd.f32 %v1322, %v1351
    %v1353 = vand.u32 %v846, 4294901760
    %v1354 = vsub.f32 %v846, %v1353
    %v1355 = vand.u32 %v1354, 4294901760
    %1356 = vmatmul.f32.gmra.mxu0 %v1355
    %v1357 = vpop.f32.mrf.mxu0
    %v1358 = vadd.f32 %v1327, %v1357
    %1359 = vdwg.mxu0
    %1360 = vmatpush.msra.mxu0 0.0
    %1361 = vmatpush.msra.mxu0 0.0
    %1362 = vmatpush.msra.mxu0 0.0
    %1363 = vmatpush.msra.mxu0 0.0
    %1364 = vmatpush.msra.mxu0 0.0
    %1365 = vmatpush.msra.mxu0 0.0
    %1366 = vmatpush.msra.mxu0 0.0
    %1367 = vmatpush.msra.mxu0 0.0
    %1368 = vmatpush.msra.mxu0 0.0
    %1369 = vmatpush.msra.mxu0 0.0
    %1370 = vmatpush.msra.mxu0 0.0
    %1371 = vmatpush.msra.mxu0 0.0
    %1372 = vmatpush.msra.mxu0 0.0
    %1373 = vmatpush.msra.mxu0 0.0
    %v1374 = vand.u32 %v830, 4294901760
    %v1375 = vsub.f32 %v830, %v1374
    %v1376 = vand.u32 %v1375, 4294901760
    %1377 = vmatpush.msra.mxu0 %v1376
    %v1378 = vand.u32 %v826, 4294901760
    %v1379 = vsub.f32 %v826, %v1378
    %v1380 = vand.u32 %v1379, 4294901760
    %1381 = vmatpush.msra.mxu0 %v1380
    %v1382 = vand.u32 %v843, 4294901760
    %1383 = vmatmul.f32.gmra.mxu0 %v1382
    %v1384 = vpop.f32.mrf.mxu0
    %v1385 = vadd.f32 %v1352, %v1384
    %v1386 = vand.u32 %v846, 4294901760
    %1387 = vmatmul.f32.gmra.mxu0 %v1386
    %v1388 = vpop.f32.mrf.mxu0
    %v1389 = vadd.f32 %v1358, %v1388
    %1390 = vdwg.mxu0
    %1391 = vmatpush.msra.mxu0 0.0
    %1392 = vmatpush.msra.mxu0 0.0
    %1393 = vmatpush.msra.mxu0 0.0
    %1394 = vmatpush.msra.mxu0 0.0
    %1395 = vmatpush.msra.mxu0 0.0
    %1396 = vmatpush.msra.mxu0 0.0
    %1397 = vmatpush.msra.mxu0 0.0
    %1398 = vmatpush.msra.mxu0 0.0
    %1399 = vmatpush.msra.mxu0 0.0
    %1400 = vmatpush.msra.mxu0 0.0
    %1401 = vmatpush.msra.mxu0 0.0
    %1402 = vmatpush.msra.mxu0 0.0
    %1403 = vmatpush.msra.mxu0 0.0
    %1404 = vmatpush.msra.mxu0 0.0
    %v1405 = vand.u32 %v830, 4294901760
    %1406 = vmatpush.msra.mxu0 %v1405
    %v1407 = vand.u32 %v826, 4294901760
    %1408 = vmatpush.msra.mxu0 %v1407
    %v1409 = vand.u32 %v843, 4294901760
    %1410 = vmatmul.f32.gmra.mxu0 %v1409
    %v1411 = vpop.f32.mrf.mxu0
    %v1412 = vadd.f32 %v1385, %v1411
    %v1413 = vand.u32 %v846, 4294901760
    %1414 = vmatmul.f32.gmra.mxu0 %v1413
    %v1415 = vpop.f32.mrf.mxu0
    %v1416 = vadd.f32 %v1389, %v1415
    %1417 = vdwg.mxu0
    %1418 = vmatpush.msra.mxu0 0.0
    %1419 = vmatpush.msra.mxu0 0.0
    %1420 = vmatpush.msra.mxu0 0.0
    %1421 = vmatpush.msra.mxu0 0.0
    %1422 = vmatpush.msra.mxu0 0.0
    %1423 = vmatpush.msra.mxu0 0.0
    %1424 = vmatpush.msra.mxu0 0.0
    %1425 = vmatpush.msra.mxu0 0.0
    %1426 = vmatpush.msra.mxu0 0.0
    %1427 = vmatpush.msra.mxu0 0.0
    %1428 = vmatpush.msra.mxu0 0.0
    %1429 = vmatpush.msra.mxu0 0.0
    %1430 = vmatpush.msra.mxu0 0.0
    %1431 = vmatpush.msra.mxu0 0.0
    %v1432 = vand.u32 %v831, 4294901760
    %1433 = vmatpush.msra.mxu0 %v1432
    %v1434 = vand.u32 %v827, 4294901760
    %1435 = vmatpush.msra.mxu0 %v1434
    %v1436 = vand.u32 %v843, 4294901760
    %v1437 = vsub.f32 %v843, %v1436
    %v1438 = vand.u32 %v1437, 4294901760
    %v1439 = vsub.f32 %v1437, %v1438
    %v1440 = vand.u32 %v1439, 4294901760
    %1441 = vmatmul.f32.gmra.mxu0 %v1440
    %v1442 = vpop.f32.mrf.mxu0
    %v1443 = vadd.f32 %v835, %v1442
    %v1444 = vand.u32 %v846, 4294901760
    %v1445 = vsub.f32 %v846, %v1444
    %v1446 = vand.u32 %v1445, 4294901760
    %v1447 = vsub.f32 %v1445, %v1446
    %v1448 = vand.u32 %v1447, 4294901760
    %1449 = vmatmul.f32.gmra.mxu0 %v1448
    %v1450 = vpop.f32.mrf.mxu0
    %v1451 = vadd.f32 %v840, %v1450
    %1452 = vdwg.mxu0
    %1453 = vmatpush.msra.mxu0 0.0
    %1454 = vmatpush.msra.mxu0 0.0
    %1455 = vmatpush.msra.mxu0 0.0
    %1456 = vmatpush.msra.mxu0 0.0
    %1457 = vmatpush.msra.mxu0 0.0
    %1458 = vmatpush.msra.mxu0 0.0
    %1459 = vmatpush.msra.mxu0 0.0
    %1460 = vmatpush.msra.mxu0 0.0
    %1461 = vmatpush.msra.mxu0 0.0
    %1462 = vmatpush.msra.mxu0 0.0
    %1463 = vmatpush.msra.mxu0 0.0
    %1464 = vmatpush.msra.mxu0 0.0
    %1465 = vmatpush.msra.mxu0 0.0
    %1466 = vmatpush.msra.mxu0 0.0
    %v1467 = vand.u32 %v831, 4294901760
    %v1468 = vsub.f32 %v831, %v1467
    %v1469 = vand.u32 %v1468, 4294901760
    %v1470 = vsub.f32 %v1468, %v1469
    %v1471 = vand.u32 %v1470, 4294901760
    %1472 = vmatpush.msra.mxu0 %v1471
    %v1473 = vand.u32 %v827, 4294901760
    %v1474 = vsub.f32 %v827, %v1473
    %v1475 = vand.u32 %v1474, 4294901760
    %v1476 = vsub.f32 %v1474, %v1475
    %v1477 = vand.u32 %v1476, 4294901760
    %1478 = vmatpush.msra.mxu0 %v1477
    %v1479 = vand.u32 %v843, 4294901760
    %1480 = vmatmul.f32.gmra.mxu0 %v1479
    %v1481 = vpop.f32.mrf.mxu0
    %v1482 = vadd.f32 %v1443, %v1481
    %v1483 = vand.u32 %v846, 4294901760
    %1484 = vmatmul.f32.gmra.mxu0 %v1483
    %v1485 = vpop.f32.mrf.mxu0
    %v1486 = vadd.f32 %v1451, %v1485
    %1487 = vdwg.mxu0
    %1488 = vmatpush.msra.mxu0 0.0
    %1489 = vmatpush.msra.mxu0 0.0
    %1490 = vmatpush.msra.mxu0 0.0
    %1491 = vmatpush.msra.mxu0 0.0
    %1492 = vmatpush.msra.mxu0 0.0
    %1493 = vmatpush.msra.mxu0 0.0
    %1494 = vmatpush.msra.mxu0 0.0
    %1495 = vmatpush.msra.mxu0 0.0
    %1496 = vmatpush.msra.mxu0 0.0
    %1497 = vmatpush.msra.mxu0 0.0
    %1498 = vmatpush.msra.mxu0 0.0
    %1499 = vmatpush.msra.mxu0 0.0
    %1500 = vmatpush.msra.mxu0 0.0
    %1501 = vmatpush.msra.mxu0 0.0
    %v1502 = vand.u32 %v831, 4294901760
    %v1503 = vsub.f32 %v831, %v1502
    %1504 = vmatpush.msra.mxu0 %v1503
    %v1505 = vand.u32 %v827, 4294901760
    %v1506 = vsub.f32 %v827, %v1505
    %1507 = vmatpush.msra.mxu0 %v1506
    %v1508 = vand.u32 %v843, 4294901760
    %v1509 = vsub.f32 %v843, %v1508
    %1510 = vmatmul.f32.gmra.mxu0 %v1509
    %v1511 = vpop.f32.mrf.mxu0
    %v1512 = vadd.f32 %v1482, %v1511
    %v1513 = vand.u32 %v846, 4294901760
    %v1514 = vsub.f32 %v846, %v1513
    %1515 = vmatmul.f32.gmra.mxu0 %v1514
    %v1516 = vpop.f32.mrf.mxu0
    %v1517 = vadd.f32 %v1486, %v1516
    %1518 = vdwg.mxu0
    %1519 = vmatpush.msra.mxu0 0.0
    %1520 = vmatpush.msra.mxu0 0.0
    %1521 = vmatpush.msra.mxu0 0.0
    %1522 = vmatpush.msra.mxu0 0.0
    %1523 = vmatpush.msra.mxu0 0.0
    %1524 = vmatpush.msra.mxu0 0.0
    %1525 = vmatpush.msra.mxu0 0.0
    %1526 = vmatpush.msra.mxu0 0.0
    %1527 = vmatpush.msra.mxu0 0.0
    %1528 = vmatpush.msra.mxu0 0.0
    %1529 = vmatpush.msra.mxu0 0.0
    %1530 = vmatpush.msra.mxu0 0.0
    %1531 = vmatpush.msra.mxu0 0.0
    %1532 = vmatpush.msra.mxu0 0.0
    %v1533 = vand.u32 %v831, 4294901760
    %1534 = vmatpush.msra.mxu0 %v1533
    %v1535 = vand.u32 %v827, 4294901760
    %1536 = vmatpush.msra.mxu0 %v1535
    %v1537 = vand.u32 %v843, 4294901760
    %v1538 = vsub.f32 %v843, %v1537
    %v1539 = vand.u32 %v1538, 4294901760
    %1540 = vmatmul.f32.gmra.mxu0 %v1539
    %v1541 = vpop.f32.mrf.mxu0
    %v1542 = vadd.f32 %v1512, %v1541
    %v1543 = vand.u32 %v846, 4294901760
    %v1544 = vsub.f32 %v846, %v1543
    %v1545 = vand.u32 %v1544, 4294901760
    %1546 = vmatmul.f32.gmra.mxu0 %v1545
    %v1547 = vpop.f32.mrf.mxu0
    %v1548 = vadd.f32 %v1517, %v1547
    %1549 = vdwg.mxu0
    %1550 = vmatpush.msra.mxu0 0.0
    %1551 = vmatpush.msra.mxu0 0.0
    %1552 = vmatpush.msra.mxu0 0.0
    %1553 = vmatpush.msra.mxu0 0.0
    %1554 = vmatpush.msra.mxu0 0.0
    %1555 = vmatpush.msra.mxu0 0.0
    %1556 = vmatpush.msra.mxu0 0.0
    %1557 = vmatpush.msra.mxu0 0.0
    %1558 = vmatpush.msra.mxu0 0.0
    %1559 = vmatpush.msra.mxu0 0.0
    %1560 = vmatpush.msra.mxu0 0.0
    %1561 = vmatpush.msra.mxu0 0.0
    %1562 = vmatpush.msra.mxu0 0.0
    %1563 = vmatpush.msra.mxu0 0.0
    %v1564 = vand.u32 %v831, 4294901760
    %v1565 = vsub.f32 %v831, %v1564
    %v1566 = vand.u32 %v1565, 4294901760
    %1567 = vmatpush.msra.mxu0 %v1566
    %v1568 = vand.u32 %v827, 4294901760
    %v1569 = vsub.f32 %v827, %v1568
    %v1570 = vand.u32 %v1569, 4294901760
    %1571 = vmatpush.msra.mxu0 %v1570
    %v1572 = vand.u32 %v843, 4294901760
    %1573 = vmatmul.f32.gmra.mxu0 %v1572
    %v1574 = vpop.f32.mrf.mxu0
    %v1575 = vadd.f32 %v1542, %v1574
    %v1576 = vand.u32 %v846, 4294901760
    %1577 = vmatmul.f32.gmra.mxu0 %v1576
    %v1578 = vpop.f32.mrf.mxu0
    %v1579 = vadd.f32 %v1548, %v1578
    %1580 = vdwg.mxu0
    %1581 = vmatpush.msra.mxu0 0.0
    %1582 = vmatpush.msra.mxu0 0.0
    %1583 = vmatpush.msra.mxu0 0.0
    %1584 = vmatpush.msra.mxu0 0.0
    %1585 = vmatpush.msra.mxu0 0.0
    %1586 = vmatpush.msra.mxu0 0.0
    %1587 = vmatpush.msra.mxu0 0.0
    %1588 = vmatpush.msra.mxu0 0.0
    %1589 = vmatpush.msra.mxu0 0.0
    %1590 = vmatpush.msra.mxu0 0.0
    %1591 = vmatpush.msra.mxu0 0.0
    %1592 = vmatpush.msra.mxu0 0.0
    %1593 = vmatpush.msra.mxu0 0.0
    %1594 = vmatpush.msra.mxu0 0.0
    %v1595 = vand.u32 %v831, 4294901760
    %1596 = vmatpush.msra.mxu0 %v1595
    %v1597 = vand.u32 %v827, 4294901760
    %1598 = vmatpush.msra.mxu0 %v1597
    %v1599 = vand.u32 %v843, 4294901760
    %1600 = vmatmul.f32.gmra.mxu0 %v1599
    %v1601 = vpop.f32.mrf.mxu0
    %v1602 = vadd.f32 %v1575, %v1601
    %v1603 = vand.u32 %v846, 4294901760
    %1604 = vmatmul.f32.gmra.mxu0 %v1603
    %v1605 = vpop.f32.mrf.mxu0
    %v1606 = vadd.f32 %v1579, %v1605
    %1607 = vdwg.mxu0
    %v1612 = vrot.slane %v1032, 4
    %v1613 = vrot.slane %v1222, 4
    %v1614 = vrot.slane %v1412, 4
    %v1615 = vrot.slane %v1602, 4
    %v1620 = vadd.f32 %v1032, %v1612
    %v1621 = vadd.f32 %v1222, %v1613
    %v1622 = vadd.f32 %v1412, %v1614
    %v1623 = vadd.f32 %v1602, %v1615
    %v1624 = vadd.f32 %v1620, %v1036
    %v1625 = vadd.f32 %v1621, %v1226
    %v1626 = vadd.f32 %v1622, %v1416
    %v1627 = vadd.f32 %v1623, %v1606
    %v1632 = vrot.slane %v1036, 4
    %v1633 = vrot.slane %v1226, 4
    %v1634 = vrot.slane %v1416, 4
    %v1635 = vrot.slane %v1606, 4
    %v1640 = vadd.f32 %v1624, %v1632
    %v1641 = vadd.f32 %v1625, %v1633
    %v1642 = vadd.f32 %v1626, %v1634
    %v1643 = vadd.f32 %v1627, %v1635
    %v1644 = vmul.f32 %v1640, 0.25
    %v1645 = vmul.f32 %v1641, 0.25
    %v1646 = vmul.f32 %v1642, 0.25
    %v1647 = vmul.f32 %v1643, 0.25
    %v1648 = vsub.f32 %v1032, %v1644
    %v1649 = vsub.f32 %v1222, %v1645
    %v1650 = vsub.f32 %v1412, %v1646
    %v1651 = vsub.f32 %v1602, %v1647
    %v1656 = vrot.slane %v1644, 4
    %v1657 = vrot.slane %v1645, 4
    %v1658 = vrot.slane %v1646, 4
    %v1659 = vrot.slane %v1647, 4
    %v1664 = vsub.f32 %v1032, %v1656
    %v1665 = vsub.f32 %v1222, %v1657
    %v1666 = vsub.f32 %v1412, %v1658
    %v1667 = vsub.f32 %v1602, %v1659
    %v1668 = vsub.f32 %v1036, %v1644
    %v1669 = vsub.f32 %v1226, %v1645
    %v1670 = vsub.f32 %v1416, %v1646
    %v1671 = vsub.f32 %v1606, %v1647
    %v1672 = vsub.f32 %v1036, %v1656
    %v1673 = vsub.f32 %v1226, %v1657
    %v1674 = vsub.f32 %v1416, %v1658
    %v1675 = vsub.f32 %v1606, %v1659
    %v1676 = vmul.f32 %v1648, %v1648
    %v1677 = vmul.f32 %v1649, %v1649
    %v1678 = vmul.f32 %v1650, %v1650
    %v1679 = vmul.f32 %v1651, %v1651
    %v1680 = vmul.f32 %v1664, %v1664
    %v1681 = vmul.f32 %v1665, %v1665
    %v1682 = vmul.f32 %v1666, %v1666
    %v1683 = vmul.f32 %v1667, %v1667
    %v1688 = vrot.slane %v1680, 4
    %v1689 = vrot.slane %v1681, 4
    %v1690 = vrot.slane %v1682, 4
    %v1691 = vrot.slane %v1683, 4
    %v1696 = vadd.f32 %v1676, %v1688
    %v1697 = vadd.f32 %v1677, %v1689
    %v1698 = vadd.f32 %v1678, %v1690
    %v1699 = vadd.f32 %v1679, %v1691
    %v1700 = vmul.f32 %v1668, %v1668
    %v1701 = vmul.f32 %v1669, %v1669
    %v1702 = vmul.f32 %v1670, %v1670
    %v1703 = vmul.f32 %v1671, %v1671
    %v1704 = vadd.f32 %v1696, %v1700
    %v1705 = vadd.f32 %v1697, %v1701
    %v1706 = vadd.f32 %v1698, %v1702
    %v1707 = vadd.f32 %v1699, %v1703
    %v1708 = vmul.f32 %v1672, %v1672
    %v1709 = vmul.f32 %v1673, %v1673
    %v1710 = vmul.f32 %v1674, %v1674
    %v1711 = vmul.f32 %v1675, %v1675
    %v1716 = vrot.slane %v1708, 4
    %v1717 = vrot.slane %v1709, 4
    %v1718 = vrot.slane %v1710, 4
    %v1719 = vrot.slane %v1711, 4
    %v1724 = vadd.f32 %v1704, %v1716
    %v1725 = vadd.f32 %v1705, %v1717
    %v1726 = vadd.f32 %v1706, %v1718
    %v1727 = vadd.f32 %v1707, %v1719
    %v1728 = vmul.f32 %v1724, 0.25
    %v1729 = vmul.f32 %v1725, 0.25
    %v1730 = vmul.f32 %v1726, 0.25
    %v1731 = vmul.f32 %v1727, 0.25
    %v1732 = vadd.f32 %v1728, 1e-06
    %v1733 = vadd.f32 %v1729, 1e-06
    %v1734 = vadd.f32 %v1730, 1e-06
    %v1735 = vadd.f32 %v1731, 1e-06
    %v1736 = vrsqrt.pop %v1732
    %v1737 = vmul.f32 %v1736, %v1732
    %v1738 = vmul.f32 %v1737, %v1736
    %v1739 = vmul.f32 0.5, %v1738
    %v1740 = vsub.f32 1.5, %v1739
    %v1741 = vmul.f32 %v1736, %v1740
    %vm1742 = vweird.f32 %v1732
    %vm1743 = vweird.f32 %v1736
    %vm1744 = vmor %vm1742, %vm1743
    %v1745 = vsel %vm1744, %v1736, %v1741
    %v1746 = vrsqrt.pop %v1733
    %v1747 = vmul.f32 %v1746, %v1733
    %v1748 = vmul.f32 %v1747, %v1746
    %v1749 = vmul.f32 0.5, %v1748
    %v1750 = vsub.f32 1.5, %v1749
    %v1751 = vmul.f32 %v1746, %v1750
    %vm1752 = vweird.f32 %v1733
    %vm1753 = vweird.f32 %v1746
    %vm1754 = vmor %vm1752, %vm1753
    %v1755 = vsel %vm1754, %v1746, %v1751
    %v1756 = vrsqrt.pop %v1734
    %v1757 = vmul.f32 %v1756, %v1734
    %v1758 = vmul.f32 %v1757, %v1756
    %v1759 = vmul.f32 0.5, %v1758
    %v1760 = vsub.f32 1.5, %v1759
    %v1761 = vmul.f32 %v1756, %v1760
    %vm1762 = vweird.f32 %v1734
    %vm1763 = vweird.f32 %v1756
    %vm1764 = vmor %vm1762, %vm1763
    %v1765 = vsel %vm1764, %v1756, %v1761
    %v1766 = vrsqrt.pop %v1735
    %v1767 = vmul.f32 %v1766, %v1735
    %v1768 = vmul.f32 %v1767, %v1766
    %v1769 = vmul.f32 0.5, %v1768
    %v1770 = vsub.f32 1.5, %v1769
    %v1771 = vmul.f32 %v1766, %v1770
    %vm1772 = vweird.f32 %v1735
    %vm1773 = vweird.f32 %v1766
    %vm1774 = vmor %vm1772, %vm1773
    %v1775 = vsel %vm1774, %v1766, %v1771
    %v1776 = vmul.f32 %v1648, %v1745
    %v1777 = vmul.f32 %v1649, %v1755
    %v1778 = vmul.f32 %v1650, %v1765
    %v1779 = vmul.f32 %v1651, %v1775
    %v1784 = vrot.slane %v1745, 4
    %v1785 = vrot.slane %v1755, 4
    %v1786 = vrot.slane %v1765, 4
    %v1787 = vrot.slane %v1775, 4
    %v1792 = vmul.f32 %v1664, %v1784
    %v1793 = vmul.f32 %v1665, %v1785
    %v1794 = vmul.f32 %v1666, %v1786
    %v1795 = vmul.f32 %v1667, %v1787
    %v1796 = vmul.f32 %v1668, %v1745
    %v1797 = vmul.f32 %v1669, %v1755
    %v1798 = vmul.f32 %v1670, %v1765
    %v1799 = vmul.f32 %v1671, %v1775
    %v1800 = vmul.f32 %v1672, %v1784
    %v1801 = vmul.f32 %v1673, %v1785
    %v1802 = vmul.f32 %v1674, %v1786
    %v1803 = vmul.f32 %v1675, %v1787
    %vm1804 = vcmask 1043456
    %v1805 = vsel %vm1804, %v1776, %v1792
    %v1806 = vsel %vm1804, %v1777, %v1793
    %v1807 = vsel %vm1804, %v1778, %v1794
    %v1808 = vsel %vm1804, %v1779, %v1795
    %v1809 = vsel %vm1804, %v1796, %v1800
    %v1810 = vsel %vm1804, %v1797, %v1801
    %v1811 = vsel %vm1804, %v1798, %v1802
    %v1812 = vsel %vm1804, %v1799, %v1803
    %1813 = vset.pattern.permute.xlu0 1
    %1814 = vperm.xlu0 %1813, %v820
    %v1815 = vpop.permute.xlu0 %1814
    %1817 = vset.pattern.permute.xlu0 1
    %1818 = vperm.xlu0 %1817, %v821
    %v1819 = vpop.permute.xlu0 %1818
    %v1821 = vmul.f32 %v1815, %v1805
    %v1822 = vmul.f32 %v1815, %v1806
    %v1823 = vmul.f32 %v1815, %v1807
    %v1824 = vmul.f32 %v1815, %v1808
    %v1825 = vmul.f32 %v1819, %v1809
    %v1826 = vmul.f32 %v1819, %v1810
    %v1827 = vmul.f32 %v1819, %v1811
    %v1828 = vmul.f32 %v1819, %v1812
    %1829 = vset.pattern.permute.xlu0 2
    %1830 = vperm.xlu0 %1829, %v820
    %v1831 = vpop.permute.xlu0 %1830
    %1833 = vset.pattern.permute.xlu0 2
    %1834 = vperm.xlu0 %1833, %v821
    %v1835 = vpop.permute.xlu0 %1834
    %v1837 = vadd.f32 %v1821, %v1831
    %v1838 = vadd.f32 %v1822, %v1831
    %v1839 = vadd.f32 %v1823, %v1831
    %v1840 = vadd.f32 %v1824, %v1831
    %v1841 = vadd.f32 %v1825, %v1835
    %v1842 = vadd.f32 %v1826, %v1835
    %v1843 = vadd.f32 %v1827, %v1835
    %v1844 = vadd.f32 %v1828, %v1835
    %v1845 = vmul.f32 %v1837, 0.70710677
    %v1846 = vmul.f32 %v1838, 0.70710677
    %v1847 = vmul.f32 %v1839, 0.70710677
    %v1848 = vmul.f32 %v1840, 0.70710677
    %v1849 = vmul.f32 %v1841, 0.70710677
    %v1850 = vmul.f32 %v1842, 0.70710677
    %v1851 = vmul.f32 %v1843, 0.70710677
    %v1852 = vmul.f32 %v1844, 0.70710677
    %v1853 = vand.u32 2147483647, %v1845
    %v1854 = vand.u32 2147483647, %v1846
    %v1855 = vand.u32 2147483647, %v1847
    %v1856 = vand.u32 2147483647, %v1848
    %v1857 = vand.u32 2147483647, %v1849
    %v1858 = vand.u32 2147483647, %v1850
    %v1859 = vand.u32 2147483647, %v1851
    %v1860 = vand.u32 2147483647, %v1852
    %vm1861 = vcmp.ge.f32.partialorder %v1845, 0.0
    %vm1862 = vcmp.ge.f32.partialorder %v1846, 0.0
    %vm1863 = vcmp.ge.f32.partialorder %v1847, 0.0
    %vm1864 = vcmp.ge.f32.partialorder %v1848, 0.0
    %vm1865 = vcmp.ge.f32.partialorder %v1849, 0.0
    %vm1866 = vcmp.ge.f32.partialorder %v1850, 0.0
    %vm1867 = vcmp.ge.f32.partialorder %v1851, 0.0
    %vm1868 = vcmp.ge.f32.partialorder %v1852, 0.0
    %v1869 = vsel %vm1861, 1.0, -1.0
    %v1870 = vsel %vm1862, 1.0, -1.0
    %v1871 = vsel %vm1863, 1.0, -1.0
    %v1872 = vsel %vm1864, 1.0, -1.0
    %v1873 = vsel %vm1865, 1.0, -1.0
    %v1874 = vsel %vm1866, 1.0, -1.0
    %v1875 = vsel %vm1867, 1.0, -1.0
    %v1876 = vsel %vm1868, 1.0, -1.0
    %v1877 = vmul.f32 %v1853, 0.3275911
    %v1878 = vmul.f32 %v1854, 0.3275911
    %v1879 = vmul.f32 %v1855, 0.3275911
    %v1880 = vmul.f32 %v1856, 0.3275911
    %v1881 = vmul.f32 %v1857, 0.3275911
    %v1882 = vmul.f32 %v1858, 0.3275911
    %v1883 = vmul.f32 %v1859, 0.3275911
    %v1884 = vmul.f32 %v1860, 0.3275911
    %v1885 = vadd.f32 %v1877, 1.0
    %v1886 = vadd.f32 %v1878, 1.0
    %v1887 = vadd.f32 %v1879, 1.0
    %v1888 = vadd.f32 %v1880, 1.0
    %v1889 = vadd.f32 %v1881, 1.0
    %v1890 = vadd.f32 %v1882, 1.0
    %v1891 = vadd.f32 %v1883, 1.0
    %v1892 = vadd.f32 %v1884, 1.0
    %v1893 = vrcp.pop %v1885
    %v1894 = vrcp.pop %v1886
    %v1895 = vrcp.pop %v1887
    %v1896 = vrcp.pop %v1888
    %v1897 = vrcp.pop %v1889
    %v1898 = vrcp.pop %v1890
    %v1899 = vrcp.pop %v1891
    %v1900 = vrcp.pop %v1892
    %v1901 = vmul.f32 %v1893, 1.0614054
    %v1902 = vmul.f32 %v1894, 1.0614054
    %v1903 = vmul.f32 %v1895, 1.0614054
    %v1904 = vmul.f32 %v1896, 1.0614054
    %v1905 = vmul.f32 %v1897, 1.0614054
    %v1906 = vmul.f32 %v1898, 1.0614054
    %v1907 = vmul.f32 %v1899, 1.0614054
    %v1908 = vmul.f32 %v1900, 1.0614054
    %v1909 = vadd.f32 %v1901, -1.4531521
    %v1910 = vadd.f32 %v1902, -1.4531521
    %v1911 = vadd.f32 %v1903, -1.4531521
    %v1912 = vadd.f32 %v1904, -1.4531521
    %v1913 = vadd.f32 %v1905, -1.4531521
    %v1914 = vadd.f32 %v1906, -1.4531521
    %v1915 = vadd.f32 %v1907, -1.4531521
    %v1916 = vadd.f32 %v1908, -1.4531521
    %v1917 = vmul.f32 %v1909, %v1893
    %v1918 = vmul.f32 %v1910, %v1894
    %v1919 = vmul.f32 %v1911, %v1895
    %v1920 = vmul.f32 %v1912, %v1896
    %v1921 = vmul.f32 %v1913, %v1897
    %v1922 = vmul.f32 %v1914, %v1898
    %v1923 = vmul.f32 %v1915, %v1899
    %v1924 = vmul.f32 %v1916, %v1900
    %v1925 = vadd.f32 %v1917, 1.4214138
    %v1926 = vadd.f32 %v1918, 1.4214138
    %v1927 = vadd.f32 %v1919, 1.4214138
    %v1928 = vadd.f32 %v1920, 1.4214138
    %v1929 = vadd.f32 %v1921, 1.4214138
    %v1930 = vadd.f32 %v1922, 1.4214138
    %v1931 = vadd.f32 %v1923, 1.4214138
    %v1932 = vadd.f32 %v1924, 1.4214138
    %v1933 = vmul.f32 %v1925, %v1893
    %v1934 = vmul.f32 %v1926, %v1894
    %v1935 = vmul.f32 %v1927, %v1895
    %v1936 = vmul.f32 %v1928, %v1896
    %v1937 = vmul.f32 %v1929, %v1897
    %v1938 = vmul.f32 %v1930, %v1898
    %v1939 = vmul.f32 %v1931, %v1899
    %v1940 = vmul.f32 %v1932, %v1900
    %v1941 = vadd.f32 %v1933, -0.28449672
    %v1942 = vadd.f32 %v1934, -0.28449672
    %v1943 = vadd.f32 %v1935, -0.28449672
    %v1944 = vadd.f32 %v1936, -0.28449672
    %v1945 = vadd.f32 %v1937, -0.28449672
    %v1946 = vadd.f32 %v1938, -0.28449672
    %v1947 = vadd.f32 %v1939, -0.28449672
    %v1948 = vadd.f32 %v1940, -0.28449672
    %v1949 = vmul.f32 %v1941, %v1893
    %v1950 = vmul.f32 %v1942, %v1894
    %v1951 = vmul.f32 %v1943, %v1895
    %v1952 = vmul.f32 %v1944, %v1896
    %v1953 = vmul.f32 %v1945, %v1897
    %v1954 = vmul.f32 %v1946, %v1898
    %v1955 = vmul.f32 %v1947, %v1899
    %v1956 = vmul.f32 %v1948, %v1900
    %v1957 = vadd.f32 %v1949, 0.2548296
    %v1958 = vadd.f32 %v1950, 0.2548296
    %v1959 = vadd.f32 %v1951, 0.2548296
    %v1960 = vadd.f32 %v1952, 0.2548296
    %v1961 = vadd.f32 %v1953, 0.2548296
    %v1962 = vadd.f32 %v1954, 0.2548296
    %v1963 = vadd.f32 %v1955, 0.2548296
    %v1964 = vadd.f32 %v1956, 0.2548296
    %v1965 = vmul.f32 %v1957, %v1893
    %v1966 = vmul.f32 %v1958, %v1894
    %v1967 = vmul.f32 %v1959, %v1895
    %v1968 = vmul.f32 %v1960, %v1896
    %v1969 = vmul.f32 %v1961, %v1897
    %v1970 = vmul.f32 %v1962, %v1898
    %v1971 = vmul.f32 %v1963, %v1899
    %v1972 = vmul.f32 %v1964, %v1900
    %v1973 = vsub.f32 0.0, %v1853
    %v1974 = vsub.f32 0.0, %v1854
    %v1975 = vsub.f32 0.0, %v1855
    %v1976 = vsub.f32 0.0, %v1856
    %v1977 = vsub.f32 0.0, %v1857
    %v1978 = vsub.f32 0.0, %v1858
    %v1979 = vsub.f32 0.0, %v1859
    %v1980 = vsub.f32 0.0, %v1860
    %v1981 = vmul.f32 %v1973, %v1853
    %v1982 = vmul.f32 %v1974, %v1854
    %v1983 = vmul.f32 %v1975, %v1855
    %v1984 = vmul.f32 %v1976, %v1856
    %v1985 = vmul.f32 %v1977, %v1857
    %v1986 = vmul.f32 %v1978, %v1858
    %v1987 = vmul.f32 %v1979, %v1859
    %v1988 = vmul.f32 %v1980, %v1860
    %v1989 = vmul.f32 %v1981, 1.442695
    %v1990 = vpow.pop %v1989
    %v1991 = vmul.f32 %v1982, 1.442695
    %v1992 = vpow.pop %v1991
    %v1993 = vmul.f32 %v1983, 1.442695
    %v1994 = vpow.pop %v1993
    %v1995 = vmul.f32 %v1984, 1.442695
    %v1996 = vpow.pop %v1995
    %v1997 = vmul.f32 %v1985, 1.442695
    %v1998 = vpow.pop %v1997
    %v1999 = vmul.f32 %v1986, 1.442695
    %v2000 = vpow.pop %v1999
    %v2001 = vmul.f32 %v1987, 1.442695
    %v2002 = vpow.pop %v2001
    %v2003 = vmul.f32 %v1988, 1.442695
    %v2004 = vpow.pop %v2003
    %v2005 = vmul.f32 %v1965, %v1990
    %v2006 = vmul.f32 %v1966, %v1992
    %v2007 = vmul.f32 %v1967, %v1994
    %v2008 = vmul.f32 %v1968, %v1996
    %v2009 = vmul.f32 %v1969, %v1998
    %v2010 = vmul.f32 %v1970, %v2000
    %v2011 = vmul.f32 %v1971, %v2002
    %v2012 = vmul.f32 %v1972, %v2004
    %v2013 = vsub.f32 1.0, %v2005
    %v2014 = vsub.f32 1.0, %v2006
    %v2015 = vsub.f32 1.0, %v2007
    %v2016 = vsub.f32 1.0, %v2008
    %v2017 = vsub.f32 1.0, %v2009
    %v2018 = vsub.f32 1.0, %v2010
    %v2019 = vsub.f32 1.0, %v2011
    %v2020 = vsub.f32 1.0, %v2012
    %v2021 = vmul.f32 %v1869, %v2013
    %v2022 = vmul.f32 %v1870, %v2014
    %v2023 = vmul.f32 %v1871, %v2015
    %v2024 = vmul.f32 %v1872, %v2016
    %v2025 = vmul.f32 %v1873, %v2017
    %v2026 = vmul.f32 %v1874, %v2018
    %v2027 = vmul.f32 %v1875, %v2019
    %v2028 = vmul.f32 %v1876, %v2020
    %v2029 = vmul.f32 %v1837, 0.5
    %v2030 = vmul.f32 %v1838, 0.5
    %v2031 = vmul.f32 %v1839, 0.5
    %v2032 = vmul.f32 %v1840, 0.5
    %v2033 = vmul.f32 %v1841, 0.5
    %v2034 = vmul.f32 %v1842, 0.5
    %v2035 = vmul.f32 %v1843, 0.5
    %v2036 = vmul.f32 %v1844, 0.5
    %v2037 = vadd.f32 %v2021, 1.0
    %v2038 = vadd.f32 %v2022, 1.0
    %v2039 = vadd.f32 %v2023, 1.0
    %v2040 = vadd.f32 %v2024, 1.0
    %v2041 = vadd.f32 %v2025, 1.0
    %v2042 = vadd.f32 %v2026, 1.0
    %v2043 = vadd.f32 %v2027, 1.0
    %v2044 = vadd.f32 %v2028, 1.0
    %v2045 = vmul.f32 %v2029, %v2037
    %v2046 = vmul.f32 %v2030, %v2038
    %v2047 = vmul.f32 %v2031, %v2039
    %v2048 = vmul.f32 %v2032, %v2040
    %v2049 = vmul.f32 %v2033, %v2041
    %v2050 = vmul.f32 %v2034, %v2042
    %v2051 = vmul.f32 %v2035, %v2043
    %v2052 = vmul.f32 %v2036, %v2044
    %2053 = vset.pattern.permute.xlu0 3
    %2054 = vperm.xlu0 %2053, %v820
    %v2055 = vpop.permute.xlu0 %2054
    %2057 = vset.pattern.permute.xlu0 3
    %2058 = vperm.xlu0 %2057, %v821
    %v2059 = vpop.permute.xlu0 %2058
    %v2062 = vsel %vm478, %v814, 0
    %v2065 = vsel %vm478, %v815, 0
    %2067 = vmatpush.msra.mxu0 0.0
    %2068 = vmatpush.msra.mxu0 0.0
    %2069 = vmatpush.msra.mxu0 0.0
    %2070 = vmatpush.msra.mxu0 0.0
    %2071 = vmatpush.msra.mxu0 0.0
    %2072 = vmatpush.msra.mxu0 0.0
    %2073 = vmatpush.msra.mxu0 0.0
    %2074 = vmatpush.msra.mxu0 0.0
    %2075 = vmatpush.msra.mxu0 0.0
    %2076 = vmatpush.msra.mxu0 0.0
    %2077 = vmatpush.msra.mxu0 0.0
    %2078 = vmatpush.msra.mxu0 0.0
    %2079 = vmatpush.msra.mxu0 0.0
    %2080 = vmatpush.msra.mxu0 0.0
    %v2081 = vand.u32 %v2049, 4294901760
    %2082 = vmatpush.msra.mxu0 %v2081
    %v2083 = vand.u32 %v2045, 4294901760
    %2084 = vmatpush.msra.mxu0 %v2083
    %v2085 = vand.u32 %v2062, 4294901760
    %v2086 = vsub.f32 %v2062, %v2085
    %v2087 = vand.u32 %v2086, 4294901760
    %v2088 = vsub.f32 %v2086, %v2087
    %v2089 = vand.u32 %v2088, 4294901760
    %2090 = vmatmul.f32.gmra.mxu0 %v2089
    %v2091 = vpop.f32.mrf.mxu0
    %v2092 = vadd.f32 %v2055, %v2091
    %v2093 = vand.u32 %v2065, 4294901760
    %v2094 = vsub.f32 %v2065, %v2093
    %v2095 = vand.u32 %v2094, 4294901760
    %v2096 = vsub.f32 %v2094, %v2095
    %v2097 = vand.u32 %v2096, 4294901760
    %2098 = vmatmul.f32.gmra.mxu0 %v2097
    %v2099 = vpop.f32.mrf.mxu0
    %v2100 = vadd.f32 %v2059, %v2099
    %2101 = vdwg.mxu0
    %2102 = vmatpush.msra.mxu0 0.0
    %2103 = vmatpush.msra.mxu0 0.0
    %2104 = vmatpush.msra.mxu0 0.0
    %2105 = vmatpush.msra.mxu0 0.0
    %2106 = vmatpush.msra.mxu0 0.0
    %2107 = vmatpush.msra.mxu0 0.0
    %2108 = vmatpush.msra.mxu0 0.0
    %2109 = vmatpush.msra.mxu0 0.0
    %2110 = vmatpush.msra.mxu0 0.0
    %2111 = vmatpush.msra.mxu0 0.0
    %2112 = vmatpush.msra.mxu0 0.0
    %2113 = vmatpush.msra.mxu0 0.0
    %2114 = vmatpush.msra.mxu0 0.0
    %2115 = vmatpush.msra.mxu0 0.0
    %v2116 = vand.u32 %v2049, 4294901760
    %v2117 = vsub.f32 %v2049, %v2116
    %v2118 = vand.u32 %v2117, 4294901760
    %v2119 = vsub.f32 %v2117, %v2118
    %v2120 = vand.u32 %v2119, 4294901760
    %2121 = vmatpush.msra.mxu0 %v2120
    %v2122 = vand.u32 %v2045, 4294901760
    %v2123 = vsub.f32 %v2045, %v2122
    %v2124 = vand.u32 %v2123, 4294901760
    %v2125 = vsub.f32 %v2123, %v2124
    %v2126 = vand.u32 %v2125, 4294901760
    %2127 = vmatpush.msra.mxu0 %v2126
    %v2128 = vand.u32 %v2062, 4294901760
    %2129 = vmatmul.f32.gmra.mxu0 %v2128
    %v2130 = vpop.f32.mrf.mxu0
    %v2131 = vadd.f32 %v2092, %v2130
    %v2132 = vand.u32 %v2065, 4294901760
    %2133 = vmatmul.f32.gmra.mxu0 %v2132
    %v2134 = vpop.f32.mrf.mxu0
    %v2135 = vadd.f32 %v2100, %v2134
    %2136 = vdwg.mxu0
    %2137 = vmatpush.msra.mxu0 0.0
    %2138 = vmatpush.msra.mxu0 0.0
    %2139 = vmatpush.msra.mxu0 0.0
    %2140 = vmatpush.msra.mxu0 0.0
    %2141 = vmatpush.msra.mxu0 0.0
    %2142 = vmatpush.msra.mxu0 0.0
    %2143 = vmatpush.msra.mxu0 0.0
    %2144 = vmatpush.msra.mxu0 0.0
    %2145 = vmatpush.msra.mxu0 0.0
    %2146 = vmatpush.msra.mxu0 0.0
    %2147 = vmatpush.msra.mxu0 0.0
    %2148 = vmatpush.msra.mxu0 0.0
    %2149 = vmatpush.msra.mxu0 0.0
    %2150 = vmatpush.msra.mxu0 0.0
    %v2151 = vand.u32 %v2049, 4294901760
    %v2152 = vsub.f32 %v2049, %v2151
    %2153 = vmatpush.msra.mxu0 %v2152
    %v2154 = vand.u32 %v2045, 4294901760
    %v2155 = vsub.f32 %v2045, %v2154
    %2156 = vmatpush.msra.mxu0 %v2155
    %v2157 = vand.u32 %v2062, 4294901760
    %v2158 = vsub.f32 %v2062, %v2157
    %2159 = vmatmul.f32.gmra.mxu0 %v2158
    %v2160 = vpop.f32.mrf.mxu0
    %v2161 = vadd.f32 %v2131, %v2160
    %v2162 = vand.u32 %v2065, 4294901760
    %v2163 = vsub.f32 %v2065, %v2162
    %2164 = vmatmul.f32.gmra.mxu0 %v2163
    %v2165 = vpop.f32.mrf.mxu0
    %v2166 = vadd.f32 %v2135, %v2165
    %2167 = vdwg.mxu0
    %2168 = vmatpush.msra.mxu0 0.0
    %2169 = vmatpush.msra.mxu0 0.0
    %2170 = vmatpush.msra.mxu0 0.0
    %2171 = vmatpush.msra.mxu0 0.0
    %2172 = vmatpush.msra.mxu0 0.0
    %2173 = vmatpush.msra.mxu0 0.0
    %2174 = vmatpush.msra.mxu0 0.0
    %2175 = vmatpush.msra.mxu0 0.0
    %2176 = vmatpush.msra.mxu0 0.0
    %2177 = vmatpush.msra.mxu0 0.0
    %2178 = vmatpush.msra.mxu0 0.0
    %2179 = vmatpush.msra.mxu0 0.0
    %2180 = vmatpush.msra.mxu0 0.0
    %2181 = vmatpush.msra.mxu0 0.0
    %v2182 = vand.u32 %v2049, 4294901760
    %2183 = vmatpush.msra.mxu0 %v2182
    %v2184 = vand.u32 %v2045, 4294901760
    %2185 = vmatpush.msra.mxu0 %v2184
    %v2186 = vand.u32 %v2062, 4294901760
    %v2187 = vsub.f32 %v2062, %v2186
    %v2188 = vand.u32 %v2187, 4294901760
    %2189 = vmatmul.f32.gmra.mxu0 %v2188
    %v2190 = vpop.f32.mrf.mxu0
    %v2191 = vadd.f32 %v2161, %v2190
    %v2192 = vand.u32 %v2065, 4294901760
    %v2193 = vsub.f32 %v2065, %v2192
    %v2194 = vand.u32 %v2193, 4294901760
    %2195 = vmatmul.f32.gmra.mxu0 %v2194
    %v2196 = vpop.f32.mrf.mxu0
    %v2197 = vadd.f32 %v2166, %v2196
    %2198 = vdwg.mxu0
    %2199 = vmatpush.msra.mxu0 0.0
    %2200 = vmatpush.msra.mxu0 0.0
    %2201 = vmatpush.msra.mxu0 0.0
    %2202 = vmatpush.msra.mxu0 0.0
    %2203 = vmatpush.msra.mxu0 0.0
    %2204 = vmatpush.msra.mxu0 0.0
    %2205 = vmatpush.msra.mxu0 0.0
    %2206 = vmatpush.msra.mxu0 0.0
    %2207 = vmatpush.msra.mxu0 0.0
    %2208 = vmatpush.msra.mxu0 0.0
    %2209 = vmatpush.msra.mxu0 0.0
    %2210 = vmatpush.msra.mxu0 0.0
    %2211 = vmatpush.msra.mxu0 0.0
    %2212 = vmatpush.msra.mxu0 0.0
    %v2213 = vand.u32 %v2049, 4294901760
    %v2214 = vsub.f32 %v2049, %v2213
    %v2215 = vand.u32 %v2214, 4294901760
    %2216 = vmatpush.msra.mxu0 %v2215
    %v2217 = vand.u32 %v2045, 4294901760
    %v2218 = vsub.f32 %v2045, %v2217
    %v2219 = vand.u32 %v2218, 4294901760
    %2220 = vmatpush.msra.mxu0 %v2219
    %v2221 = vand.u32 %v2062, 4294901760
    %2222 = vmatmul.f32.gmra.mxu0 %v2221
    %v2223 = vpop.f32.mrf.mxu0
    %v2224 = vadd.f32 %v2191, %v2223
    %v2225 = vand.u32 %v2065, 4294901760
    %2226 = vmatmul.f32.gmra.mxu0 %v2225
    %v2227 = vpop.f32.mrf.mxu0
    %v2228 = vadd.f32 %v2197, %v2227
    %2229 = vdwg.mxu0
    %2230 = vmatpush.msra.mxu0 0.0
    %2231 = vmatpush.msra.mxu0 0.0
    %2232 = vmatpush.msra.mxu0 0.0
    %2233 = vmatpush.msra.mxu0 0.0
    %2234 = vmatpush.msra.mxu0 0.0
    %2235 = vmatpush.msra.mxu0 0.0
    %2236 = vmatpush.msra.mxu0 0.0
    %2237 = vmatpush.msra.mxu0 0.0
    %2238 = vmatpush.msra.mxu0 0.0
    %2239 = vmatpush.msra.mxu0 0.0
    %2240 = vmatpush.msra.mxu0 0.0
    %2241 = vmatpush.msra.mxu0 0.0
    %2242 = vmatpush.msra.mxu0 0.0
    %2243 = vmatpush.msra.mxu0 0.0
    %v2244 = vand.u32 %v2049, 4294901760
    %2245 = vmatpush.msra.mxu0 %v2244
    %v2246 = vand.u32 %v2045, 4294901760
    %2247 = vmatpush.msra.mxu0 %v2246
    %v2248 = vand.u32 %v2062, 4294901760
    %2249 = vmatmul.f32.gmra.mxu0 %v2248
    %v2250 = vpop.f32.mrf.mxu0
    %v2251 = vadd.f32 %v2224, %v2250
    %v2252 = vand.u32 %v2065, 4294901760
    %2253 = vmatmul.f32.gmra.mxu0 %v2252
    %v2254 = vpop.f32.mrf.mxu0
    %v2255 = vadd.f32 %v2228, %v2254
    %2256 = vdwg.mxu0
    %2257 = vmatpush.msra.mxu0 0.0
    %2258 = vmatpush.msra.mxu0 0.0
    %2259 = vmatpush.msra.mxu0 0.0
    %2260 = vmatpush.msra.mxu0 0.0
    %2261 = vmatpush.msra.mxu0 0.0
    %2262 = vmatpush.msra.mxu0 0.0
    %2263 = vmatpush.msra.mxu0 0.0
    %2264 = vmatpush.msra.mxu0 0.0
    %2265 = vmatpush.msra.mxu0 0.0
    %2266 = vmatpush.msra.mxu0 0.0
    %2267 = vmatpush.msra.mxu0 0.0
    %2268 = vmatpush.msra.mxu0 0.0
    %2269 = vmatpush.msra.mxu0 0.0
    %2270 = vmatpush.msra.mxu0 0.0
    %v2271 = vand.u32 %v2050, 4294901760
    %2272 = vmatpush.msra.mxu0 %v2271
    %v2273 = vand.u32 %v2046, 4294901760
    %2274 = vmatpush.msra.mxu0 %v2273
    %v2275 = vand.u32 %v2062, 4294901760
    %v2276 = vsub.f32 %v2062, %v2275
    %v2277 = vand.u32 %v2276, 4294901760
    %v2278 = vsub.f32 %v2276, %v2277
    %v2279 = vand.u32 %v2278, 4294901760
    %2280 = vmatmul.f32.gmra.mxu0 %v2279
    %v2281 = vpop.f32.mrf.mxu0
    %v2282 = vadd.f32 %v2055, %v2281
    %v2283 = vand.u32 %v2065, 4294901760
    %v2284 = vsub.f32 %v2065, %v2283
    %v2285 = vand.u32 %v2284, 4294901760
    %v2286 = vsub.f32 %v2284, %v2285
    %v2287 = vand.u32 %v2286, 4294901760
    %2288 = vmatmul.f32.gmra.mxu0 %v2287
    %v2289 = vpop.f32.mrf.mxu0
    %v2290 = vadd.f32 %v2059, %v2289
    %2291 = vdwg.mxu0
    %2292 = vmatpush.msra.mxu0 0.0
    %2293 = vmatpush.msra.mxu0 0.0
    %2294 = vmatpush.msra.mxu0 0.0
    %2295 = vmatpush.msra.mxu0 0.0
    %2296 = vmatpush.msra.mxu0 0.0
    %2297 = vmatpush.msra.mxu0 0.0
    %2298 = vmatpush.msra.mxu0 0.0
    %2299 = vmatpush.msra.mxu0 0.0
    %2300 = vmatpush.msra.mxu0 0.0
    %2301 = vmatpush.msra.mxu0 0.0
    %2302 = vmatpush.msra.mxu0 0.0
    %2303 = vmatpush.msra.mxu0 0.0
    %2304 = vmatpush.msra.mxu0 0.0
    %2305 = vmatpush.msra.mxu0 0.0
    %v2306 = vand.u32 %v2050, 4294901760
    %v2307 = vsub.f32 %v2050, %v2306
    %v2308 = vand.u32 %v2307, 4294901760
    %v2309 = vsub.f32 %v2307, %v2308
    %v2310 = vand.u32 %v2309, 4294901760
    %2311 = vmatpush.msra.mxu0 %v2310
    %v2312 = vand.u32 %v2046, 4294901760
    %v2313 = vsub.f32 %v2046, %v2312
    %v2314 = vand.u32 %v2313, 4294901760
    %v2315 = vsub.f32 %v2313, %v2314
    %v2316 = vand.u32 %v2315, 4294901760
    %2317 = vmatpush.msra.mxu0 %v2316
    %v2318 = vand.u32 %v2062, 4294901760
    %2319 = vmatmul.f32.gmra.mxu0 %v2318
    %v2320 = vpop.f32.mrf.mxu0
    %v2321 = vadd.f32 %v2282, %v2320
    %v2322 = vand.u32 %v2065, 4294901760
    %2323 = vmatmul.f32.gmra.mxu0 %v2322
    %v2324 = vpop.f32.mrf.mxu0
    %v2325 = vadd.f32 %v2290, %v2324
    %2326 = vdwg.mxu0
    %2327 = vmatpush.msra.mxu0 0.0
    %2328 = vmatpush.msra.mxu0 0.0
    %2329 = vmatpush.msra.mxu0 0.0
    %2330 = vmatpush.msra.mxu0 0.0
    %2331 = vmatpush.msra.mxu0 0.0
    %2332 = vmatpush.msra.mxu0 0.0
    %2333 = vmatpush.msra.mxu0 0.0
    %2334 = vmatpush.msra.mxu0 0.0
    %2335 = vmatpush.msra.mxu0 0.0
    %2336 = vmatpush.msra.mxu0 0.0
    %2337 = vmatpush.msra.mxu0 0.0
    %2338 = vmatpush.msra.mxu0 0.0
    %2339 = vmatpush.msra.mxu0 0.0
    %2340 = vmatpush.msra.mxu0 0.0
    %v2341 = vand.u32 %v2050, 4294901760
    %v2342 = vsub.f32 %v2050, %v2341
    %2343 = vmatpush.msra.mxu0 %v2342
    %v2344 = vand.u32 %v2046, 4294901760
    %v2345 = vsub.f32 %v2046, %v2344
    %2346 = vmatpush.msra.mxu0 %v2345
    %v2347 = vand.u32 %v2062, 4294901760
    %v2348 = vsub.f32 %v2062, %v2347
    %2349 = vmatmul.f32.gmra.mxu0 %v2348
    %v2350 = vpop.f32.mrf.mxu0
    %v2351 = vadd.f32 %v2321, %v2350
    %v2352 = vand.u32 %v2065, 4294901760
    %v2353 = vsub.f32 %v2065, %v2352
    %2354 = vmatmul.f32.gmra.mxu0 %v2353
    %v2355 = vpop.f32.mrf.mxu0
    %v2356 = vadd.f32 %v2325, %v2355
    %2357 = vdwg.mxu0
    %2358 = vmatpush.msra.mxu0 0.0
    %2359 = vmatpush.msra.mxu0 0.0
    %2360 = vmatpush.msra.mxu0 0.0
    %2361 = vmatpush.msra.mxu0 0.0
    %2362 = vmatpush.msra.mxu0 0.0
    %2363 = vmatpush.msra.mxu0 0.0
    %2364 = vmatpush.msra.mxu0 0.0
    %2365 = vmatpush.msra.mxu0 0.0
    %2366 = vmatpush.msra.mxu0 0.0
    %2367 = vmatpush.msra.mxu0 0.0
    %2368 = vmatpush.msra.mxu0 0.0
    %2369 = vmatpush.msra.mxu0 0.0
    %2370 = vmatpush.msra.mxu0 0.0
    %2371 = vmatpush.msra.mxu0 0.0
    %v2372 = vand.u32 %v2050, 4294901760
    %2373 = vmatpush.msra.mxu0 %v2372
    %v2374 = vand.u32 %v2046, 4294901760
    %2375 = vmatpush.msra.mxu0 %v2374
    %v2376 = vand.u32 %v2062, 4294901760
    %v2377 = vsub.f32 %v2062, %v2376
    %v2378 = vand.u32 %v2377, 4294901760
    %2379 = vmatmul.f32.gmra.mxu0 %v2378
    %v2380 = vpop.f32.mrf.mxu0
    %v2381 = vadd.f32 %v2351, %v2380
    %v2382 = vand.u32 %v2065, 4294901760
    %v2383 = vsub.f32 %v2065, %v2382
    %v2384 = vand.u32 %v2383, 4294901760
    %2385 = vmatmul.f32.gmra.mxu0 %v2384
    %v2386 = vpop.f32.mrf.mxu0
    %v2387 = vadd.f32 %v2356, %v2386
    %2388 = vdwg.mxu0
    %2389 = vmatpush.msra.mxu0 0.0
    %2390 = vmatpush.msra.mxu0 0.0
    %2391 = vmatpush.msra.mxu0 0.0
    %2392 = vmatpush.msra.mxu0 0.0
    %2393 = vmatpush.msra.mxu0 0.0
    %2394 = vmatpush.msra.mxu0 0.0
    %2395 = vmatpush.msra.mxu0 0.0
    %2396 = vmatpush.msra.mxu0 0.0
    %2397 = vmatpush.msra.mxu0 0.0
    %2398 = vmatpush.msra.mxu0 0.0
    %2399 = vmatpush.msra.mxu0 0.0
    %2400 = vmatpush.msra.mxu0 0.0
    %2401 = vmatpush.msra.mxu0 0.0
    %2402 = vmatpush.msra.mxu0 0.0
    %v2403 = vand.u32 %v2050, 4294901760
    %v2404 = vsub.f32 %v2050, %v2403
    %v2405 = vand.u32 %v2404, 4294901760
    %2406 = vmatpush.msra.mxu0 %v2405
    %v2407 = vand.u32 %v2046, 4294901760
    %v2408 = vsub.f32 %v2046, %v2407
    %v2409 = vand.u32 %v2408, 4294901760
    %2410 = vmatpush.msra.mxu0 %v2409
    %v2411 = vand.u32 %v2062, 4294901760
    %2412 = vmatmul.f32.gmra.mxu0 %v2411
    %v2413 = vpop.f32.mrf.mxu0
    %v2414 = vadd.f32 %v2381, %v2413
    %v2415 = vand.u32 %v2065, 4294901760
    %2416 = vmatmul.f32.gmra.mxu0 %v2415
    %v2417 = vpop.f32.mrf.mxu0
    %v2418 = vadd.f32 %v2387, %v2417
    %2419 = vdwg.mxu0
    %2420 = vmatpush.msra.mxu0 0.0
    %2421 = vmatpush.msra.mxu0 0.0
    %2422 = vmatpush.msra.mxu0 0.0
    %2423 = vmatpush.msra.mxu0 0.0
    %2424 = vmatpush.msra.mxu0 0.0
    %2425 = vmatpush.msra.mxu0 0.0
    %2426 = vmatpush.msra.mxu0 0.0
    %2427 = vmatpush.msra.mxu0 0.0
    %2428 = vmatpush.msra.mxu0 0.0
    %2429 = vmatpush.msra.mxu0 0.0
    %2430 = vmatpush.msra.mxu0 0.0
    %2431 = vmatpush.msra.mxu0 0.0
    %2432 = vmatpush.msra.mxu0 0.0
    %2433 = vmatpush.msra.mxu0 0.0
    %v2434 = vand.u32 %v2050, 4294901760
    %2435 = vmatpush.msra.mxu0 %v2434
    %v2436 = vand.u32 %v2046, 4294901760
    %2437 = vmatpush.msra.mxu0 %v2436
    %v2438 = vand.u32 %v2062, 4294901760
    %2439 = vmatmul.f32.gmra.mxu0 %v2438
    %v2440 = vpop.f32.mrf.mxu0
    %v2441 = vadd.f32 %v2414, %v2440
    %v2442 = vand.u32 %v2065, 4294901760
    %2443 = vmatmul.f32.gmra.mxu0 %v2442
    %v2444 = vpop.f32.mrf.mxu0
    %v2445 = vadd.f32 %v2418, %v2444
    %2446 = vdwg.mxu0
    %2447 = vmatpush.msra.mxu0 0.0
    %2448 = vmatpush.msra.mxu0 0.0
    %2449 = vmatpush.msra.mxu0 0.0
    %2450 = vmatpush.msra.mxu0 0.0
    %2451 = vmatpush.msra.mxu0 0.0
    %2452 = vmatpush.msra.mxu0 0.0
    %2453 = vmatpush.msra.mxu0 0.0
    %2454 = vmatpush.msra.mxu0 0.0
    %2455 = vmatpush.msra.mxu0 0.0
    %2456 = vmatpush.msra.mxu0 0.0
    %2457 = vmatpush.msra.mxu0 0.0
    %2458 = vmatpush.msra.mxu0 0.0
    %2459 = vmatpush.msra.mxu0 0.0
    %2460 = vmatpush.msra.mxu0 0.0
    %v2461 = vand.u32 %v2051, 4294901760
    %2462 = vmatpush.msra.mxu0 %v2461
    %v2463 = vand.u32 %v2047, 4294901760
    %2464 = vmatpush.msra.mxu0 %v2463
    %v2465 = vand.u32 %v2062, 4294901760
    %v2466 = vsub.f32 %v2062, %v2465
    %v2467 = vand.u32 %v2466, 4294901760
    %v2468 = vsub.f32 %v2466, %v2467
    %v2469 = vand.u32 %v2468, 4294901760
    %2470 = vmatmul.f32.gmra.mxu0 %v2469
    %v2471 = vpop.f32.mrf.mxu0
    %v2472 = vadd.f32 %v2055, %v2471
    %v2473 = vand.u32 %v2065, 4294901760
    %v2474 = vsub.f32 %v2065, %v2473
    %v2475 = vand.u32 %v2474, 4294901760
    %v2476 = vsub.f32 %v2474, %v2475
    %v2477 = vand.u32 %v2476, 4294901760
    %2478 = vmatmul.f32.gmra.mxu0 %v2477
    %v2479 = vpop.f32.mrf.mxu0
    %v2480 = vadd.f32 %v2059, %v2479
    %2481 = vdwg.mxu0
    %2482 = vmatpush.msra.mxu0 0.0
    %2483 = vmatpush.msra.mxu0 0.0
    %2484 = vmatpush.msra.mxu0 0.0
    %2485 = vmatpush.msra.mxu0 0.0
    %2486 = vmatpush.msra.mxu0 0.0
    %2487 = vmatpush.msra.mxu0 0.0
    %2488 = vmatpush.msra.mxu0 0.0
    %2489 = vmatpush.msra.mxu0 0.0
    %2490 = vmatpush.msra.mxu0 0.0
    %2491 = vmatpush.msra.mxu0 0.0
    %2492 = vmatpush.msra.mxu0 0.0
    %2493 = vmatpush.msra.mxu0 0.0
    %2494 = vmatpush.msra.mxu0 0.0
    %2495 = vmatpush.msra.mxu0 0.0
    %v2496 = vand.u32 %v2051, 4294901760
    %v2497 = vsub.f32 %v2051, %v2496
    %v2498 = vand.u32 %v2497, 4294901760
    %v2499 = vsub.f32 %v2497, %v2498
    %v2500 = vand.u32 %v2499, 4294901760
    %2501 = vmatpush.msra.mxu0 %v2500
    %v2502 = vand.u32 %v2047, 4294901760
    %v2503 = vsub.f32 %v2047, %v2502
    %v2504 = vand.u32 %v2503, 4294901760
    %v2505 = vsub.f32 %v2503, %v2504
    %v2506 = vand.u32 %v2505, 4294901760
    %2507 = vmatpush.msra.mxu0 %v2506
    %v2508 = vand.u32 %v2062, 4294901760
    %2509 = vmatmul.f32.gmra.mxu0 %v2508
    %v2510 = vpop.f32.mrf.mxu0
    %v2511 = vadd.f32 %v2472, %v2510
    %v2512 = vand.u32 %v2065, 4294901760
    %2513 = vmatmul.f32.gmra.mxu0 %v2512
    %v2514 = vpop.f32.mrf.mxu0
    %v2515 = vadd.f32 %v2480, %v2514
    %2516 = vdwg.mxu0
    %2517 = vmatpush.msra.mxu0 0.0
    %2518 = vmatpush.msra.mxu0 0.0
    %2519 = vmatpush.msra.mxu0 0.0
    %2520 = vmatpush.msra.mxu0 0.0
    %2521 = vmatpush.msra.mxu0 0.0
    %2522 = vmatpush.msra.mxu0 0.0
    %2523 = vmatpush.msra.mxu0 0.0
    %2524 = vmatpush.msra.mxu0 0.0
    %2525 = vmatpush.msra.mxu0 0.0
    %2526 = vmatpush.msra.mxu0 0.0
    %2527 = vmatpush.msra.mxu0 0.0
    %2528 = vmatpush.msra.mxu0 0.0
    %2529 = vmatpush.msra.mxu0 0.0
    %2530 = vmatpush.msra.mxu0 0.0
    %v2531 = vand.u32 %v2051, 4294901760
    %v2532 = vsub.f32 %v2051, %v2531
    %2533 = vmatpush.msra.mxu0 %v2532
    %v2534 = vand.u32 %v2047, 4294901760
    %v2535 = vsub.f32 %v2047, %v2534
    %2536 = vmatpush.msra.mxu0 %v2535
    %v2537 = vand.u32 %v2062, 4294901760
    %v2538 = vsub.f32 %v2062, %v2537
    %2539 = vmatmul.f32.gmra.mxu0 %v2538
    %v2540 = vpop.f32.mrf.mxu0
    %v2541 = vadd.f32 %v2511, %v2540
    %v2542 = vand.u32 %v2065, 4294901760
    %v2543 = vsub.f32 %v2065, %v2542
    %2544 = vmatmul.f32.gmra.mxu0 %v2543
    %v2545 = vpop.f32.mrf.mxu0
    %v2546 = vadd.f32 %v2515, %v2545
    %2547 = vdwg.mxu0
    %2548 = vmatpush.msra.mxu0 0.0
    %2549 = vmatpush.msra.mxu0 0.0
    %2550 = vmatpush.msra.mxu0 0.0
    %2551 = vmatpush.msra.mxu0 0.0
    %2552 = vmatpush.msra.mxu0 0.0
    %2553 = vmatpush.msra.mxu0 0.0
    %2554 = vmatpush.msra.mxu0 0.0
    %2555 = vmatpush.msra.mxu0 0.0
    %2556 = vmatpush.msra.mxu0 0.0
    %2557 = vmatpush.msra.mxu0 0.0
    %2558 = vmatpush.msra.mxu0 0.0
    %2559 = vmatpush.msra.mxu0 0.0
    %2560 = vmatpush.msra.mxu0 0.0
    %2561 = vmatpush.msra.mxu0 0.0
    %v2562 = vand.u32 %v2051, 4294901760
    %2563 = vmatpush.msra.mxu0 %v2562
    %v2564 = vand.u32 %v2047, 4294901760
    %2565 = vmatpush.msra.mxu0 %v2564
    %v2566 = vand.u32 %v2062, 4294901760
    %v2567 = vsub.f32 %v2062, %v2566
    %v2568 = vand.u32 %v2567, 4294901760
    %2569 = vmatmul.f32.gmra.mxu0 %v2568
    %v2570 = vpop.f32.mrf.mxu0
    %v2571 = vadd.f32 %v2541, %v2570
    %v2572 = vand.u32 %v2065, 4294901760
    %v2573 = vsub.f32 %v2065, %v2572
    %v2574 = vand.u32 %v2573, 4294901760
    %2575 = vmatmul.f32.gmra.mxu0 %v2574
    %v2576 = vpop.f32.mrf.mxu0
    %v2577 = vadd.f32 %v2546, %v2576
    %2578 = vdwg.mxu0
    %2579 = vmatpush.msra.mxu0 0.0
    %2580 = vmatpush.msra.mxu0 0.0
    %2581 = vmatpush.msra.mxu0 0.0
    %2582 = vmatpush.msra.mxu0 0.0
    %2583 = vmatpush.msra.mxu0 0.0
    %2584 = vmatpush.msra.mxu0 0.0
    %2585 = vmatpush.msra.mxu0 0.0
    %2586 = vmatpush.msra.mxu0 0.0
    %2587 = vmatpush.msra.mxu0 0.0
    %2588 = vmatpush.msra.mxu0 0.0
    %2589 = vmatpush.msra.mxu0 0.0
    %2590 = vmatpush.msra.mxu0 0.0
    %2591 = vmatpush.msra.mxu0 0.0
    %2592 = vmatpush.msra.mxu0 0.0
    %v2593 = vand.u32 %v2051, 4294901760
    %v2594 = vsub.f32 %v2051, %v2593
    %v2595 = vand.u32 %v2594, 4294901760
    %2596 = vmatpush.msra.mxu0 %v2595
    %v2597 = vand.u32 %v2047, 4294901760
    %v2598 = vsub.f32 %v2047, %v2597
    %v2599 = vand.u32 %v2598, 4294901760
    %2600 = vmatpush.msra.mxu0 %v2599
    %v2601 = vand.u32 %v2062, 4294901760
    %2602 = vmatmul.f32.gmra.mxu0 %v2601
    %v2603 = vpop.f32.mrf.mxu0
    %v2604 = vadd.f32 %v2571, %v2603
    %v2605 = vand.u32 %v2065, 4294901760
    %2606 = vmatmul.f32.gmra.mxu0 %v2605
    %v2607 = vpop.f32.mrf.mxu0
    %v2608 = vadd.f32 %v2577, %v2607
    %2609 = vdwg.mxu0
    %2610 = vmatpush.msra.mxu0 0.0
    %2611 = vmatpush.msra.mxu0 0.0
    %2612 = vmatpush.msra.mxu0 0.0
    %2613 = vmatpush.msra.mxu0 0.0
    %2614 = vmatpush.msra.mxu0 0.0
    %2615 = vmatpush.msra.mxu0 0.0
    %2616 = vmatpush.msra.mxu0 0.0
    %2617 = vmatpush.msra.mxu0 0.0
    %2618 = vmatpush.msra.mxu0 0.0
    %2619 = vmatpush.msra.mxu0 0.0
    %2620 = vmatpush.msra.mxu0 0.0
    %2621 = vmatpush.msra.mxu0 0.0
    %2622 = vmatpush.msra.mxu0 0.0
    %2623 = vmatpush.msra.mxu0 0.0
    %v2624 = vand.u32 %v2051, 4294901760
    %2625 = vmatpush.msra.mxu0 %v2624
    %v2626 = vand.u32 %v2047, 4294901760
    %2627 = vmatpush.msra.mxu0 %v2626
    %v2628 = vand.u32 %v2062, 4294901760
    %2629 = vmatmul.f32.gmra.mxu0 %v2628
    %v2630 = vpop.f32.mrf.mxu0
    %v2631 = vadd.f32 %v2604, %v2630
    %v2632 = vand.u32 %v2065, 4294901760
    %2633 = vmatmul.f32.gmra.mxu0 %v2632
    %v2634 = vpop.f32.mrf.mxu0
    %v2635 = vadd.f32 %v2608, %v2634
    %2636 = vdwg.mxu0
    %2637 = vmatpush.msra.mxu0 0.0
    %2638 = vmatpush.msra.mxu0 0.0
    %2639 = vmatpush.msra.mxu0 0.0
    %2640 = vmatpush.msra.mxu0 0.0
    %2641 = vmatpush.msra.mxu0 0.0
    %2642 = vmatpush.msra.mxu0 0.0
    %2643 = vmatpush.msra.mxu0 0.0
    %2644 = vmatpush.msra.mxu0 0.0
    %2645 = vmatpush.msra.mxu0 0.0
    %2646 = vmatpush.msra.mxu0 0.0
    %2647 = vmatpush.msra.mxu0 0.0
    %2648 = vmatpush.msra.mxu0 0.0
    %2649 = vmatpush.msra.mxu0 0.0
    %2650 = vmatpush.msra.mxu0 0.0
    %v2651 = vand.u32 %v2052, 4294901760
    %2652 = vmatpush.msra.mxu0 %v2651
    %v2653 = vand.u32 %v2048, 4294901760
    %2654 = vmatpush.msra.mxu0 %v2653
    %v2655 = vand.u32 %v2062, 4294901760
    %v2656 = vsub.f32 %v2062, %v2655
    %v2657 = vand.u32 %v2656, 4294901760
    %v2658 = vsub.f32 %v2656, %v2657
    %v2659 = vand.u32 %v2658, 4294901760
    %2660 = vmatmul.f32.gmra.mxu0 %v2659
    %v2661 = vpop.f32.mrf.mxu0
    %v2662 = vadd.f32 %v2055, %v2661
    %v2663 = vand.u32 %v2065, 4294901760
    %v2664 = vsub.f32 %v2065, %v2663
    %v2665 = vand.u32 %v2664, 4294901760
    %v2666 = vsub.f32 %v2664, %v2665
    %v2667 = vand.u32 %v2666, 4294901760
    %2668 = vmatmul.f32.gmra.mxu0 %v2667
    %v2669 = vpop.f32.mrf.mxu0
    %v2670 = vadd.f32 %v2059, %v2669
    %2671 = vdwg.mxu0
    %2672 = vmatpush.msra.mxu0 0.0
    %2673 = vmatpush.msra.mxu0 0.0
    %2674 = vmatpush.msra.mxu0 0.0
    %2675 = vmatpush.msra.mxu0 0.0
    %2676 = vmatpush.msra.mxu0 0.0
    %2677 = vmatpush.msra.mxu0 0.0
    %2678 = vmatpush.msra.mxu0 0.0
    %2679 = vmatpush.msra.mxu0 0.0
    %2680 = vmatpush.msra.mxu0 0.0
    %2681 = vmatpush.msra.mxu0 0.0
    %2682 = vmatpush.msra.mxu0 0.0
    %2683 = vmatpush.msra.mxu0 0.0
    %2684 = vmatpush.msra.mxu0 0.0
    %2685 = vmatpush.msra.mxu0 0.0
    %v2686 = vand.u32 %v2052, 4294901760
    %v2687 = vsub.f32 %v2052, %v2686
    %v2688 = vand.u32 %v2687, 4294901760
    %v2689 = vsub.f32 %v2687, %v2688
    %v2690 = vand.u32 %v2689, 4294901760
    %2691 = vmatpush.msra.mxu0 %v2690
    %v2692 = vand.u32 %v2048, 4294901760
    %v2693 = vsub.f32 %v2048, %v2692
    %v2694 = vand.u32 %v2693, 4294901760
    %v2695 = vsub.f32 %v2693, %v2694
    %v2696 = vand.u32 %v2695, 4294901760
    %2697 = vmatpush.msra.mxu0 %v2696
    %v2698 = vand.u32 %v2062, 4294901760
    %2699 = vmatmul.f32.gmra.mxu0 %v2698
    %v2700 = vpop.f32.mrf.mxu0
    %v2701 = vadd.f32 %v2662, %v2700
    %v2702 = vand.u32 %v2065, 4294901760
    %2703 = vmatmul.f32.gmra.mxu0 %v2702
    %v2704 = vpop.f32.mrf.mxu0
    %v2705 = vadd.f32 %v2670, %v2704
    %2706 = vdwg.mxu0
    %2707 = vmatpush.msra.mxu0 0.0
    %2708 = vmatpush.msra.mxu0 0.0
    %2709 = vmatpush.msra.mxu0 0.0
    %2710 = vmatpush.msra.mxu0 0.0
    %2711 = vmatpush.msra.mxu0 0.0
    %2712 = vmatpush.msra.mxu0 0.0
    %2713 = vmatpush.msra.mxu0 0.0
    %2714 = vmatpush.msra.mxu0 0.0
    %2715 = vmatpush.msra.mxu0 0.0
    %2716 = vmatpush.msra.mxu0 0.0
    %2717 = vmatpush.msra.mxu0 0.0
    %2718 = vmatpush.msra.mxu0 0.0
    %2719 = vmatpush.msra.mxu0 0.0
    %2720 = vmatpush.msra.mxu0 0.0
    %v2721 = vand.u32 %v2052, 4294901760
    %v2722 = vsub.f32 %v2052, %v2721
    %2723 = vmatpush.msra.mxu0 %v2722
    %v2724 = vand.u32 %v2048, 4294901760
    %v2725 = vsub.f32 %v2048, %v2724
    %2726 = vmatpush.msra.mxu0 %v2725
    %v2727 = vand.u32 %v2062, 4294901760
    %v2728 = vsub.f32 %v2062, %v2727
    %2729 = vmatmul.f32.gmra.mxu0 %v2728
    %v2730 = vpop.f32.mrf.mxu0
    %v2731 = vadd.f32 %v2701, %v2730
    %v2732 = vand.u32 %v2065, 4294901760
    %v2733 = vsub.f32 %v2065, %v2732
    %2734 = vmatmul.f32.gmra.mxu0 %v2733
    %v2735 = vpop.f32.mrf.mxu0
    %v2736 = vadd.f32 %v2705, %v2735
    %2737 = vdwg.mxu0
    %2738 = vmatpush.msra.mxu0 0.0
    %2739 = vmatpush.msra.mxu0 0.0
    %2740 = vmatpush.msra.mxu0 0.0
    %2741 = vmatpush.msra.mxu0 0.0
    %2742 = vmatpush.msra.mxu0 0.0
    %2743 = vmatpush.msra.mxu0 0.0
    %2744 = vmatpush.msra.mxu0 0.0
    %2745 = vmatpush.msra.mxu0 0.0
    %2746 = vmatpush.msra.mxu0 0.0
    %2747 = vmatpush.msra.mxu0 0.0
    %2748 = vmatpush.msra.mxu0 0.0
    %2749 = vmatpush.msra.mxu0 0.0
    %2750 = vmatpush.msra.mxu0 0.0
    %2751 = vmatpush.msra.mxu0 0.0
    %v2752 = vand.u32 %v2052, 4294901760
    %2753 = vmatpush.msra.mxu0 %v2752
    %v2754 = vand.u32 %v2048, 4294901760
    %2755 = vmatpush.msra.mxu0 %v2754
    %v2756 = vand.u32 %v2062, 4294901760
    %v2757 = vsub.f32 %v2062, %v2756
    %v2758 = vand.u32 %v2757, 4294901760
    %2759 = vmatmul.f32.gmra.mxu0 %v2758
    %v2760 = vpop.f32.mrf.mxu0
    %v2761 = vadd.f32 %v2731, %v2760
    %v2762 = vand.u32 %v2065, 4294901760
    %v2763 = vsub.f32 %v2065, %v2762
    %v2764 = vand.u32 %v2763, 4294901760
    %2765 = vmatmul.f32.gmra.mxu0 %v2764
    %v2766 = vpop.f32.mrf.mxu0
    %v2767 = vadd.f32 %v2736, %v2766
    %2768 = vdwg.mxu0
    %2769 = vmatpush.msra.mxu0 0.0
    %2770 = vmatpush.msra.mxu0 0.0
    %2771 = vmatpush.msra.mxu0 0.0
    %2772 = vmatpush.msra.mxu0 0.0
    %2773 = vmatpush.msra.mxu0 0.0
    %2774 = vmatpush.msra.mxu0 0.0
    %2775 = vmatpush.msra.mxu0 0.0
    %2776 = vmatpush.msra.mxu0 0.0
    %2777 = vmatpush.msra.mxu0 0.0
    %2778 = vmatpush.msra.mxu0 0.0
    %2779 = vmatpush.msra.mxu0 0.0
    %2780 = vmatpush.msra.mxu0 0.0
    %2781 = vmatpush.msra.mxu0 0.0
    %2782 = vmatpush.msra.mxu0 0.0
    %v2783 = vand.u32 %v2052, 4294901760
    %v2784 = vsub.f32 %v2052, %v2783
    %v2785 = vand.u32 %v2784, 4294901760
    %2786 = vmatpush.msra.mxu0 %v2785
    %v2787 = vand.u32 %v2048, 4294901760
    %v2788 = vsub.f32 %v2048, %v2787
    %v2789 = vand.u32 %v2788, 4294901760
    %2790 = vmatpush.msra.mxu0 %v2789
    %v2791 = vand.u32 %v2062, 4294901760
    %2792 = vmatmul.f32.gmra.mxu0 %v2791
    %v2793 = vpop.f32.mrf.mxu0
    %v2794 = vadd.f32 %v2761, %v2793
    %v2795 = vand.u32 %v2065, 4294901760
    %2796 = vmatmul.f32.gmra.mxu0 %v2795
    %v2797 = vpop.f32.mrf.mxu0
    %v2798 = vadd.f32 %v2767, %v2797
    %2799 = vdwg.mxu0
    %2800 = vmatpush.msra.mxu0 0.0
    %2801 = vmatpush.msra.mxu0 0.0
    %2802 = vmatpush.msra.mxu0 0.0
    %2803 = vmatpush.msra.mxu0 0.0
    %2804 = vmatpush.msra.mxu0 0.0
    %2805 = vmatpush.msra.mxu0 0.0
    %2806 = vmatpush.msra.mxu0 0.0
    %2807 = vmatpush.msra.mxu0 0.0
    %2808 = vmatpush.msra.mxu0 0.0
    %2809 = vmatpush.msra.mxu0 0.0
    %2810 = vmatpush.msra.mxu0 0.0
    %2811 = vmatpush.msra.mxu0 0.0
    %2812 = vmatpush.msra.mxu0 0.0
    %2813 = vmatpush.msra.mxu0 0.0
    %v2814 = vand.u32 %v2052, 4294901760
    %2815 = vmatpush.msra.mxu0 %v2814
    %v2816 = vand.u32 %v2048, 4294901760
    %2817 = vmatpush.msra.mxu0 %v2816
    %v2818 = vand.u32 %v2062, 4294901760
    %2819 = vmatmul.f32.gmra.mxu0 %v2818
    %v2820 = vpop.f32.mrf.mxu0
    %v2821 = vadd.f32 %v2794, %v2820
    %v2822 = vand.u32 %v2065, 4294901760
    %2823 = vmatmul.f32.gmra.mxu0 %v2822
    %v2824 = vpop.f32.mrf.mxu0
    %v2825 = vadd.f32 %v2798, %v2824
    %2826 = vdwg.mxu0
    %v2827 = vadd.f32 %v2251, %v2255
    %v2828 = vrot.slane %v2827, 4
    %v2829 = vadd.f32 %v2827, %v2828
    %v2830 = vrot.slane %v2829, 2
    %v2831 = vadd.f32 %v2829, %v2830
    %v2832 = vrot.slane %v2831, 1
    %v2833 = vadd.f32 %v2831, %v2832
    %v2834 = vadd.f32 %v2441, %v2445
    %v2835 = vrot.slane %v2834, 4
    %v2836 = vadd.f32 %v2834, %v2835
    %v2837 = vrot.slane %v2836, 2
    %v2838 = vadd.f32 %v2836, %v2837
    %v2839 = vrot.slane %v2838, 1
    %v2840 = vadd.f32 %v2838, %v2839
    %v2841 = vadd.f32 %v2631, %v2635
    %v2842 = vrot.slane %v2841, 4
    %v2843 = vadd.f32 %v2841, %v2842
    %v2844 = vrot.slane %v2843, 2
    %v2845 = vadd.f32 %v2843, %v2844
    %v2846 = vrot.slane %v2845, 1
    %v2847 = vadd.f32 %v2845, %v2846
    %v2848 = vadd.f32 %v2821, %v2825
    %v2849 = vrot.slane %v2848, 4
    %v2850 = vadd.f32 %v2848, %v2849
    %v2851 = vrot.slane %v2850, 2
    %v2852 = vadd.f32 %v2850, %v2851
    %v2853 = vrot.slane %v2852, 1
    %v2854 = vadd.f32 %v2852, %v2853
    %v2855 = vrcp.pop 16.0
    %v2856 = vmul.f32 16.0, %v2855
    %v2857 = vsub.f32 1.0, %v2856
    %v2858 = vmul.f32 %v2855, %v2857
    %v2859 = vadd.f32 %v2855, %v2858
    %vm2860 = vweird.f32 %v2855
    %v2861 = vsel %vm2860, %v2855, %v2859
    %v2862 = vmul.f32 %v2833, %v2861
    %v2863 = vmul.f32 %v2840, %v2861
    %v2864 = vmul.f32 %v2847, %v2861
    %v2865 = vmul.f32 %v2854, %v2861
    %v2866 = vsub.f32 %v2251, %v2862
    %v2867 = vsub.f32 %v2441, %v2863
    %v2868 = vsub.f32 %v2631, %v2864
    %v2869 = vsub.f32 %v2821, %v2865
    %v2870 = vsub.f32 %v2255, %v2862
    %v2871 = vsub.f32 %v2445, %v2863
    %v2872 = vsub.f32 %v2635, %v2864
    %v2873 = vsub.f32 %v2825, %v2865
    %v2874 = vmul.f32 %v2866, %v2866
    %v2875 = vmul.f32 %v2867, %v2867
    %v2876 = vmul.f32 %v2868, %v2868
    %v2877 = vmul.f32 %v2869, %v2869
    %v2878 = vmul.f32 %v2870, %v2870
    %v2879 = vmul.f32 %v2871, %v2871
    %v2880 = vmul.f32 %v2872, %v2872
    %v2881 = vmul.f32 %v2873, %v2873
    %v2882 = vadd.f32 %v2874, %v2878
    %v2883 = vrot.slane %v2882, 4
    %v2884 = vadd.f32 %v2882, %v2883
    %v2885 = vrot.slane %v2884, 2
    %v2886 = vadd.f32 %v2884, %v2885
    %v2887 = vrot.slane %v2886, 1
    %v2888 = vadd.f32 %v2886, %v2887
    %v2889 = vadd.f32 %v2875, %v2879
    %v2890 = vrot.slane %v2889, 4
    %v2891 = vadd.f32 %v2889, %v2890
    %v2892 = vrot.slane %v2891, 2
    %v2893 = vadd.f32 %v2891, %v2892
    %v2894 = vrot.slane %v2893, 1
    %v2895 = vadd.f32 %v2893, %v2894
    %v2896 = vadd.f32 %v2876, %v2880
    %v2897 = vrot.slane %v2896, 4
    %v2898 = vadd.f32 %v2896, %v2897
    %v2899 = vrot.slane %v2898, 2
    %v2900 = vadd.f32 %v2898, %v2899
    %v2901 = vrot.slane %v2900, 1
    %v2902 = vadd.f32 %v2900, %v2901
    %v2903 = vadd.f32 %v2877, %v2881
    %v2904 = vrot.slane %v2903, 4
    %v2905 = vadd.f32 %v2903, %v2904
    %v2906 = vrot.slane %v2905, 2
    %v2907 = vadd.f32 %v2905, %v2906
    %v2908 = vrot.slane %v2907, 1
    %v2909 = vadd.f32 %v2907, %v2908
    %v2910 = vmul.f32 %v2888, %v2861
    %v2911 = vmul.f32 %v2895, %v2861
    %v2912 = vmul.f32 %v2902, %v2861
    %v2913 = vmul.f32 %v2909, %v2861
    %v2914 = vadd.f32 %v2910, 1e-06
    %v2915 = vadd.f32 %v2911, 1e-06
    %v2916 = vadd.f32 %v2912, 1e-06
    %v2917 = vadd.f32 %v2913, 1e-06
    %v2918 = vrsqrt.pop %v2914
    %v2919 = vmul.f32 %v2918, %v2914
    %v2920 = vmul.f32 %v2919, %v2918
    %v2921 = vmul.f32 0.5, %v2920
    %v2922 = vsub.f32 1.5, %v2921
    %v2923 = vmul.f32 %v2918, %v2922
    %vm2924 = vweird.f32 %v2914
    %vm2925 = vweird.f32 %v2918
    %vm2926 = vmor %vm2924, %vm2925
    %v2927 = vsel %vm2926, %v2918, %v2923
    %v2928 = vrsqrt.pop %v2915
    %v2929 = vmul.f32 %v2928, %v2915
    %v2930 = vmul.f32 %v2929, %v2928
    %v2931 = vmul.f32 0.5, %v2930
    %v2932 = vsub.f32 1.5, %v2931
    %v2933 = vmul.f32 %v2928, %v2932
    %vm2934 = vweird.f32 %v2915
    %vm2935 = vweird.f32 %v2928
    %vm2936 = vmor %vm2934, %vm2935
    %v2937 = vsel %vm2936, %v2928, %v2933
    %v2938 = vrsqrt.pop %v2916
    %v2939 = vmul.f32 %v2938, %v2916
    %v2940 = vmul.f32 %v2939, %v2938
    %v2941 = vmul.f32 0.5, %v2940
    %v2942 = vsub.f32 1.5, %v2941
    %v2943 = vmul.f32 %v2938, %v2942
    %vm2944 = vweird.f32 %v2916
    %vm2945 = vweird.f32 %v2938
    %vm2946 = vmor %vm2944, %vm2945
    %v2947 = vsel %vm2946, %v2938, %v2943
    %v2948 = vrsqrt.pop %v2917
    %v2949 = vmul.f32 %v2948, %v2917
    %v2950 = vmul.f32 %v2949, %v2948
    %v2951 = vmul.f32 0.5, %v2950
    %v2952 = vsub.f32 1.5, %v2951
    %v2953 = vmul.f32 %v2948, %v2952
    %vm2954 = vweird.f32 %v2917
    %vm2955 = vweird.f32 %v2948
    %vm2956 = vmor %vm2954, %vm2955
    %v2957 = vsel %vm2956, %v2948, %v2953
    %v2958 = vmul.f32 %v2866, %v2927
    %v2959 = vmul.f32 %v2867, %v2937
    %v2960 = vmul.f32 %v2868, %v2947
    %v2961 = vmul.f32 %v2869, %v2957
    %v2962 = vmul.f32 %v2870, %v2927
    %v2963 = vmul.f32 %v2871, %v2937
    %v2964 = vmul.f32 %v2872, %v2947
    %v2965 = vmul.f32 %v2873, %v2957
    %2966 = vset.pattern.permute.xlu0 4
    %2967 = vperm.xlu0 %2966, %v820
    %v2968 = vpop.permute.xlu0 %2967
    %2970 = vset.pattern.permute.xlu0 4
    %2971 = vperm.xlu0 %2970, %v821
    %v2972 = vpop.permute.xlu0 %2971
    %v2974 = vmul.f32 %v2968, %v2958
    %v2975 = vmul.f32 %v2968, %v2959
    %v2976 = vmul.f32 %v2968, %v2960
    %v2977 = vmul.f32 %v2968, %v2961
    %v2978 = vmul.f32 %v2972, %v2962
    %v2979 = vmul.f32 %v2972, %v2963
    %v2980 = vmul.f32 %v2972, %v2964
    %v2981 = vmul.f32 %v2972, %v2965
    %2982 = vset.pattern.permute.xlu0 5
    %2983 = vperm.xlu0 %2982, %v820
    %v2984 = vpop.permute.xlu0 %2983
    %2986 = vset.pattern.permute.xlu0 5
    %2987 = vperm.xlu0 %2986, %v821
    %v2988 = vpop.permute.xlu0 %2987
    %v2990 = vadd.f32 %v2974, %v2984
    %v2991 = vadd.f32 %v2975, %v2984
    %v2992 = vadd.f32 %v2976, %v2984
    %v2993 = vadd.f32 %v2977, %v2984
    %v2994 = vadd.f32 %v2978, %v2988
    %v2995 = vadd.f32 %v2979, %v2988
    %v2996 = vadd.f32 %v2980, %v2988
    %v2997 = vadd.f32 %v2981, %v2988
    %v2998 = vmul.f32 %v2990, 0.70710677
    %v2999 = vmul.f32 %v2991, 0.70710677
    %v3000 = vmul.f32 %v2992, 0.70710677
    %v3001 = vmul.f32 %v2993, 0.70710677
    %v3002 = vmul.f32 %v2994, 0.70710677
    %v3003 = vmul.f32 %v2995, 0.70710677
    %v3004 = vmul.f32 %v2996, 0.70710677
    %v3005 = vmul.f32 %v2997, 0.70710677
    %v3006 = vand.u32 2147483647, %v2998
    %v3007 = vand.u32 2147483647, %v2999
    %v3008 = vand.u32 2147483647, %v3000
    %v3009 = vand.u32 2147483647, %v3001
    %v3010 = vand.u32 2147483647, %v3002
    %v3011 = vand.u32 2147483647, %v3003
    %v3012 = vand.u32 2147483647, %v3004
    %v3013 = vand.u32 2147483647, %v3005
    %vm3014 = vcmp.ge.f32.partialorder %v2998, 0.0
    %vm3015 = vcmp.ge.f32.partialorder %v2999, 0.0
    %vm3016 = vcmp.ge.f32.partialorder %v3000, 0.0
    %vm3017 = vcmp.ge.f32.partialorder %v3001, 0.0
    %vm3018 = vcmp.ge.f32.partialorder %v3002, 0.0
    %vm3019 = vcmp.ge.f32.partialorder %v3003, 0.0
    %vm3020 = vcmp.ge.f32.partialorder %v3004, 0.0
    %vm3021 = vcmp.ge.f32.partialorder %v3005, 0.0
    %v3022 = vsel %vm3014, 1.0, -1.0
    %v3023 = vsel %vm3015, 1.0, -1.0
    %v3024 = vsel %vm3016, 1.0, -1.0
    %v3025 = vsel %vm3017, 1.0, -1.0
    %v3026 = vsel %vm3018, 1.0, -1.0
    %v3027 = vsel %vm3019, 1.0, -1.0
    %v3028 = vsel %vm3020, 1.0, -1.0
    %v3029 = vsel %vm3021, 1.0, -1.0
    %v3030 = vmul.f32 %v3006, 0.3275911
    %v3031 = vmul.f32 %v3007, 0.3275911
    %v3032 = vmul.f32 %v3008, 0.3275911
    %v3033 = vmul.f32 %v3009, 0.3275911
    %v3034 = vmul.f32 %v3010, 0.3275911
    %v3035 = vmul.f32 %v3011, 0.3275911
    %v3036 = vmul.f32 %v3012, 0.3275911
    %v3037 = vmul.f32 %v3013, 0.3275911
    %v3038 = vadd.f32 %v3030, 1.0
    %v3039 = vadd.f32 %v3031, 1.0
    %v3040 = vadd.f32 %v3032, 1.0
    %v3041 = vadd.f32 %v3033, 1.0
    %v3042 = vadd.f32 %v3034, 1.0
    %v3043 = vadd.f32 %v3035, 1.0
    %v3044 = vadd.f32 %v3036, 1.0
    %v3045 = vadd.f32 %v3037, 1.0
    %v3046 = vrcp.pop %v3038
    %v3047 = vrcp.pop %v3039
    %v3048 = vrcp.pop %v3040
    %v3049 = vrcp.pop %v3041
    %v3050 = vrcp.pop %v3042
    %v3051 = vrcp.pop %v3043
    %v3052 = vrcp.pop %v3044
    %v3053 = vrcp.pop %v3045
    %v3054 = vmul.f32 %v3046, 1.0614054
    %v3055 = vmul.f32 %v3047, 1.0614054
    %v3056 = vmul.f32 %v3048, 1.0614054
    %v3057 = vmul.f32 %v3049, 1.0614054
    %v3058 = vmul.f32 %v3050, 1.0614054
    %v3059 = vmul.f32 %v3051, 1.0614054
    %v3060 = vmul.f32 %v3052, 1.0614054
    %v3061 = vmul.f32 %v3053, 1.0614054
    %v3062 = vadd.f32 %v3054, -1.4531521
    %v3063 = vadd.f32 %v3055, -1.4531521
    %v3064 = vadd.f32 %v3056, -1.4531521
    %v3065 = vadd.f32 %v3057, -1.4531521
    %v3066 = vadd.f32 %v3058, -1.4531521
    %v3067 = vadd.f32 %v3059, -1.4531521
    %v3068 = vadd.f32 %v3060, -1.4531521
    %v3069 = vadd.f32 %v3061, -1.4531521
    %v3070 = vmul.f32 %v3062, %v3046
    %v3071 = vmul.f32 %v3063, %v3047
    %v3072 = vmul.f32 %v3064, %v3048
    %v3073 = vmul.f32 %v3065, %v3049
    %v3074 = vmul.f32 %v3066, %v3050
    %v3075 = vmul.f32 %v3067, %v3051
    %v3076 = vmul.f32 %v3068, %v3052
    %v3077 = vmul.f32 %v3069, %v3053
    %v3078 = vadd.f32 %v3070, 1.4214138
    %v3079 = vadd.f32 %v3071, 1.4214138
    %v3080 = vadd.f32 %v3072, 1.4214138
    %v3081 = vadd.f32 %v3073, 1.4214138
    %v3082 = vadd.f32 %v3074, 1.4214138
    %v3083 = vadd.f32 %v3075, 1.4214138
    %v3084 = vadd.f32 %v3076, 1.4214138
    %v3085 = vadd.f32 %v3077, 1.4214138
    %v3086 = vmul.f32 %v3078, %v3046
    %v3087 = vmul.f32 %v3079, %v3047
    %v3088 = vmul.f32 %v3080, %v3048
    %v3089 = vmul.f32 %v3081, %v3049
    %v3090 = vmul.f32 %v3082, %v3050
    %v3091 = vmul.f32 %v3083, %v3051
    %v3092 = vmul.f32 %v3084, %v3052
    %v3093 = vmul.f32 %v3085, %v3053
    %v3094 = vadd.f32 %v3086, -0.28449672
    %v3095 = vadd.f32 %v3087, -0.28449672
    %v3096 = vadd.f32 %v3088, -0.28449672
    %v3097 = vadd.f32 %v3089, -0.28449672
    %v3098 = vadd.f32 %v3090, -0.28449672
    %v3099 = vadd.f32 %v3091, -0.28449672
    %v3100 = vadd.f32 %v3092, -0.28449672
    %v3101 = vadd.f32 %v3093, -0.28449672
    %v3102 = vmul.f32 %v3094, %v3046
    %v3103 = vmul.f32 %v3095, %v3047
    %v3104 = vmul.f32 %v3096, %v3048
    %v3105 = vmul.f32 %v3097, %v3049
    %v3106 = vmul.f32 %v3098, %v3050
    %v3107 = vmul.f32 %v3099, %v3051
    %v3108 = vmul.f32 %v3100, %v3052
    %v3109 = vmul.f32 %v3101, %v3053
    %v3110 = vadd.f32 %v3102, 0.2548296
    %v3111 = vadd.f32 %v3103, 0.2548296
    %v3112 = vadd.f32 %v3104, 0.2548296
    %v3113 = vadd.f32 %v3105, 0.2548296
    %v3114 = vadd.f32 %v3106, 0.2548296
    %v3115 = vadd.f32 %v3107, 0.2548296
    %v3116 = vadd.f32 %v3108, 0.2548296
    %v3117 = vadd.f32 %v3109, 0.2548296
    %v3118 = vmul.f32 %v3110, %v3046
    %v3119 = vmul.f32 %v3111, %v3047
    %v3120 = vmul.f32 %v3112, %v3048
    %v3121 = vmul.f32 %v3113, %v3049
    %v3122 = vmul.f32 %v3114, %v3050
    %v3123 = vmul.f32 %v3115, %v3051
    %v3124 = vmul.f32 %v3116, %v3052
    %v3125 = vmul.f32 %v3117, %v3053
    %v3126 = vsub.f32 0.0, %v3006
    %v3127 = vsub.f32 0.0, %v3007
    %v3128 = vsub.f32 0.0, %v3008
    %v3129 = vsub.f32 0.0, %v3009
    %v3130 = vsub.f32 0.0, %v3010
    %v3131 = vsub.f32 0.0, %v3011
    %v3132 = vsub.f32 0.0, %v3012
    %v3133 = vsub.f32 0.0, %v3013
    %v3134 = vmul.f32 %v3126, %v3006
    %v3135 = vmul.f32 %v3127, %v3007
    %v3136 = vmul.f32 %v3128, %v3008
    %v3137 = vmul.f32 %v3129, %v3009
    %v3138 = vmul.f32 %v3130, %v3010
    %v3139 = vmul.f32 %v3131, %v3011
    %v3140 = vmul.f32 %v3132, %v3012
    %v3141 = vmul.f32 %v3133, %v3013
    %v3142 = vmul.f32 %v3134, 1.442695
    %v3143 = vpow.pop %v3142
    %v3144 = vmul.f32 %v3135, 1.442695
    %v3145 = vpow.pop %v3144
    %v3146 = vmul.f32 %v3136, 1.442695
    %v3147 = vpow.pop %v3146
    %v3148 = vmul.f32 %v3137, 1.442695
    %v3149 = vpow.pop %v3148
    %v3150 = vmul.f32 %v3138, 1.442695
    %v3151 = vpow.pop %v3150
    %v3152 = vmul.f32 %v3139, 1.442695
    %v3153 = vpow.pop %v3152
    %v3154 = vmul.f32 %v3140, 1.442695
    %v3155 = vpow.pop %v3154
    %v3156 = vmul.f32 %v3141, 1.442695
    %v3157 = vpow.pop %v3156
    %v3158 = vmul.f32 %v3118, %v3143
    %v3159 = vmul.f32 %v3119, %v3145
    %v3160 = vmul.f32 %v3120, %v3147
    %v3161 = vmul.f32 %v3121, %v3149
    %v3162 = vmul.f32 %v3122, %v3151
    %v3163 = vmul.f32 %v3123, %v3153
    %v3164 = vmul.f32 %v3124, %v3155
    %v3165 = vmul.f32 %v3125, %v3157
    %v3166 = vsub.f32 1.0, %v3158
    %v3167 = vsub.f32 1.0, %v3159
    %v3168 = vsub.f32 1.0, %v3160
    %v3169 = vsub.f32 1.0, %v3161
    %v3170 = vsub.f32 1.0, %v3162
    %v3171 = vsub.f32 1.0, %v3163
    %v3172 = vsub.f32 1.0, %v3164
    %v3173 = vsub.f32 1.0, %v3165
    %v3174 = vmul.f32 %v3022, %v3166
    %v3175 = vmul.f32 %v3023, %v3167
    %v3176 = vmul.f32 %v3024, %v3168
    %v3177 = vmul.f32 %v3025, %v3169
    %v3178 = vmul.f32 %v3026, %v3170
    %v3179 = vmul.f32 %v3027, %v3171
    %v3180 = vmul.f32 %v3028, %v3172
    %v3181 = vmul.f32 %v3029, %v3173
    %v3182 = vmul.f32 %v2990, 0.5
    %v3183 = vmul.f32 %v2991, 0.5
    %v3184 = vmul.f32 %v2992, 0.5
    %v3185 = vmul.f32 %v2993, 0.5
    %v3186 = vmul.f32 %v2994, 0.5
    %v3187 = vmul.f32 %v2995, 0.5
    %v3188 = vmul.f32 %v2996, 0.5
    %v3189 = vmul.f32 %v2997, 0.5
    %v3190 = vadd.f32 %v3174, 1.0
    %v3191 = vadd.f32 %v3175, 1.0
    %v3192 = vadd.f32 %v3176, 1.0
    %v3193 = vadd.f32 %v3177, 1.0
    %v3194 = vadd.f32 %v3178, 1.0
    %v3195 = vadd.f32 %v3179, 1.0
    %v3196 = vadd.f32 %v3180, 1.0
    %v3197 = vadd.f32 %v3181, 1.0
    %v3198 = vmul.f32 %v3182, %v3190
    %v3199 = vmul.f32 %v3183, %v3191
    %v3200 = vmul.f32 %v3184, %v3192
    %v3201 = vmul.f32 %v3185, %v3193
    %v3202 = vmul.f32 %v3186, %v3194
    %v3203 = vmul.f32 %v3187, %v3195
    %v3204 = vmul.f32 %v3188, %v3196
    %v3205 = vmul.f32 %v3189, %v3197
    %3206 = vset.pattern.permute.xlu0 6
    %3207 = vperm.xlu0 %3206, %v820
    %v3208 = vpop.permute.xlu0 %3207
    %3210 = vset.pattern.permute.xlu0 6
    %3211 = vperm.xlu0 %3210, %v821
    %v3212 = vpop.permute.xlu0 %3211
    %3215 = vset.pattern.permute.xlu0 6
    %3216 = vperm.xlu0 %3215, %v822
    %v3217 = vpop.permute.xlu0 %3216
    %3220 = vset.pattern.permute.xlu0 6
    %3221 = vperm.xlu0 %3220, %v823
    %v3222 = vpop.permute.xlu0 %3221
    %v3225 = vsel %vm478, %v816, 0
    %v3228 = vsel %vm478, %v817, 0
    %v3231 = vsel %vm478, %v818, 0
    %v3234 = vsel %vm478, %v819, 0
    %3236 = vmatpush.msra.mxu0 0.0
    %3237 = vmatpush.msra.mxu0 0.0
    %3238 = vmatpush.msra.mxu0 0.0
    %3239 = vmatpush.msra.mxu0 0.0
    %3240 = vmatpush.msra.mxu0 0.0
    %3241 = vmatpush.msra.mxu0 0.0
    %3242 = vmatpush.msra.mxu0 0.0
    %3243 = vmatpush.msra.mxu0 0.0
    %3244 = vmatpush.msra.mxu0 0.0
    %3245 = vmatpush.msra.mxu0 0.0
    %3246 = vmatpush.msra.mxu0 0.0
    %3247 = vmatpush.msra.mxu0 0.0
    %3248 = vmatpush.msra.mxu0 0.0
    %3249 = vmatpush.msra.mxu0 0.0
    %v3250 = vand.u32 %v3202, 4294901760
    %3251 = vmatpush.msra.mxu0 %v3250
    %v3252 = vand.u32 %v3198, 4294901760
    %3253 = vmatpush.msra.mxu0 %v3252
    %v3254 = vand.u32 %v3225, 4294901760
    %v3255 = vsub.f32 %v3225, %v3254
    %v3256 = vand.u32 %v3255, 4294901760
    %v3257 = vsub.f32 %v3255, %v3256
    %v3258 = vand.u32 %v3257, 4294901760
    %3259 = vmatmul.f32.gmra.mxu0 %v3258
    %v3260 = vpop.f32.mrf.mxu0
    %v3261 = vadd.f32 %v3208, %v3260
    %v3262 = vand.u32 %v3228, 4294901760
    %v3263 = vsub.f32 %v3228, %v3262
    %v3264 = vand.u32 %v3263, 4294901760
    %v3265 = vsub.f32 %v3263, %v3264
    %v3266 = vand.u32 %v3265, 4294901760
    %3267 = vmatmul.f32.gmra.mxu0 %v3266
    %v3268 = vpop.f32.mrf.mxu0
    %v3269 = vadd.f32 %v3212, %v3268
    %v3270 = vand.u32 %v3231, 4294901760
    %v3271 = vsub.f32 %v3231, %v3270
    %v3272 = vand.u32 %v3271, 4294901760
    %v3273 = vsub.f32 %v3271, %v3272
    %v3274 = vand.u32 %v3273, 4294901760
    %3275 = vmatmul.f32.gmra.mxu0 %v3274
    %v3276 = vpop.f32.mrf.mxu0
    %v3277 = vadd.f32 %v3217, %v3276
    %v3278 = vand.u32 %v3234, 4294901760
    %v3279 = vsub.f32 %v3234, %v3278
    %v3280 = vand.u32 %v3279, 4294901760
    %v3281 = vsub.f32 %v3279, %v3280
    %v3282 = vand.u32 %v3281, 4294901760
    %3283 = vmatmul.f32.gmra.mxu0 %v3282
    %v3284 = vpop.f32.mrf.mxu0
    %v3285 = vadd.f32 %v3222, %v3284
    %3286 = vdwg.mxu0
    %3287 = vmatpush.msra.mxu0 0.0
    %3288 = vmatpush.msra.mxu0 0.0
    %3289 = vmatpush.msra.mxu0 0.0
    %3290 = vmatpush.msra.mxu0 0.0
    %3291 = vmatpush.msra.mxu0 0.0
    %3292 = vmatpush.msra.mxu0 0.0
    %3293 = vmatpush.msra.mxu0 0.0
    %3294 = vmatpush.msra.mxu0 0.0
    %3295 = vmatpush.msra.mxu0 0.0
    %3296 = vmatpush.msra.mxu0 0.0
    %3297 = vmatpush.msra.mxu0 0.0
    %3298 = vmatpush.msra.mxu0 0.0
    %3299 = vmatpush.msra.mxu0 0.0
    %3300 = vmatpush.msra.mxu0 0.0
    %v3301 = vand.u32 %v3202, 4294901760
    %v3302 = vsub.f32 %v3202, %v3301
    %v3303 = vand.u32 %v3302, 4294901760
    %v3304 = vsub.f32 %v3302, %v3303
    %v3305 = vand.u32 %v3304, 4294901760
    %3306 = vmatpush.msra.mxu0 %v3305
    %v3307 = vand.u32 %v3198, 4294901760
    %v3308 = vsub.f32 %v3198, %v3307
    %v3309 = vand.u32 %v3308, 4294901760
    %v3310 = vsub.f32 %v3308, %v3309
    %v3311 = vand.u32 %v3310, 4294901760
    %3312 = vmatpush.msra.mxu0 %v3311
    %v3313 = vand.u32 %v3225, 4294901760
    %3314 = vmatmul.f32.gmra.mxu0 %v3313
    %v3315 = vpop.f32.mrf.mxu0
    %v3316 = vadd.f32 %v3261, %v3315
    %v3317 = vand.u32 %v3228, 4294901760
    %3318 = vmatmul.f32.gmra.mxu0 %v3317
    %v3319 = vpop.f32.mrf.mxu0
    %v3320 = vadd.f32 %v3269, %v3319
    %v3321 = vand.u32 %v3231, 4294901760
    %3322 = vmatmul.f32.gmra.mxu0 %v3321
    %v3323 = vpop.f32.mrf.mxu0
    %v3324 = vadd.f32 %v3277, %v3323
    %v3325 = vand.u32 %v3234, 4294901760
    %3326 = vmatmul.f32.gmra.mxu0 %v3325
    %v3327 = vpop.f32.mrf.mxu0
    %v3328 = vadd.f32 %v3285, %v3327
    %3329 = vdwg.mxu0
    %3330 = vmatpush.msra.mxu0 0.0
    %3331 = vmatpush.msra.mxu0 0.0
    %3332 = vmatpush.msra.mxu0 0.0
    %3333 = vmatpush.msra.mxu0 0.0
    %3334 = vmatpush.msra.mxu0 0.0
    %3335 = vmatpush.msra.mxu0 0.0
    %3336 = vmatpush.msra.mxu0 0.0
    %3337 = vmatpush.msra.mxu0 0.0
    %3338 = vmatpush.msra.mxu0 0.0
    %3339 = vmatpush.msra.mxu0 0.0
    %3340 = vmatpush.msra.mxu0 0.0
    %3341 = vmatpush.msra.mxu0 0.0
    %3342 = vmatpush.msra.mxu0 0.0
    %3343 = vmatpush.msra.mxu0 0.0
    %v3344 = vand.u32 %v3202, 4294901760
    %v3345 = vsub.f32 %v3202, %v3344
    %3346 = vmatpush.msra.mxu0 %v3345
    %v3347 = vand.u32 %v3198, 4294901760
    %v3348 = vsub.f32 %v3198, %v3347
    %3349 = vmatpush.msra.mxu0 %v3348
    %v3350 = vand.u32 %v3225, 4294901760
    %v3351 = vsub.f32 %v3225, %v3350
    %3352 = vmatmul.f32.gmra.mxu0 %v3351
    %v3353 = vpop.f32.mrf.mxu0
    %v3354 = vadd.f32 %v3316, %v3353
    %v3355 = vand.u32 %v3228, 4294901760
    %v3356 = vsub.f32 %v3228, %v3355
    %3357 = vmatmul.f32.gmra.mxu0 %v3356
    %v3358 = vpop.f32.mrf.mxu0
    %v3359 = vadd.f32 %v3320, %v3358
    %v3360 = vand.u32 %v3231, 4294901760
    %v3361 = vsub.f32 %v3231, %v3360
    %3362 = vmatmul.f32.gmra.mxu0 %v3361
    %v3363 = vpop.f32.mrf.mxu0
    %v3364 = vadd.f32 %v3324, %v3363
    %v3365 = vand.u32 %v3234, 4294901760
    %v3366 = vsub.f32 %v3234, %v3365
    %3367 = vmatmul.f32.gmra.mxu0 %v3366
    %v3368 = vpop.f32.mrf.mxu0
    %v3369 = vadd.f32 %v3328, %v3368
    %3370 = vdwg.mxu0
    %3371 = vmatpush.msra.mxu0 0.0
    %3372 = vmatpush.msra.mxu0 0.0
    %3373 = vmatpush.msra.mxu0 0.0
    %3374 = vmatpush.msra.mxu0 0.0
    %3375 = vmatpush.msra.mxu0 0.0
    %3376 = vmatpush.msra.mxu0 0.0
    %3377 = vmatpush.msra.mxu0 0.0
    %3378 = vmatpush.msra.mxu0 0.0
    %3379 = vmatpush.msra.mxu0 0.0
    %3380 = vmatpush.msra.mxu0 0.0
    %3381 = vmatpush.msra.mxu0 0.0
    %3382 = vmatpush.msra.mxu0 0.0
    %3383 = vmatpush.msra.mxu0 0.0
    %3384 = vmatpush.msra.mxu0 0.0
    %v3385 = vand.u32 %v3202, 4294901760
    %3386 = vmatpush.msra.mxu0 %v3385
    %v3387 = vand.u32 %v3198, 4294901760
    %3388 = vmatpush.msra.mxu0 %v3387
    %v3389 = vand.u32 %v3225, 4294901760
    %v3390 = vsub.f32 %v3225, %v3389
    %v3391 = vand.u32 %v3390, 4294901760
    %3392 = vmatmul.f32.gmra.mxu0 %v3391
    %v3393 = vpop.f32.mrf.mxu0
    %v3394 = vadd.f32 %v3354, %v3393
    %v3395 = vand.u32 %v3228, 4294901760
    %v3396 = vsub.f32 %v3228, %v3395
    %v3397 = vand.u32 %v3396, 4294901760
    %3398 = vmatmul.f32.gmra.mxu0 %v3397
    %v3399 = vpop.f32.mrf.mxu0
    %v3400 = vadd.f32 %v3359, %v3399
    %v3401 = vand.u32 %v3231, 4294901760
    %v3402 = vsub.f32 %v3231, %v3401
    %v3403 = vand.u32 %v3402, 4294901760
    %3404 = vmatmul.f32.gmra.mxu0 %v3403
    %v3405 = vpop.f32.mrf.mxu0
    %v3406 = vadd.f32 %v3364, %v3405
    %v3407 = vand.u32 %v3234, 4294901760
    %v3408 = vsub.f32 %v3234, %v3407
    %v3409 = vand.u32 %v3408, 4294901760
    %3410 = vmatmul.f32.gmra.mxu0 %v3409
    %v3411 = vpop.f32.mrf.mxu0
    %v3412 = vadd.f32 %v3369, %v3411
    %3413 = vdwg.mxu0
    %3414 = vmatpush.msra.mxu0 0.0
    %3415 = vmatpush.msra.mxu0 0.0
    %3416 = vmatpush.msra.mxu0 0.0
    %3417 = vmatpush.msra.mxu0 0.0
    %3418 = vmatpush.msra.mxu0 0.0
    %3419 = vmatpush.msra.mxu0 0.0
    %3420 = vmatpush.msra.mxu0 0.0
    %3421 = vmatpush.msra.mxu0 0.0
    %3422 = vmatpush.msra.mxu0 0.0
    %3423 = vmatpush.msra.mxu0 0.0
    %3424 = vmatpush.msra.mxu0 0.0
    %3425 = vmatpush.msra.mxu0 0.0
    %3426 = vmatpush.msra.mxu0 0.0
    %3427 = vmatpush.msra.mxu0 0.0
    %v3428 = vand.u32 %v3202, 4294901760
    %v3429 = vsub.f32 %v3202, %v3428
    %v3430 = vand.u32 %v3429, 4294901760
    %3431 = vmatpush.msra.mxu0 %v3430
    %v3432 = vand.u32 %v3198, 4294901760
    %v3433 = vsub.f32 %v3198, %v3432
    %v3434 = vand.u32 %v3433, 4294901760
    %3435 = vmatpush.msra.mxu0 %v3434
    %v3436 = vand.u32 %v3225, 4294901760
    %3437 = vmatmul.f32.gmra.mxu0 %v3436
    %v3438 = vpop.f32.mrf.mxu0
    %v3439 = vadd.f32 %v3394, %v3438
    %v3440 = vand.u32 %v3228, 4294901760
    %3441 = vmatmul.f32.gmra.mxu0 %v3440
    %v3442 = vpop.f32.mrf.mxu0
    %v3443 = vadd.f32 %v3400, %v3442
    %v3444 = vand.u32 %v3231, 4294901760
    %3445 = vmatmul.f32.gmra.mxu0 %v3444
    %v3446 = vpop.f32.mrf.mxu0
    %v3447 = vadd.f32 %v3406, %v3446
    %v3448 = vand.u32 %v3234, 4294901760
    %3449 = vmatmul.f32.gmra.mxu0 %v3448
    %v3450 = vpop.f32.mrf.mxu0
    %v3451 = vadd.f32 %v3412, %v3450
    %3452 = vdwg.mxu0
    %3453 = vmatpush.msra.mxu0 0.0
    %3454 = vmatpush.msra.mxu0 0.0
    %3455 = vmatpush.msra.mxu0 0.0
    %3456 = vmatpush.msra.mxu0 0.0
    %3457 = vmatpush.msra.mxu0 0.0
    %3458 = vmatpush.msra.mxu0 0.0
    %3459 = vmatpush.msra.mxu0 0.0
    %3460 = vmatpush.msra.mxu0 0.0
    %3461 = vmatpush.msra.mxu0 0.0
    %3462 = vmatpush.msra.mxu0 0.0
    %3463 = vmatpush.msra.mxu0 0.0
    %3464 = vmatpush.msra.mxu0 0.0
    %3465 = vmatpush.msra.mxu0 0.0
    %3466 = vmatpush.msra.mxu0 0.0
    %v3467 = vand.u32 %v3202, 4294901760
    %3468 = vmatpush.msra.mxu0 %v3467
    %v3469 = vand.u32 %v3198, 4294901760
    %3470 = vmatpush.msra.mxu0 %v3469
    %v3471 = vand.u32 %v3225, 4294901760
    %3472 = vmatmul.f32.gmra.mxu0 %v3471
    %v3473 = vpop.f32.mrf.mxu0
    %v3474 = vadd.f32 %v3439, %v3473
    %v3475 = vand.u32 %v3228, 4294901760
    %3476 = vmatmul.f32.gmra.mxu0 %v3475
    %v3477 = vpop.f32.mrf.mxu0
    %v3478 = vadd.f32 %v3443, %v3477
    %v3479 = vand.u32 %v3231, 4294901760
    %3480 = vmatmul.f32.gmra.mxu0 %v3479
    %v3481 = vpop.f32.mrf.mxu0
    %v3482 = vadd.f32 %v3447, %v3481
    %v3483 = vand.u32 %v3234, 4294901760
    %3484 = vmatmul.f32.gmra.mxu0 %v3483
    %v3485 = vpop.f32.mrf.mxu0
    %v3486 = vadd.f32 %v3451, %v3485
    %3487 = vdwg.mxu0
    %3488 = vmatpush.msra.mxu0 0.0
    %3489 = vmatpush.msra.mxu0 0.0
    %3490 = vmatpush.msra.mxu0 0.0
    %3491 = vmatpush.msra.mxu0 0.0
    %3492 = vmatpush.msra.mxu0 0.0
    %3493 = vmatpush.msra.mxu0 0.0
    %3494 = vmatpush.msra.mxu0 0.0
    %3495 = vmatpush.msra.mxu0 0.0
    %3496 = vmatpush.msra.mxu0 0.0
    %3497 = vmatpush.msra.mxu0 0.0
    %3498 = vmatpush.msra.mxu0 0.0
    %3499 = vmatpush.msra.mxu0 0.0
    %3500 = vmatpush.msra.mxu0 0.0
    %3501 = vmatpush.msra.mxu0 0.0
    %v3502 = vand.u32 %v3203, 4294901760
    %3503 = vmatpush.msra.mxu0 %v3502
    %v3504 = vand.u32 %v3199, 4294901760
    %3505 = vmatpush.msra.mxu0 %v3504
    %v3506 = vand.u32 %v3225, 4294901760
    %v3507 = vsub.f32 %v3225, %v3506
    %v3508 = vand.u32 %v3507, 4294901760
    %v3509 = vsub.f32 %v3507, %v3508
    %v3510 = vand.u32 %v3509, 4294901760
    %3511 = vmatmul.f32.gmra.mxu0 %v3510
    %v3512 = vpop.f32.mrf.mxu0
    %v3513 = vadd.f32 %v3208, %v3512
    %v3514 = vand.u32 %v3228, 4294901760
    %v3515 = vsub.f32 %v3228, %v3514
    %v3516 = vand.u32 %v3515, 4294901760
    %v3517 = vsub.f32 %v3515, %v3516
    %v3518 = vand.u32 %v3517, 4294901760
    %3519 = vmatmul.f32.gmra.mxu0 %v3518
    %v3520 = vpop.f32.mrf.mxu0
    %v3521 = vadd.f32 %v3212, %v3520
    %v3522 = vand.u32 %v3231, 4294901760
    %v3523 = vsub.f32 %v3231, %v3522
    %v3524 = vand.u32 %v3523, 4294901760
    %v3525 = vsub.f32 %v3523, %v3524
    %v3526 = vand.u32 %v3525, 4294901760
    %3527 = vmatmul.f32.gmra.mxu0 %v3526
    %v3528 = vpop.f32.mrf.mxu0
    %v3529 = vadd.f32 %v3217, %v3528
    %v3530 = vand.u32 %v3234, 4294901760
    %v3531 = vsub.f32 %v3234, %v3530
    %v3532 = vand.u32 %v3531, 4294901760
    %v3533 = vsub.f32 %v3531, %v3532
    %v3534 = vand.u32 %v3533, 4294901760
    %3535 = vmatmul.f32.gmra.mxu0 %v3534
    %v3536 = vpop.f32.mrf.mxu0
    %v3537 = vadd.f32 %v3222, %v3536
    %3538 = vdwg.mxu0
    %3539 = vmatpush.msra.mxu0 0.0
    %3540 = vmatpush.msra.mxu0 0.0
    %3541 = vmatpush.msra.mxu0 0.0
    %3542 = vmatpush.msra.mxu0 0.0
    %3543 = vmatpush.msra.mxu0 0.0
    %3544 = vmatpush.msra.mxu0 0.0
    %3545 = vmatpush.msra.mxu0 0.0
    %3546 = vmatpush.msra.mxu0 0.0
    %3547 = vmatpush.msra.mxu0 0.0
    %3548 = vmatpush.msra.mxu0 0.0
    %3549 = vmatpush.msra.mxu0 0.0
    %3550 = vmatpush.msra.mxu0 0.0
    %3551 = vmatpush.msra.mxu0 0.0
    %3552 = vmatpush.msra.mxu0 0.0
    %v3553 = vand.u32 %v3203, 4294901760
    %v3554 = vsub.f32 %v3203, %v3553
    %v3555 = vand.u32 %v3554, 4294901760
    %v3556 = vsub.f32 %v3554, %v3555
    %v3557 = vand.u32 %v3556, 4294901760
    %3558 = vmatpush.msra.mxu0 %v3557
    %v3559 = vand.u32 %v3199, 4294901760
    %v3560 = vsub.f32 %v3199, %v3559
    %v3561 = vand.u32 %v3560, 4294901760
    %v3562 = vsub.f32 %v3560, %v3561
    %v3563 = vand.u32 %v3562, 4294901760
    %3564 = vmatpush.msra.mxu0 %v3563
    %v3565 = vand.u32 %v3225, 4294901760
    %3566 = vmatmul.f32.gmra.mxu0 %v3565
    %v3567 = vpop.f32.mrf.mxu0
    %v3568 = vadd.f32 %v3513, %v3567
    %v3569 = vand.u32 %v3228, 4294901760
    %3570 = vmatmul.f32.gmra.mxu0 %v3569
    %v3571 = vpop.f32.mrf.mxu0
    %v3572 = vadd.f32 %v3521, %v3571
    %v3573 = vand.u32 %v3231, 4294901760
    %3574 = vmatmul.f32.gmra.mxu0 %v3573
    %v3575 = vpop.f32.mrf.mxu0
    %v3576 = vadd.f32 %v3529, %v3575
    %v3577 = vand.u32 %v3234, 4294901760
    %3578 = vmatmul.f32.gmra.mxu0 %v3577
    %v3579 = vpop.f32.mrf.mxu0
    %v3580 = vadd.f32 %v3537, %v3579
    %3581 = vdwg.mxu0
    %3582 = vmatpush.msra.mxu0 0.0
    %3583 = vmatpush.msra.mxu0 0.0
    %3584 = vmatpush.msra.mxu0 0.0
    %3585 = vmatpush.msra.mxu0 0.0
    %3586 = vmatpush.msra.mxu0 0.0
    %3587 = vmatpush.msra.mxu0 0.0
    %3588 = vmatpush.msra.mxu0 0.0
    %3589 = vmatpush.msra.mxu0 0.0
    %3590 = vmatpush.msra.mxu0 0.0
    %3591 = vmatpush.msra.mxu0 0.0
    %3592 = vmatpush.msra.mxu0 0.0
    %3593 = vmatpush.msra.mxu0 0.0
    %3594 = vmatpush.msra.mxu0 0.0
    %3595 = vmatpush.msra.mxu0 0.0
    %v3596 = vand.u32 %v3203, 4294901760
    %v3597 = vsub.f32 %v3203, %v3596
    %3598 = vmatpush.msra.mxu0 %v3597
    %v3599 = vand.u32 %v3199, 4294901760
    %v3600 = vsub.f32 %v3199, %v3599
    %3601 = vmatpush.msra.mxu0 %v3600
    %v3602 = vand.u32 %v3225, 4294901760
    %v3603 = vsub.f32 %v3225, %v3602
    %3604 = vmatmul.f32.gmra.mxu0 %v3603
    %v3605 = vpop.f32.mrf.mxu0
    %v3606 = vadd.f32 %v3568, %v3605
    %v3607 = vand.u32 %v3228, 4294901760
    %v3608 = vsub.f32 %v3228, %v3607
    %3609 = vmatmul.f32.gmra.mxu0 %v3608
    %v3610 = vpop.f32.mrf.mxu0
    %v3611 = vadd.f32 %v3572, %v3610
    %v3612 = vand.u32 %v3231, 4294901760
    %v3613 = vsub.f32 %v3231, %v3612
    %3614 = vmatmul.f32.gmra.mxu0 %v3613
    %v3615 = vpop.f32.mrf.mxu0
    %v3616 = vadd.f32 %v3576, %v3615
    %v3617 = vand.u32 %v3234, 4294901760
    %v3618 = vsub.f32 %v3234, %v3617
    %3619 = vmatmul.f32.gmra.mxu0 %v3618
    %v3620 = vpop.f32.mrf.mxu0
    %v3621 = vadd.f32 %v3580, %v3620
    %3622 = vdwg.mxu0
    %3623 = vmatpush.msra.mxu0 0.0
    %3624 = vmatpush.msra.mxu0 0.0
    %3625 = vmatpush.msra.mxu0 0.0
    %3626 = vmatpush.msra.mxu0 0.0
    %3627 = vmatpush.msra.mxu0 0.0
    %3628 = vmatpush.msra.mxu0 0.0
    %3629 = vmatpush.msra.mxu0 0.0
    %3630 = vmatpush.msra.mxu0 0.0
    %3631 = vmatpush.msra.mxu0 0.0
    %3632 = vmatpush.msra.mxu0 0.0
    %3633 = vmatpush.msra.mxu0 0.0
    %3634 = vmatpush.msra.mxu0 0.0
    %3635 = vmatpush.msra.mxu0 0.0
    %3636 = vmatpush.msra.mxu0 0.0
    %v3637 = vand.u32 %v3203, 4294901760
    %3638 = vmatpush.msra.mxu0 %v3637
    %v3639 = vand.u32 %v3199, 4294901760
    %3640 = vmatpush.msra.mxu0 %v3639
    %v3641 = vand.u32 %v3225, 4294901760
    %v3642 = vsub.f32 %v3225, %v3641
    %v3643 = vand.u32 %v3642, 4294901760
    %3644 = vmatmul.f32.gmra.mxu0 %v3643
    %v3645 = vpop.f32.mrf.mxu0
    %v3646 = vadd.f32 %v3606, %v3645
    %v3647 = vand.u32 %v3228, 4294901760
    %v3648 = vsub.f32 %v3228, %v3647
    %v3649 = vand.u32 %v3648, 4294901760
    %3650 = vmatmul.f32.gmra.mxu0 %v3649
    %v3651 = vpop.f32.mrf.mxu0
    %v3652 = vadd.f32 %v3611, %v3651
    %v3653 = vand.u32 %v3231, 4294901760
    %v3654 = vsub.f32 %v3231, %v3653
    %v3655 = vand.u32 %v3654, 4294901760
    %3656 = vmatmul.f32.gmra.mxu0 %v3655
    %v3657 = vpop.f32.mrf.mxu0
    %v3658 = vadd.f32 %v3616, %v3657
    %v3659 = vand.u32 %v3234, 4294901760
    %v3660 = vsub.f32 %v3234, %v3659
    %v3661 = vand.u32 %v3660, 4294901760
    %3662 = vmatmul.f32.gmra.mxu0 %v3661
    %v3663 = vpop.f32.mrf.mxu0
    %v3664 = vadd.f32 %v3621, %v3663
    %3665 = vdwg.mxu0
    %3666 = vmatpush.msra.mxu0 0.0
    %3667 = vmatpush.msra.mxu0 0.0
    %3668 = vmatpush.msra.mxu0 0.0
    %3669 = vmatpush.msra.mxu0 0.0
    %3670 = vmatpush.msra.mxu0 0.0
    %3671 = vmatpush.msra.mxu0 0.0
    %3672 = vmatpush.msra.mxu0 0.0
    %3673 = vmatpush.msra.mxu0 0.0
    %3674 = vmatpush.msra.mxu0 0.0
    %3675 = vmatpush.msra.mxu0 0.0
    %3676 = vmatpush.msra.mxu0 0.0
    %3677 = vmatpush.msra.mxu0 0.0
    %3678 = vmatpush.msra.mxu0 0.0
    %3679 = vmatpush.msra.mxu0 0.0
    %v3680 = vand.u32 %v3203, 4294901760
    %v3681 = vsub.f32 %v3203, %v3680
    %v3682 = vand.u32 %v3681, 4294901760
    %3683 = vmatpush.msra.mxu0 %v3682
    %v3684 = vand.u32 %v3199, 4294901760
    %v3685 = vsub.f32 %v3199, %v3684
    %v3686 = vand.u32 %v3685, 4294901760
    %3687 = vmatpush.msra.mxu0 %v3686
    %v3688 = vand.u32 %v3225, 4294901760
    %3689 = vmatmul.f32.gmra.mxu0 %v3688
    %v3690 = vpop.f32.mrf.mxu0
    %v3691 = vadd.f32 %v3646, %v3690
    %v3692 = vand.u32 %v3228, 4294901760
    %3693 = vmatmul.f32.gmra.mxu0 %v3692
    %v3694 = vpop.f32.mrf.mxu0
    %v3695 = vadd.f32 %v3652, %v3694
    %v3696 = vand.u32 %v3231, 4294901760
    %3697 = vmatmul.f32.gmra.mxu0 %v3696
    %v3698 = vpop.f32.mrf.mxu0
    %v3699 = vadd.f32 %v3658, %v3698
    %v3700 = vand.u32 %v3234, 4294901760
    %3701 = vmatmul.f32.gmra.mxu0 %v3700
    %v3702 = vpop.f32.mrf.mxu0
    %v3703 = vadd.f32 %v3664, %v3702
    %3704 = vdwg.mxu0
    %3705 = vmatpush.msra.mxu0 0.0
    %3706 = vmatpush.msra.mxu0 0.0
    %3707 = vmatpush.msra.mxu0 0.0
    %3708 = vmatpush.msra.mxu0 0.0
    %3709 = vmatpush.msra.mxu0 0.0
    %3710 = vmatpush.msra.mxu0 0.0
    %3711 = vmatpush.msra.mxu0 0.0
    %3712 = vmatpush.msra.mxu0 0.0
    %3713 = vmatpush.msra.mxu0 0.0
    %3714 = vmatpush.msra.mxu0 0.0
    %3715 = vmatpush.msra.mxu0 0.0
    %3716 = vmatpush.msra.mxu0 0.0
    %3717 = vmatpush.msra.mxu0 0.0
    %3718 = vmatpush.msra.mxu0 0.0
    %v3719 = vand.u32 %v3203, 4294901760
    %3720 = vmatpush.msra.mxu0 %v3719
    %v3721 = vand.u32 %v3199, 4294901760
    %3722 = vmatpush.msra.mxu0 %v3721
    %v3723 = vand.u32 %v3225, 4294901760
    %3724 = vmatmul.f32.gmra.mxu0 %v3723
    %v3725 = vpop.f32.mrf.mxu0
    %v3726 = vadd.f32 %v3691, %v3725
    %v3727 = vand.u32 %v3228, 4294901760
    %3728 = vmatmul.f32.gmra.mxu0 %v3727
    %v3729 = vpop.f32.mrf.mxu0
    %v3730 = vadd.f32 %v3695, %v3729
    %v3731 = vand.u32 %v3231, 4294901760
    %3732 = vmatmul.f32.gmra.mxu0 %v3731
    %v3733 = vpop.f32.mrf.mxu0
    %v3734 = vadd.f32 %v3699, %v3733
    %v3735 = vand.u32 %v3234, 4294901760
    %3736 = vmatmul.f32.gmra.mxu0 %v3735
    %v3737 = vpop.f32.mrf.mxu0
    %v3738 = vadd.f32 %v3703, %v3737
    %3739 = vdwg.mxu0
    %3740 = vmatpush.msra.mxu0 0.0
    %3741 = vmatpush.msra.mxu0 0.0
    %3742 = vmatpush.msra.mxu0 0.0
    %3743 = vmatpush.msra.mxu0 0.0
    %3744 = vmatpush.msra.mxu0 0.0
    %3745 = vmatpush.msra.mxu0 0.0
    %3746 = vmatpush.msra.mxu0 0.0
    %3747 = vmatpush.msra.mxu0 0.0
    %3748 = vmatpush.msra.mxu0 0.0
    %3749 = vmatpush.msra.mxu0 0.0
    %3750 = vmatpush.msra.mxu0 0.0
    %3751 = vmatpush.msra.mxu0 0.0
    %3752 = vmatpush.msra.mxu0 0.0
    %3753 = vmatpush.msra.mxu0 0.0
    %v3754 = vand.u32 %v3204, 4294901760
    %3755 = vmatpush.msra.mxu0 %v3754
    %v3756 = vand.u32 %v3200, 4294901760
    %3757 = vmatpush.msra.mxu0 %v3756
    %v3758 = vand.u32 %v3225, 4294901760
    %v3759 = vsub.f32 %v3225, %v3758
    %v3760 = vand.u32 %v3759, 4294901760
    %v3761 = vsub.f32 %v3759, %v3760
    %v3762 = vand.u32 %v3761, 4294901760
    %3763 = vmatmul.f32.gmra.mxu0 %v3762
    %v3764 = vpop.f32.mrf.mxu0
    %v3765 = vadd.f32 %v3208, %v3764
    %v3766 = vand.u32 %v3228, 4294901760
    %v3767 = vsub.f32 %v3228, %v3766
    %v3768 = vand.u32 %v3767, 4294901760
    %v3769 = vsub.f32 %v3767, %v3768
    %v3770 = vand.u32 %v3769, 4294901760
    %3771 = vmatmul.f32.gmra.mxu0 %v3770
    %v3772 = vpop.f32.mrf.mxu0
    %v3773 = vadd.f32 %v3212, %v3772
    %v3774 = vand.u32 %v3231, 4294901760
    %v3775 = vsub.f32 %v3231, %v3774
    %v3776 = vand.u32 %v3775, 4294901760
    %v3777 = vsub.f32 %v3775, %v3776
    %v3778 = vand.u32 %v3777, 4294901760
    %3779 = vmatmul.f32.gmra.mxu0 %v3778
    %v3780 = vpop.f32.mrf.mxu0
    %v3781 = vadd.f32 %v3217, %v3780
    %v3782 = vand.u32 %v3234, 4294901760
    %v3783 = vsub.f32 %v3234, %v3782
    %v3784 = vand.u32 %v3783, 4294901760
    %v3785 = vsub.f32 %v3783, %v3784
    %v3786 = vand.u32 %v3785, 4294901760
    %3787 = vmatmul.f32.gmra.mxu0 %v3786
    %v3788 = vpop.f32.mrf.mxu0
    %v3789 = vadd.f32 %v3222, %v3788
    %3790 = vdwg.mxu0
    %3791 = vmatpush.msra.mxu0 0.0
    %3792 = vmatpush.msra.mxu0 0.0
    %3793 = vmatpush.msra.mxu0 0.0
    %3794 = vmatpush.msra.mxu0 0.0
    %3795 = vmatpush.msra.mxu0 0.0
    %3796 = vmatpush.msra.mxu0 0.0
    %3797 = vmatpush.msra.mxu0 0.0
    %3798 = vmatpush.msra.mxu0 0.0
    %3799 = vmatpush.msra.mxu0 0.0
    %3800 = vmatpush.msra.mxu0 0.0
    %3801 = vmatpush.msra.mxu0 0.0
    %3802 = vmatpush.msra.mxu0 0.0
    %3803 = vmatpush.msra.mxu0 0.0
    %3804 = vmatpush.msra.mxu0 0.0
    %v3805 = vand.u32 %v3204, 4294901760
    %v3806 = vsub.f32 %v3204, %v3805
    %v3807 = vand.u32 %v3806, 4294901760
    %v3808 = vsub.f32 %v3806, %v3807
    %v3809 = vand.u32 %v3808, 4294901760
    %3810 = vmatpush.msra.mxu0 %v3809
    %v3811 = vand.u32 %v3200, 4294901760
    %v3812 = vsub.f32 %v3200, %v3811
    %v3813 = vand.u32 %v3812, 4294901760
    %v3814 = vsub.f32 %v3812, %v3813
    %v3815 = vand.u32 %v3814, 4294901760
    %3816 = vmatpush.msra.mxu0 %v3815
    %v3817 = vand.u32 %v3225, 4294901760
    %3818 = vmatmul.f32.gmra.mxu0 %v3817
    %v3819 = vpop.f32.mrf.mxu0
    %v3820 = vadd.f32 %v3765, %v3819
    %v3821 = vand.u32 %v3228, 4294901760
    %3822 = vmatmul.f32.gmra.mxu0 %v3821
    %v3823 = vpop.f32.mrf.mxu0
    %v3824 = vadd.f32 %v3773, %v3823
    %v3825 = vand.u32 %v3231, 4294901760
    %3826 = vmatmul.f32.gmra.mxu0 %v3825
    %v3827 = vpop.f32.mrf.mxu0
    %v3828 = vadd.f32 %v3781, %v3827
    %v3829 = vand.u32 %v3234, 4294901760
    %3830 = vmatmul.f32.gmra.mxu0 %v3829
    %v3831 = vpop.f32.mrf.mxu0
    %v3832 = vadd.f32 %v3789, %v3831
    %3833 = vdwg.mxu0
    %3834 = vmatpush.msra.mxu0 0.0
    %3835 = vmatpush.msra.mxu0 0.0
    %3836 = vmatpush.msra.mxu0 0.0
    %3837 = vmatpush.msra.mxu0 0.0
    %3838 = vmatpush.msra.mxu0 0.0
    %3839 = vmatpush.msra.mxu0 0.0
    %3840 = vmatpush.msra.mxu0 0.0
    %3841 = vmatpush.msra.mxu0 0.0
    %3842 = vmatpush.msra.mxu0 0.0
    %3843 = vmatpush.msra.mxu0 0.0
    %3844 = vmatpush.msra.mxu0 0.0
    %3845 = vmatpush.msra.mxu0 0.0
    %3846 = vmatpush.msra.mxu0 0.0
    %3847 = vmatpush.msra.mxu0 0.0
    %v3848 = vand.u32 %v3204, 4294901760
    %v3849 = vsub.f32 %v3204, %v3848
    %3850 = vmatpush.msra.mxu0 %v3849
    %v3851 = vand.u32 %v3200, 4294901760
    %v3852 = vsub.f32 %v3200, %v3851
    %3853 = vmatpush.msra.mxu0 %v3852
    %v3854 = vand.u32 %v3225, 4294901760
    %v3855 = vsub.f32 %v3225, %v3854
    %3856 = vmatmul.f32.gmra.mxu0 %v3855
    %v3857 = vpop.f32.mrf.mxu0
    %v3858 = vadd.f32 %v3820, %v3857
    %v3859 = vand.u32 %v3228, 4294901760
    %v3860 = vsub.f32 %v3228, %v3859
    %3861 = vmatmul.f32.gmra.mxu0 %v3860
    %v3862 = vpop.f32.mrf.mxu0
    %v3863 = vadd.f32 %v3824, %v3862
    %v3864 = vand.u32 %v3231, 4294901760
    %v3865 = vsub.f32 %v3231, %v3864
    %3866 = vmatmul.f32.gmra.mxu0 %v3865
    %v3867 = vpop.f32.mrf.mxu0
    %v3868 = vadd.f32 %v3828, %v3867
    %v3869 = vand.u32 %v3234, 4294901760
    %v3870 = vsub.f32 %v3234, %v3869
    %3871 = vmatmul.f32.gmra.mxu0 %v3870
    %v3872 = vpop.f32.mrf.mxu0
    %v3873 = vadd.f32 %v3832, %v3872
    %3874 = vdwg.mxu0
    %3875 = vmatpush.msra.mxu0 0.0
    %3876 = vmatpush.msra.mxu0 0.0
    %3877 = vmatpush.msra.mxu0 0.0
    %3878 = vmatpush.msra.mxu0 0.0
    %3879 = vmatpush.msra.mxu0 0.0
    %3880 = vmatpush.msra.mxu0 0.0
    %3881 = vmatpush.msra.mxu0 0.0
    %3882 = vmatpush.msra.mxu0 0.0
    %3883 = vmatpush.msra.mxu0 0.0
    %3884 = vmatpush.msra.mxu0 0.0
    %3885 = vmatpush.msra.mxu0 0.0
    %3886 = vmatpush.msra.mxu0 0.0
    %3887 = vmatpush.msra.mxu0 0.0
    %3888 = vmatpush.msra.mxu0 0.0
    %v3889 = vand.u32 %v3204, 4294901760
    %3890 = vmatpush.msra.mxu0 %v3889
    %v3891 = vand.u32 %v3200, 4294901760
    %3892 = vmatpush.msra.mxu0 %v3891
    %v3893 = vand.u32 %v3225, 4294901760
    %v3894 = vsub.f32 %v3225, %v3893
    %v3895 = vand.u32 %v3894, 4294901760
    %3896 = vmatmul.f32.gmra.mxu0 %v3895
    %v3897 = vpop.f32.mrf.mxu0
    %v3898 = vadd.f32 %v3858, %v3897
    %v3899 = vand.u32 %v3228, 4294901760
    %v3900 = vsub.f32 %v3228, %v3899
    %v3901 = vand.u32 %v3900, 4294901760
    %3902 = vmatmul.f32.gmra.mxu0 %v3901
    %v3903 = vpop.f32.mrf.mxu0
    %v3904 = vadd.f32 %v3863, %v3903
    %v3905 = vand.u32 %v3231, 4294901760
    %v3906 = vsub.f32 %v3231, %v3905
    %v3907 = vand.u32 %v3906, 4294901760
    %3908 = vmatmul.f32.gmra.mxu0 %v3907
    %v3909 = vpop.f32.mrf.mxu0
    %v3910 = vadd.f32 %v3868, %v3909
    %v3911 = vand.u32 %v3234, 4294901760
    %v3912 = vsub.f32 %v3234, %v3911
    %v3913 = vand.u32 %v3912, 4294901760
    %3914 = vmatmul.f32.gmra.mxu0 %v3913
    %v3915 = vpop.f32.mrf.mxu0
    %v3916 = vadd.f32 %v3873, %v3915
    %3917 = vdwg.mxu0
    %3918 = vmatpush.msra.mxu0 0.0
    %3919 = vmatpush.msra.mxu0 0.0
    %3920 = vmatpush.msra.mxu0 0.0
    %3921 = vmatpush.msra.mxu0 0.0
    %3922 = vmatpush.msra.mxu0 0.0
    %3923 = vmatpush.msra.mxu0 0.0
    %3924 = vmatpush.msra.mxu0 0.0
    %3925 = vmatpush.msra.mxu0 0.0
    %3926 = vmatpush.msra.mxu0 0.0
    %3927 = vmatpush.msra.mxu0 0.0
    %3928 = vmatpush.msra.mxu0 0.0
    %3929 = vmatpush.msra.mxu0 0.0
    %3930 = vmatpush.msra.mxu0 0.0
    %3931 = vmatpush.msra.mxu0 0.0
    %v3932 = vand.u32 %v3204, 4294901760
    %v3933 = vsub.f32 %v3204, %v3932
    %v3934 = vand.u32 %v3933, 4294901760
    %3935 = vmatpush.msra.mxu0 %v3934
    %v3936 = vand.u32 %v3200, 4294901760
    %v3937 = vsub.f32 %v3200, %v3936
    %v3938 = vand.u32 %v3937, 4294901760
    %3939 = vmatpush.msra.mxu0 %v3938
    %v3940 = vand.u32 %v3225, 4294901760
    %3941 = vmatmul.f32.gmra.mxu0 %v3940
    %v3942 = vpop.f32.mrf.mxu0
    %v3943 = vadd.f32 %v3898, %v3942
    %v3944 = vand.u32 %v3228, 4294901760
    %3945 = vmatmul.f32.gmra.mxu0 %v3944
    %v3946 = vpop.f32.mrf.mxu0
    %v3947 = vadd.f32 %v3904, %v3946
    %v3948 = vand.u32 %v3231, 4294901760
    %3949 = vmatmul.f32.gmra.mxu0 %v3948
    %v3950 = vpop.f32.mrf.mxu0
    %v3951 = vadd.f32 %v3910, %v3950
    %v3952 = vand.u32 %v3234, 4294901760
    %3953 = vmatmul.f32.gmra.mxu0 %v3952
    %v3954 = vpop.f32.mrf.mxu0
    %v3955 = vadd.f32 %v3916, %v3954
    %3956 = vdwg.mxu0
    %3957 = vmatpush.msra.mxu0 0.0
    %3958 = vmatpush.msra.mxu0 0.0
    %3959 = vmatpush.msra.mxu0 0.0
    %3960 = vmatpush.msra.mxu0 0.0
    %3961 = vmatpush.msra.mxu0 0.0
    %3962 = vmatpush.msra.mxu0 0.0
    %3963 = vmatpush.msra.mxu0 0.0
    %3964 = vmatpush.msra.mxu0 0.0
    %3965 = vmatpush.msra.mxu0 0.0
    %3966 = vmatpush.msra.mxu0 0.0
    %3967 = vmatpush.msra.mxu0 0.0
    %3968 = vmatpush.msra.mxu0 0.0
    %3969 = vmatpush.msra.mxu0 0.0
    %3970 = vmatpush.msra.mxu0 0.0
    %v3971 = vand.u32 %v3204, 4294901760
    %3972 = vmatpush.msra.mxu0 %v3971
    %v3973 = vand.u32 %v3200, 4294901760
    %3974 = vmatpush.msra.mxu0 %v3973
    %v3975 = vand.u32 %v3225, 4294901760
    %3976 = vmatmul.f32.gmra.mxu0 %v3975
    %v3977 = vpop.f32.mrf.mxu0
    %v3978 = vadd.f32 %v3943, %v3977
    %v3979 = vand.u32 %v3228, 4294901760
    %3980 = vmatmul.f32.gmra.mxu0 %v3979
    %v3981 = vpop.f32.mrf.mxu0
    %v3982 = vadd.f32 %v3947, %v3981
    %v3983 = vand.u32 %v3231, 4294901760
    %3984 = vmatmul.f32.gmra.mxu0 %v3983
    %v3985 = vpop.f32.mrf.mxu0
    %v3986 = vadd.f32 %v3951, %v3985
    %v3987 = vand.u32 %v3234, 4294901760
    %3988 = vmatmul.f32.gmra.mxu0 %v3987
    %v3989 = vpop.f32.mrf.mxu0
    %v3990 = vadd.f32 %v3955, %v3989
    %3991 = vdwg.mxu0
    %3992 = vmatpush.msra.mxu0 0.0
    %3993 = vmatpush.msra.mxu0 0.0
    %3994 = vmatpush.msra.mxu0 0.0
    %3995 = vmatpush.msra.mxu0 0.0
    %3996 = vmatpush.msra.mxu0 0.0
    %3997 = vmatpush.msra.mxu0 0.0
    %3998 = vmatpush.msra.mxu0 0.0
    %3999 = vmatpush.msra.mxu0 0.0
    %4000 = vmatpush.msra.mxu0 0.0
    %4001 = vmatpush.msra.mxu0 0.0
    %4002 = vmatpush.msra.mxu0 0.0
    %4003 = vmatpush.msra.mxu0 0.0
    %4004 = vmatpush.msra.mxu0 0.0
    %4005 = vmatpush.msra.mxu0 0.0
    %v4006 = vand.u32 %v3205, 4294901760
    %4007 = vmatpush.msra.mxu0 %v4006
    %v4008 = vand.u32 %v3201, 4294901760
    %4009 = vmatpush.msra.mxu0 %v4008
    %v4010 = vand.u32 %v3225, 4294901760
    %v4011 = vsub.f32 %v3225, %v4010
    %v4012 = vand.u32 %v4011, 4294901760
    %v4013 = vsub.f32 %v4011, %v4012
    %v4014 = vand.u32 %v4013, 4294901760
    %4015 = vmatmul.f32.gmra.mxu0 %v4014
    %v4016 = vpop.f32.mrf.mxu0
    %v4017 = vadd.f32 %v3208, %v4016
    %v4018 = vand.u32 %v3228, 4294901760
    %v4019 = vsub.f32 %v3228, %v4018
    %v4020 = vand.u32 %v4019, 4294901760
    %v4021 = vsub.f32 %v4019, %v4020
    %v4022 = vand.u32 %v4021, 4294901760
    %4023 = vmatmul.f32.gmra.mxu0 %v4022
    %v4024 = vpop.f32.mrf.mxu0
    %v4025 = vadd.f32 %v3212, %v4024
    %v4026 = vand.u32 %v3231, 4294901760
    %v4027 = vsub.f32 %v3231, %v4026
    %v4028 = vand.u32 %v4027, 4294901760
    %v4029 = vsub.f32 %v4027, %v4028
    %v4030 = vand.u32 %v4029, 4294901760
    %4031 = vmatmul.f32.gmra.mxu0 %v4030
    %v4032 = vpop.f32.mrf.mxu0
    %v4033 = vadd.f32 %v3217, %v4032
    %v4034 = vand.u32 %v3234, 4294901760
    %v4035 = vsub.f32 %v3234, %v4034
    %v4036 = vand.u32 %v4035, 4294901760
    %v4037 = vsub.f32 %v4035, %v4036
    %v4038 = vand.u32 %v4037, 4294901760
    %4039 = vmatmul.f32.gmra.mxu0 %v4038
    %v4040 = vpop.f32.mrf.mxu0
    %v4041 = vadd.f32 %v3222, %v4040
    %4042 = vdwg.mxu0
    %4043 = vmatpush.msra.mxu0 0.0
    %4044 = vmatpush.msra.mxu0 0.0
    %4045 = vmatpush.msra.mxu0 0.0
    %4046 = vmatpush.msra.mxu0 0.0
    %4047 = vmatpush.msra.mxu0 0.0
    %4048 = vmatpush.msra.mxu0 0.0
    %4049 = vmatpush.msra.mxu0 0.0
    %4050 = vmatpush.msra.mxu0 0.0
    %4051 = vmatpush.msra.mxu0 0.0
    %4052 = vmatpush.msra.mxu0 0.0
    %4053 = vmatpush.msra.mxu0 0.0
    %4054 = vmatpush.msra.mxu0 0.0
    %4055 = vmatpush.msra.mxu0 0.0
    %4056 = vmatpush.msra.mxu0 0.0
    %v4057 = vand.u32 %v3205, 4294901760
    %v4058 = vsub.f32 %v3205, %v4057
    %v4059 = vand.u32 %v4058, 4294901760
    %v4060 = vsub.f32 %v4058, %v4059
    %v4061 = vand.u32 %v4060, 4294901760
    %4062 = vmatpush.msra.mxu0 %v4061
    %v4063 = vand.u32 %v3201, 4294901760
    %v4064 = vsub.f32 %v3201, %v4063
    %v4065 = vand.u32 %v4064, 4294901760
    %v4066 = vsub.f32 %v4064, %v4065
    %v4067 = vand.u32 %v4066, 4294901760
    %4068 = vmatpush.msra.mxu0 %v4067
    %v4069 = vand.u32 %v3225, 4294901760
    %4070 = vmatmul.f32.gmra.mxu0 %v4069
    %v4071 = vpop.f32.mrf.mxu0
    %v4072 = vadd.f32 %v4017, %v4071
    %v4073 = vand.u32 %v3228, 4294901760
    %4074 = vmatmul.f32.gmra.mxu0 %v4073
    %v4075 = vpop.f32.mrf.mxu0
    %v4076 = vadd.f32 %v4025, %v4075
    %v4077 = vand.u32 %v3231, 4294901760
    %4078 = vmatmul.f32.gmra.mxu0 %v4077
    %v4079 = vpop.f32.mrf.mxu0
    %v4080 = vadd.f32 %v4033, %v4079
    %v4081 = vand.u32 %v3234, 4294901760
    %4082 = vmatmul.f32.gmra.mxu0 %v4081
    %v4083 = vpop.f32.mrf.mxu0
    %v4084 = vadd.f32 %v4041, %v4083
    %4085 = vdwg.mxu0
    %4086 = vmatpush.msra.mxu0 0.0
    %4087 = vmatpush.msra.mxu0 0.0
    %4088 = vmatpush.msra.mxu0 0.0
    %4089 = vmatpush.msra.mxu0 0.0
    %4090 = vmatpush.msra.mxu0 0.0
    %4091 = vmatpush.msra.mxu0 0.0
    %4092 = vmatpush.msra.mxu0 0.0
    %4093 = vmatpush.msra.mxu0 0.0
    %4094 = vmatpush.msra.mxu0 0.0
    %4095 = vmatpush.msra.mxu0 0.0
    %4096 = vmatpush.msra.mxu0 0.0
    %4097 = vmatpush.msra.mxu0 0.0
    %4098 = vmatpush.msra.mxu0 0.0
    %4099 = vmatpush.msra.mxu0 0.0
    %v4100 = vand.u32 %v3205, 4294901760
    %v4101 = vsub.f32 %v3205, %v4100
    %4102 = vmatpush.msra.mxu0 %v4101
    %v4103 = vand.u32 %v3201, 4294901760
    %v4104 = vsub.f32 %v3201, %v4103
    %4105 = vmatpush.msra.mxu0 %v4104
    %v4106 = vand.u32 %v3225, 4294901760
    %v4107 = vsub.f32 %v3225, %v4106
    %4108 = vmatmul.f32.gmra.mxu0 %v4107
    %v4109 = vpop.f32.mrf.mxu0
    %v4110 = vadd.f32 %v4072, %v4109
    %v4111 = vand.u32 %v3228, 4294901760
    %v4112 = vsub.f32 %v3228, %v4111
    %4113 = vmatmul.f32.gmra.mxu0 %v4112
    %v4114 = vpop.f32.mrf.mxu0
    %v4115 = vadd.f32 %v4076, %v4114
    %v4116 = vand.u32 %v3231, 4294901760
    %v4117 = vsub.f32 %v3231, %v4116
    %4118 = vmatmul.f32.gmra.mxu0 %v4117
    %v4119 = vpop.f32.mrf.mxu0
    %v4120 = vadd.f32 %v4080, %v4119
    %v4121 = vand.u32 %v3234, 4294901760
    %v4122 = vsub.f32 %v3234, %v4121
    %4123 = vmatmul.f32.gmra.mxu0 %v4122
    %v4124 = vpop.f32.mrf.mxu0
    %v4125 = vadd.f32 %v4084, %v4124
    %4126 = vdwg.mxu0
    %4127 = vmatpush.msra.mxu0 0.0
    %4128 = vmatpush.msra.mxu0 0.0
    %4129 = vmatpush.msra.mxu0 0.0
    %4130 = vmatpush.msra.mxu0 0.0
    %4131 = vmatpush.msra.mxu0 0.0
    %4132 = vmatpush.msra.mxu0 0.0
    %4133 = vmatpush.msra.mxu0 0.0
    %4134 = vmatpush.msra.mxu0 0.0
    %4135 = vmatpush.msra.mxu0 0.0
    %4136 = vmatpush.msra.mxu0 0.0
    %4137 = vmatpush.msra.mxu0 0.0
    %4138 = vmatpush.msra.mxu0 0.0
    %4139 = vmatpush.msra.mxu0 0.0
    %4140 = vmatpush.msra.mxu0 0.0
    %v4141 = vand.u32 %v3205, 4294901760
    %4142 = vmatpush.msra.mxu0 %v4141
    %v4143 = vand.u32 %v3201, 4294901760
    %4144 = vmatpush.msra.mxu0 %v4143
    %v4145 = vand.u32 %v3225, 4294901760
    %v4146 = vsub.f32 %v3225, %v4145
    %v4147 = vand.u32 %v4146, 4294901760
    %4148 = vmatmul.f32.gmra.mxu0 %v4147
    %v4149 = vpop.f32.mrf.mxu0
    %v4150 = vadd.f32 %v4110, %v4149
    %v4151 = vand.u32 %v3228, 4294901760
    %v4152 = vsub.f32 %v3228, %v4151
    %v4153 = vand.u32 %v4152, 4294901760
    %4154 = vmatmul.f32.gmra.mxu0 %v4153
    %v4155 = vpop.f32.mrf.mxu0
    %v4156 = vadd.f32 %v4115, %v4155
    %v4157 = vand.u32 %v3231, 4294901760
    %v4158 = vsub.f32 %v3231, %v4157
    %v4159 = vand.u32 %v4158, 4294901760
    %4160 = vmatmul.f32.gmra.mxu0 %v4159
    %v4161 = vpop.f32.mrf.mxu0
    %v4162 = vadd.f32 %v4120, %v4161
    %v4163 = vand.u32 %v3234, 4294901760
    %v4164 = vsub.f32 %v3234, %v4163
    %v4165 = vand.u32 %v4164, 4294901760
    %4166 = vmatmul.f32.gmra.mxu0 %v4165
    %v4167 = vpop.f32.mrf.mxu0
    %v4168 = vadd.f32 %v4125, %v4167
    %4169 = vdwg.mxu0
    %4170 = vmatpush.msra.mxu0 0.0
    %4171 = vmatpush.msra.mxu0 0.0
    %4172 = vmatpush.msra.mxu0 0.0
    %4173 = vmatpush.msra.mxu0 0.0
    %4174 = vmatpush.msra.mxu0 0.0
    %4175 = vmatpush.msra.mxu0 0.0
    %4176 = vmatpush.msra.mxu0 0.0
    %4177 = vmatpush.msra.mxu0 0.0
    %4178 = vmatpush.msra.mxu0 0.0
    %4179 = vmatpush.msra.mxu0 0.0
    %4180 = vmatpush.msra.mxu0 0.0
    %4181 = vmatpush.msra.mxu0 0.0
    %4182 = vmatpush.msra.mxu0 0.0
    %4183 = vmatpush.msra.mxu0 0.0
    %v4184 = vand.u32 %v3205, 4294901760
    %v4185 = vsub.f32 %v3205, %v4184
    %v4186 = vand.u32 %v4185, 4294901760
    %4187 = vmatpush.msra.mxu0 %v4186
    %v4188 = vand.u32 %v3201, 4294901760
    %v4189 = vsub.f32 %v3201, %v4188
    %v4190 = vand.u32 %v4189, 4294901760
    %4191 = vmatpush.msra.mxu0 %v4190
    %v4192 = vand.u32 %v3225, 4294901760
    %4193 = vmatmul.f32.gmra.mxu0 %v4192
    %v4194 = vpop.f32.mrf.mxu0
    %v4195 = vadd.f32 %v4150, %v4194
    %v4196 = vand.u32 %v3228, 4294901760
    %4197 = vmatmul.f32.gmra.mxu0 %v4196
    %v4198 = vpop.f32.mrf.mxu0
    %v4199 = vadd.f32 %v4156, %v4198
    %v4200 = vand.u32 %v3231, 4294901760
    %4201 = vmatmul.f32.gmra.mxu0 %v4200
    %v4202 = vpop.f32.mrf.mxu0
    %v4203 = vadd.f32 %v4162, %v4202
    %v4204 = vand.u32 %v3234, 4294901760
    %4205 = vmatmul.f32.gmra.mxu0 %v4204
    %v4206 = vpop.f32.mrf.mxu0
    %v4207 = vadd.f32 %v4168, %v4206
    %4208 = vdwg.mxu0
    %4209 = vmatpush.msra.mxu0 0.0
    %4210 = vmatpush.msra.mxu0 0.0
    %4211 = vmatpush.msra.mxu0 0.0
    %4212 = vmatpush.msra.mxu0 0.0
    %4213 = vmatpush.msra.mxu0 0.0
    %4214 = vmatpush.msra.mxu0 0.0
    %4215 = vmatpush.msra.mxu0 0.0
    %4216 = vmatpush.msra.mxu0 0.0
    %4217 = vmatpush.msra.mxu0 0.0
    %4218 = vmatpush.msra.mxu0 0.0
    %4219 = vmatpush.msra.mxu0 0.0
    %4220 = vmatpush.msra.mxu0 0.0
    %4221 = vmatpush.msra.mxu0 0.0
    %4222 = vmatpush.msra.mxu0 0.0
    %v4223 = vand.u32 %v3205, 4294901760
    %4224 = vmatpush.msra.mxu0 %v4223
    %v4225 = vand.u32 %v3201, 4294901760
    %4226 = vmatpush.msra.mxu0 %v4225
    %v4227 = vand.u32 %v3225, 4294901760
    %4228 = vmatmul.f32.gmra.mxu0 %v4227
    %v4229 = vpop.f32.mrf.mxu0
    %v4230 = vadd.f32 %v4195, %v4229
    %v4231 = vand.u32 %v3228, 4294901760
    %4232 = vmatmul.f32.gmra.mxu0 %v4231
    %v4233 = vpop.f32.mrf.mxu0
    %v4234 = vadd.f32 %v4199, %v4233
    %v4235 = vand.u32 %v3231, 4294901760
    %4236 = vmatmul.f32.gmra.mxu0 %v4235
    %v4237 = vpop.f32.mrf.mxu0
    %v4238 = vadd.f32 %v4203, %v4237
    %v4239 = vand.u32 %v3234, 4294901760
    %4240 = vmatmul.f32.gmra.mxu0 %v4239
    %v4241 = vpop.f32.mrf.mxu0
    %v4242 = vadd.f32 %v4207, %v4241
    %4243 = vdwg.mxu0
    %4244 = vst [vmem:[%s4] sm:$0xff] %v3474
    %4245 = vst [vmem:[%s4 + $0x8] sm:$0xff] %v3726
    %4246 = vst [vmem:[%s4 + $0x10] sm:$0xff] %v3978
    %4247 = vst [vmem:[%s4 + $0x18] sm:$0xff] %v4230
    %4248 = vst [vmem:[%s4 + $0x20] sm:$0xff] %v3478
    %4249 = vst [vmem:[%s4 + $0x28] sm:$0xff] %v3730
    %4250 = vst [vmem:[%s4 + $0x30] sm:$0xff] %v3982
    %4251 = vst [vmem:[%s4 + $0x38] sm:$0xff] %v4234
    %4252 = vst [vmem:[%s4 + $0x40] sm:$0xff] %v3482
    %4253 = vst [vmem:[%s4 + $0x48] sm:$0xff] %v3734
    %4254 = vst [vmem:[%s4 + $0x50] sm:$0xff] %v3986
    %4255 = vst [vmem:[%s4 + $0x58] sm:$0xff] %v4238
    %4256 = vst [vmem:[%s4 + $0x60] sm:$0xff] %v3486
    %4257 = vst [vmem:[%s4 + $0x68] sm:$0xff] %v3738
    %4258 = vst [vmem:[%s4 + $0x70] sm:$0xff] %v3990
    %4259 = vst [vmem:[%s4 + $0x78] sm:$0xff] %v4242
    // Predicated region
    $region14: #{_lambda_.1} parent=1 // pred_check
      _
    $region15: #{_lambda_.1} parent=1 // pred_check_branch
      %4261 = sbr.rel (0) target = $region17
    $region16: #{_lambda_.1} parent=1 // pred_region
      %4263 = vsyncadd [#allocation3], 0
      %s4264 = sshll.u32 [#allocation2], 4
      %s4265 = int_to_ptr.vmem [resolvable:$true] %s4264
      %s4266 = sshll.u32 %s3, 4
      %s4267 = int_to_ptr.hbm [resolvable:$true] %s4266
      %4272 = dma.vmem_to_hbm [thread:$0]  %s4265, 256, %s4267, [#allocation3], 128, 128, 8
    $region17: #{_lambda_.1} parent=1 // pred_fallthru
      _
    // Predicated region
    $region18: #{_lambda_.1} parent=1 // pred_check
      _
    $region19: #{_lambda_.1} parent=1 // pred_check_branch
      %4274 = sbr.rel (0) target = $region21
    $region20: #{_lambda_.1} parent=1 // pred_region
      _
    $region21: #{_lambda_.1} parent=1 // pred_fallthru
      _
    // Predicated region
    $region22: #{_lambda_.1} parent=1 // pred_check
      _
    $region23: #{_lambda_.1} parent=1 // pred_check_branch
      %4276 = sbr.rel (0) target = $region25
    $region24: #{_lambda_.1} parent=1 // pred_region
      %4278 = dma.done [#allocation3], 256
    $region25: #{_lambda_.1} parent=1 // pred_fallthru
      _
    // Predicated region
    $region26: #{_lambda_.1} parent=1 // pred_check
      _
    $region27: #{_lambda_.1} parent=1 // pred_check_branch
      %4280 = sbr.rel (0) target = $region29
    $region28: #{_lambda_.1} parent=1 // pred_region
      _
    $region29: #{_lambda_.1} parent=1 // pred_fallthru
      _
    %4281 = vsyncpa [#allocation3], 1

</llo_original>
